<compile_context>
chip_gen: v5e
topology: v5e:2x2
jax: 0.10.0
libtpu: 0.0.40
codegen_flags: <defaults>
</compile_context>

<pallas_src>
import jax
import jax.numpy as jnp
from jax.experimental import pallas as pl
from jax.experimental.pallas import tpu as pltpu


def _round_up(x, m):
    return ((x + m - 1) // m) * m


# ----------------------------------------------------------------------------
# Fused Pallas kernels (with-seg and no-seg trace-time variants)
# ----------------------------------------------------------------------------
def _relu(v):
    return jnp.maximum(v, 0.0)


def _dot(a, b):
    return jnp.dot(a, b, preferred_element_type=jnp.float32)


def _mlp_and_heads(combined, w1_ref, bfc1_ref, w2_ref, bfc2_ref,
                   w3_ref, bfc3_ref, wh_ref, bh_ref, out_ref):
    bf16 = jnp.bfloat16
    # fusion MLP (fc1 is a single K=256 matmul thanks to the widened packing)
    h = _relu(_dot(combined.astype(bf16), w1_ref[...]) + bfc1_ref[...])
    h = _relu(_dot(h.astype(bf16), w2_ref[...]) + bfc2_ref[...])
    fus = _relu(_dot(h.astype(bf16), w3_ref[...]) + bfc3_ref[...])      # (TB, 32)

    # all 5 heads + fusion-feature passthrough: ONE lane-dense matmul -> (TB, 128)
    out = _dot(fus.astype(bf16), wh_ref[...]) + bh_ref[...]
    col = jax.lax.broadcasted_iota(jnp.int32, out.shape, 1)
    sig_mask = (col >= 3) & (col < 6)          # confidence / class / distance
    # clamp non-sigmoid lanes to 0 before exp so large passthrough values never
    # overflow; exact (non-approx) reciprocal for parity with torch.sigmoid.
    z = jnp.where(sig_mask, out, 0.0)
    sig = pl.reciprocal(1.0 + jnp.exp(-z), approx=False)
    out_ref[...] = jnp.where(sig_mask, sig, out)


def _fusion_kernel_seg(enc_in_ref, seg_ref,
                       w_enc_ref, b_enc_ref,
                       a1_ref, b1_ref, a2_ref, b2_ref, a3_ref, b3_ref,
                       wpool_ref, bpool_ref,
                       w1_ref, bfc1_ref, w2_ref, bfc2_ref, w3_ref, bfc3_ref,
                       wh_ref, bh_ref, out_ref):
    bf16 = jnp.bfloat16
    # det / trk / dep encoders: one block-diagonal matmul + ReLU, widened to the
    # full 256-wide concat slot (seg columns are zero so ReLU(0)=0 there).
    enc = _relu(_dot(enc_in_ref[...].astype(bf16), w_enc_ref[...]) + b_enc_ref[...])

    # segmentation path: each stride-2 conv is one dense channels-last matmul;
    # intermediates stay in bf16 (halves VMEM traffic of the (TB,1024) tensor).
    s = _relu(_dot(seg_ref[...], a1_ref[...]) + b1_ref[...]).astype(bf16)
    s = _relu(_dot(s, a2_ref[...]) + b2_ref[...]).astype(bf16)
    s = _relu(_dot(s, a3_ref[...]) + b3_ref[...]).astype(bf16)
    # adaptive avg pool (1/S folded into wpool) + Linear(64 -> 64), no activation,
    # already placed in the seg slot (columns 192..255) of the 256-wide concat.
    seg_e = _dot(s, wpool_ref[...]) + bpool_ref[...]

    _mlp_and_heads(enc + seg_e, w1_ref, bfc1_ref, w2_ref, bfc2_ref,
                   w3_ref, bfc3_ref, wh_ref, bh_ref, out_ref)


def _fusion_kernel_noseg(enc_in_ref,
                         w_enc_ref, b_enc_ref,
                         w1_ref, bfc1_ref, w2_ref, bfc2_ref, w3_ref, bfc3_ref,
                         wh_ref, bh_ref, out_ref):
    bf16 = jnp.bfloat16
    # seg_embed == 0 (torch.zeros_like): the seg columns of `enc` are already 0,
    # so the concat is just `enc` and the whole conv chain is skipped.
    enc = _relu(_dot(enc_in_ref[...].astype(bf16), w_enc_ref[...]) + b_enc_ref[...])
    _mlp_and_heads(enc, w1_ref, bfc1_ref, w2_ref, bfc2_ref,
                   w3_ref, bfc3_ref, wh_ref, bh_ref, out_ref)


# ----------------------------------------------------------------------------
# Parameter init (deterministic, PyTorch-default-style uniform, torch layouts)
# ----------------------------------------------------------------------------
def _linear_init(key, fan_in, fan_out):
    k1, k2 = jax.random.split(key)
    bound = 1.0 / (fan_in ** 0.5)
    w = jax.random.uniform(k1, (fan_out, fan_in), jnp.float32, -bound, bound)
    b = jax.random.uniform(k2, (fan_out,), jnp.float32, -bound, bound)
    return w, b


def _conv_init(key, cin, cout, k=3):
    k1, k2 = jax.random.split(key)
    fan_in = cin * k * k
    bound = 1.0 / (fan_in ** 0.5)
    w = jax.random.uniform(k1, (cout, cin, k, k), jnp.float32, -bound, bound)
    b = jax.random.uniform(k2, (cout,), jnp.float32, -bound, bound)
    return w, b


def init_params(key, input_dim=64, hidden_dim=128, output_dim=32):
    keys = jax.random.split(key, 16)
    p = {}
    p["det_w"], p["det_b"] = _linear_init(keys[0], 12, input_dim)
    p["trk_w"], p["trk_b"] = _linear_init(keys[1], 5, input_dim)
    p["dep_w"], p["dep_b"] = _linear_init(keys[2], 3, input_dim)
    p["conv1_w"], p["conv1_b"] = _conv_init(keys[3], 1, 16)
    p["conv2_w"], p["conv2_b"] = _conv_init(keys[4], 16, 32)
    p["conv3_w"], p["conv3_b"] = _conv_init(keys[5], 32, 64)
    p["seg_fc_w"], p["seg_fc_b"] = _linear_init(keys[6], 64, input_dim)
    p["fc1_w"], p["fc1_b"] = _linear_init(keys[7], input_dim * 4, hidden_dim)
    p["fc2_w"], p["fc2_b"] = _linear_init(keys[8], hidden_dim, hidden_dim)
    p["fc3_w"], p["fc3_b"] = _linear_init(keys[9], hidden_dim, output_dim)
    p["pos_w"], p["pos_b"] = _linear_init(keys[10], output_dim, 3)
    p["conf_w"], p["conf_b"] = _linear_init(keys[11], output_dim, 1)
    p["cls_w"], p["cls_b"] = _linear_init(keys[12], output_dim, 1)
    p["dist_w"], p["dist_b"] = _linear_init(keys[13], output_dim, 1)
    p["mask_w"], p["mask_b"] = _linear_init(keys[14], output_dim, 64)
    # TODO(synk): self.attention (nn.MultiheadAttention) is constructed in
    # __init__ but never used in forward(); no parameters are needed for it.
    return p


# ----------------------------------------------------------------------------
# One-time parameter preparation (all transposes / packing / conv lowering)
# ----------------------------------------------------------------------------
def _conv_operator_3x3_s2_p1(w, b, H, W):
    """Lower Conv2d(Cin, Cout, 3, stride=2, padding=1) (torch layout weights) to
    a dense channels-last operator A (H*W*Cin, Ho*Wo*Cout) and expanded bias
    (1, Ho*Wo*Cout) so the conv becomes Y_flat = X_flat @ A + b, with X/Y
    flattened spatial-major / channel-minor."""
    cout, cin = w.shape[0], w.shape[1]
    Ho = (H - 1) // 2 + 1
    Wo = (W - 1) // 2 + 1
    gs = []
    for kh in range(3):
        for kw in range(3):
            ih = jnp.arange(Ho) * 2 + kh - 1
            iw = jnp.arange(Wo) * 2 + kw - 1
            vh = ((ih >= 0) & (ih < H)).astype(jnp.float32)
            vw = ((iw >= 0) & (iw < W)).astype(jnp.float32)
            gh = jax.nn.one_hot(jnp.clip(ih, 0, H - 1), H, dtype=jnp.float32) * vh[:, None]
            gw = jax.nn.one_hot(jnp.clip(iw, 0, W - 1), W, dtype=jnp.float32) * vw[:, None]
            gs.append(jnp.einsum("ah,bw->abhw", gh, gw).reshape(Ho * Wo, H * W))
    g = jnp.stack(gs)                                    # (9, Ho*Wo, H*W)
    wk = w.transpose(2, 3, 1, 0).reshape(9, cin, cout)   # (9, Cin, Cout)
    a = jnp.einsum("kos,kic->sioc", g, wk).reshape(H * W * cin, Ho * Wo * cout)
    b_e = jnp.tile(b, (Ho * Wo,)).reshape(1, Ho * Wo * cout)
    return a, b_e, Ho, Wo


def prepare_params(params, H=16, W=16, input_dim=64, hidden_dim=128, output_dim=32):
    f32, bf16 = jnp.float32, jnp.bfloat16

    a1, b1e, H1, W1 = _conv_operator_3x3_s2_p1(params["conv1_w"], params["conv1_b"], H, W)
    a2, b2e, H2, W2 = _conv_operator_3x3_s2_p1(params["conv2_w"], params["conv2_b"], H1, W1)
    a3, b3e, H3, W3 = _conv_operator_3x3_s2_p1(params["conv3_w"], params["conv3_b"], H2, W2)
    s3 = H3 * W3
    cat_dim = 4 * input_dim                                # [det|trk|dep|seg] concat width

    d_in = params["det_w"].shape[1]
    t_in = params["trk_w"].shape[1]
    z_in = params["dep_w"].shape[1]

    # det/trk/dep encoders as one block-diagonal matmul, widened to cat_dim so
    # fc1 is a single K=256 matmul (seg columns zero -> ReLU(0)=0 there).
    w_enc = jnp.zeros((d_in + t_in + z_in, cat_dim), f32)
    w_enc = w_enc.at[:d_in, :input_dim].set(params["det_w"].T)
    w_enc = w_enc.at[d_in:d_in + t_in, input_dim:2 * input_dim].set(params["trk_w"].T)
    w_enc = w_enc.at[d_in + t_in:, 2 * input_dim:3 * input_dim].set(params["dep_w"].T)
    b_enc = jnp.zeros((1, cat_dim), f32)
    b_enc = b_enc.at[0, :3 * input_dim].set(
        jnp.concatenate([params["det_b"], params["trk_b"], params["dep_b"]]))

    # adaptive-avg-pool mean (1/s3) folded into seg fc weight, placed in the seg
    # slot (columns 3*input_dim .. 4*input_dim) of the widened concat.
    wpool = jnp.zeros((s3 * 64, cat_dim), f32)
    wpool = wpool.at[:, 3 * input_dim:].set(
        jnp.tile(params["seg_fc_w"].T / float(s3), (s3, 1)))
    bpool = jnp.zeros((1, cat_dim), f32)
    bpool = bpool.at[0, 3 * input_dim:].set(params["seg_fc_b"])

    # heads + fusion-feature passthrough packed into one lane-dense 128-wide matmul
    mask_dim = params["mask_w"].shape[0]                   # 64
    head_cols = 3 + 1 + 1 + 1 + mask_dim + output_dim
    n_out = ((head_cols + 127) // 128) * 128
    wh = jnp.zeros((output_dim, n_out), f32)
    wh = wh.at[:, 0:3].set(params["pos_w"].T)
    wh = wh.at[:, 3:4].set(params["conf_w"].T)
    wh = wh.at[:, 4:5].set(params["cls_w"].T)
    wh = wh.at[:, 5:6].set(params["dist_w"].T)
    wh = wh.at[:, 6:6 + mask_dim].set(params["mask_w"].T)
    wh = wh.at[:, 6 + mask_dim:6 + mask_dim + output_dim].set(
        jnp.eye(output_dim, dtype=f32))                    # fusion_features passthrough
    bh = jnp.zeros((1, n_out), f32)
    bh = bh.at[0, 0:3].set(params["pos_b"])
    bh = bh.at[0, 3:4].set(params["conf_b"])
    bh = bh.at[0, 4:5].set(params["cls_b"])
    bh = bh.at[0, 5:6].set(params["dist_b"])
    bh = bh.at[0, 6:6 + mask_dim].set(params["mask_b"])

    # All matmul operands in bf16 (f32 MXU accumulation); biases stay f32.
    return {
        "w_enc": w_enc.astype(bf16), "b_enc": b_enc,
        "a1": a1.astype(bf16), "b1e": b1e,
        "a2": a2.astype(bf16), "b2e": b2e,
        "a3": a3.astype(bf16), "b3e": b3e,
        "wpool": wpool.astype(bf16), "bpool": bpool,
        "w1": params["fc1_w"].T.astype(bf16), "bfc1": params["fc1_b"].reshape(1, -1),
        "w2": params["fc2_w"].T.astype(bf16), "bfc2": params["fc2_b"].reshape(1, -1),
        "w3": params["fc3_w"].T.astype(bf16), "bfc3": params["fc3_b"].reshape(1, -1),
        "wh": wh.astype(bf16), "bh": bh,
        "mask_dim": mask_dim, "output_dim": output_dim,
    }


# ----------------------------------------------------------------------------
# Forward pass: one pallas_call for the whole network
# ----------------------------------------------------------------------------
def fusion_network_forward(prep, det, trk, dep, seg):
    f32, bf16 = jnp.float32, jnp.bfloat16
    B = det.shape[0]
    enc_in = jnp.concatenate(
        [det.astype(f32), trk.astype(f32), dep.astype(f32)], axis=-1)    # (B, 20)

    have_seg = seg is not None
    hw = prep["a1"].shape[0]
    if have_seg:
        if seg.ndim == 3:
            seg = seg[:, None, :, :]
        # binary mask: bf16 is exact and halves the per-tile seg DMA bytes
        seg_flat = seg.reshape(B, -1).astype(bf16)
        assert seg_flat.shape[1] == hw, "seg spatial size mismatch with prepared conv operators"

    # Batch tiling: sublane-aligned tile; when there are enough rows, pick a tile
    # giving >=2 grid steps (v7x megacore via dimension_semantics="parallel").
    Bp = _round_up(max(B, 1), 8)
    if Bp <= 16:
        tb = Bp                                            # single step, block == full dim
    else:
        tb = min(512, _round_up(-(-Bp // 2), 16))          # 16-aligned (bf16 sublane packing)
        Bp = _round_up(Bp, tb)
    grid = (Bp // tb,)
    if Bp != B:
        enc_in = jnp.pad(enc_in, ((0, Bp - B), (0, 0)))
        if have_seg:
            seg_flat = jnp.pad(seg_flat, ((0, Bp - B), (0, 0)))

    n_out = prep["wh"].shape[1]

    def _full(a):   # block-invariant weight/bias: full-array block each grid step
        # TODO(synk): could be single-buffered (pipeline_mode=pl.Buffered(1));
        # footprint is small enough that the default double buffering is fine.
        return pl.BlockSpec(a.shape, lambda i: (0, 0))

    mlp_operands = (prep["w1"], prep["bfc1"], prep["w2"], prep["bfc2"],
                    prep["w3"], prep["bfc3"], prep["wh"], prep["bh"])

    if have_seg:
        kernel = _fusion_kernel_seg
        operands = (enc_in, seg_flat,
                    prep["w_enc"], prep["b_enc"],
                    prep["a1"], prep["b1e"], prep["a2"], prep["b2e"],
                    prep["a3"], prep["b3e"], prep["wpool"], prep["bpool"],
                    *mlp_operands)
        in_specs = ([pl.BlockSpec((tb, enc_in.shape[1]), lambda i: (i, 0)),
                     pl.BlockSpec((tb, hw), lambda i: (i, 0))]
                    + [_full(a) for a in operands[2:]])
    else:
        # seg is None (trace-time branch): no conv operators DMA'd, no conv matmuls.
        kernel = _fusion_kernel_noseg
        operands = (enc_in, prep["w_enc"], prep["b_enc"], *mlp_operands)
        in_specs = ([pl.BlockSpec((tb, enc_in.shape[1]), lambda i: (i, 0))]
                    + [_full(a) for a in operands[1:]])

    packed = pl.pallas_call(
        kernel,
        out_shape=jax.ShapeDtypeStruct((Bp, n_out), f32),
        grid=grid,
        in_specs=in_specs,
        out_specs=pl.BlockSpec((tb, n_out), lambda i: (i, 0)),
        compiler_params=pltpu.CompilerParams(
            dimension_semantics=("parallel",)),            # megacore sharding on v7x
    )(*operands)

    packed = packed[:B]
    o_mask = 6
    o_fus = o_mask + prep["mask_dim"]
    o_end = o_fus + prep["output_dim"]
    return {
        "position_delta": packed[:, 0:3],
        "confidence": packed[:, 3:4],
        "class_adjustment": packed[:, 4:5],
        "distance_refinement": packed[:, 5:6],
        "mask_features": packed[:, o_mask:o_fus],
        "fusion_features": packed[:, o_fus:o_end],
    }


# ----------------------------------------------------------------------------
# Main
# ----------------------------------------------------------------------------
if __name__ == "__main__":
    key = jax.random.PRNGKey(0)
    k_params, k_det, k_trk, k_dep, k_seg = jax.random.split(key, 5)

    params = init_params(k_params)
    prep = prepare_params(params, H=16, W=16)

    B = 2
    det = jax.random.normal(k_det, (B, 12), jnp.float32)
    trk = jax.random.normal(k_trk, (B, 5), jnp.float32)
    dep = jax.random.normal(k_dep, (B, 3), jnp.float32)
    seg = (jax.random.uniform(k_seg, (B, 1, 16, 16), jnp.float32) > 0.5).astype(
        jnp.float32)

    out = fusion_network_forward(prep, det, trk, dep, seg)
    jax.block_until_ready(out)
    out_ns = fusion_network_forward(prep, det, trk, dep, None)   # no-seg fast path
    jax.block_until_ready(out_ns)

    for o in (out, out_ns):
        assert o["position_delta"].shape == (B, 3)
        assert o["confidence"].shape == (B, 1)
        assert o["class_adjustment"].shape == (B, 1)
        assert o["distance_refinement"].shape == (B, 1)
        assert o["mask_features"].shape == (B, 64)
        assert o["fusion_features"].shape == (B, 32)
        for v in o.values():
            assert bool(jnp.all(jnp.isfinite(v)))
        assert bool(jnp.all((o["confidence"] >= 0.0) & (o["confidence"] <= 1.0)))

    print("KERNEL_OK")
</pallas_src>

<mosaic_0001>
module attributes {stable_mosaic.version = 11 : i64} {
  func.func @_fusion_kernel_seg(%arg0: i32, %arg1: memref<8x20xf32, #tpu.memory_space<vmem>>, %arg2: memref<8x256xbf16, #tpu.memory_space<vmem>>, %arg3: memref<20x256xbf16, #tpu.memory_space<vmem>>, %arg4: memref<1x256xf32, #tpu.memory_space<vmem>>, %arg5: memref<256x1024xbf16, #tpu.memory_space<vmem>>, %arg6: memref<1x1024xf32, #tpu.memory_space<vmem>>, %arg7: memref<1024x512xbf16, #tpu.memory_space<vmem>>, %arg8: memref<1x512xf32, #tpu.memory_space<vmem>>, %arg9: memref<512x256xbf16, #tpu.memory_space<vmem>>, %arg10: memref<1x256xf32, #tpu.memory_space<vmem>>, %arg11: memref<256x256xbf16, #tpu.memory_space<vmem>>, %arg12: memref<1x256xf32, #tpu.memory_space<vmem>>, %arg13: memref<256x128xbf16, #tpu.memory_space<vmem>>, %arg14: memref<1x128xf32, #tpu.memory_space<vmem>>, %arg15: memref<128x128xbf16, #tpu.memory_space<vmem>>, %arg16: memref<1x128xf32, #tpu.memory_space<vmem>>, %arg17: memref<128x32xbf16, #tpu.memory_space<vmem>>, %arg18: memref<1x32xf32, #tpu.memory_space<vmem>>, %arg19: memref<32x128xbf16, #tpu.memory_space<vmem>>, %arg20: memref<1x128xf32, #tpu.memory_space<vmem>>, %arg21: memref<8x128xf32, #tpu.memory_space<vmem>>) attributes {dimension_semantics = [#tpu.dimension_semantics<parallel>], iteration_bounds = array<i64: 1>, scalar_prefetch = 0 : i64, scratch_operands = 0 : i64, tpu.core_type = #tpu.core_type<tc>, window_params = [{transform_indices = @transform_0, window_bounds = array<i64: 8, 20>}, {transform_indices = @transform_1, window_bounds = array<i64: 8, 256>}, {pipeline_mode = #tpu.pipeline_mode<synchronous>, transform_indices = @transform_2, window_bounds = array<i64: 20, 256>}, {pipeline_mode = #tpu.pipeline_mode<synchronous>, transform_indices = @transform_3, window_bounds = array<i64: 1, 256>}, {pipeline_mode = #tpu.pipeline_mode<synchronous>, transform_indices = @transform_4, window_bounds = array<i64: 256, 1024>}, {pipeline_mode = #tpu.pipeline_mode<synchronous>, transform_indices = @transform_5, window_bounds = array<i64: 1, 1024>}, {pipeline_mode = #tpu.pipeline_mode<synchronous>, transform_indices = @transform_6, window_bounds = array<i64: 1024, 512>}, {pipeline_mode = #tpu.pipeline_mode<synchronous>, transform_indices = @transform_7, window_bounds = array<i64: 1, 512>}, {pipeline_mode = #tpu.pipeline_mode<synchronous>, transform_indices = @transform_8, window_bounds = array<i64: 512, 256>}, {pipeline_mode = #tpu.pipeline_mode<synchronous>, transform_indices = @transform_9, window_bounds = array<i64: 1, 256>}, {pipeline_mode = #tpu.pipeline_mode<synchronous>, transform_indices = @transform_10, window_bounds = array<i64: 256, 256>}, {pipeline_mode = #tpu.pipeline_mode<synchronous>, transform_indices = @transform_11, window_bounds = array<i64: 1, 256>}, {pipeline_mode = #tpu.pipeline_mode<synchronous>, transform_indices = @transform_12, window_bounds = array<i64: 256, 128>}, {pipeline_mode = #tpu.pipeline_mode<synchronous>, transform_indices = @transform_13, window_bounds = array<i64: 1, 128>}, {pipeline_mode = #tpu.pipeline_mode<synchronous>, transform_indices = @transform_14, window_bounds = array<i64: 128, 128>}, {pipeline_mode = #tpu.pipeline_mode<synchronous>, transform_indices = @transform_15, window_bounds = array<i64: 1, 128>}, {pipeline_mode = #tpu.pipeline_mode<synchronous>, transform_indices = @transform_16, window_bounds = array<i64: 128, 32>}, {pipeline_mode = #tpu.pipeline_mode<synchronous>, transform_indices = @transform_17, window_bounds = array<i64: 1, 32>}, {pipeline_mode = #tpu.pipeline_mode<synchronous>, transform_indices = @transform_18, window_bounds = array<i64: 32, 128>}, {pipeline_mode = #tpu.pipeline_mode<synchronous>, transform_indices = @transform_19, window_bounds = array<i64: 1, 128>}, {transform_indices = @transform_20, window_bounds = array<i64: 8, 128>}]} {
    %c0 = arith.constant 0 : index
    %c0_0 = arith.constant 0 : index
    %0 = vector.load %arg1[%c0, %c0_0] : memref<8x20xf32, #tpu.memory_space<vmem>>, vector<8x20xf32>
    %1 = arith.truncf %0 : vector<8x20xf32> to vector<8x20xbf16>
    %c0_1 = arith.constant 0 : index
    %c0_2 = arith.constant 0 : index
    %2 = vector.load %arg3[%c0_1, %c0_2] : memref<20x256xbf16, #tpu.memory_space<vmem>>, vector<20x256xbf16>
    %cst = arith.constant dense<0.000000e+00> : vector<8x256xf32>
    %3 = tpu.matmul %1, %2, %cst {dimension_numbers = #tpu.dot_dimension_numbers<[1], [0], [0], [1], [0, 0, 1, 1], [], []>} : vector<8x20xbf16>, vector<20x256xbf16>, vector<8x256xf32> -> vector<8x256xf32>
    %c0_3 = arith.constant 0 : index
    %c0_4 = arith.constant 0 : index
    %4 = vector.load %arg4[%c0_3, %c0_4] : memref<1x256xf32, #tpu.memory_space<vmem>>, vector<1x256xf32>
    %5 = vector.broadcast %4 : vector<1x256xf32> to vector<8x256xf32>
    %6 = arith.addf %3, %5 : vector<8x256xf32>
    %cst_5 = arith.constant 0.000000e+00 : f32
    %7 = vector.broadcast %cst_5 : f32 to vector<8x256xf32>
    %8 = arith.maximumf %6, %7 : vector<8x256xf32>
    %c0_6 = arith.constant 0 : index
    %c0_7 = arith.constant 0 : index
    %9 = vector.load %arg2[%c0_6, %c0_7] : memref<8x256xbf16, #tpu.memory_space<vmem>>, vector<8x256xbf16>
    %c0_8 = arith.constant 0 : index
    %c0_9 = arith.constant 0 : index
    %10 = vector.load %arg5[%c0_8, %c0_9] : memref<256x1024xbf16, #tpu.memory_space<vmem>>, vector<256x1024xbf16>
    %cst_10 = arith.constant dense<0.000000e+00> : vector<8x1024xf32>
    %11 = tpu.matmul %9, %10, %cst_10 {dimension_numbers = #tpu.dot_dimension_numbers<[1], [0], [0], [1], [0, 0, 1, 1], [], []>} : vector<8x256xbf16>, vector<256x1024xbf16>, vector<8x1024xf32> -> vector<8x1024xf32>
    %c0_11 = arith.constant 0 : index
    %c0_12 = arith.constant 0 : index
    %12 = vector.load %arg6[%c0_11, %c0_12] : memref<1x1024xf32, #tpu.memory_space<vmem>>, vector<1x1024xf32>
    %13 = vector.broadcast %12 : vector<1x1024xf32> to vector<8x1024xf32>
    %14 = arith.addf %11, %13 : vector<8x1024xf32>
    %cst_13 = arith.constant 0.000000e+00 : f32
    %15 = vector.broadcast %cst_13 : f32 to vector<8x1024xf32>
    %16 = arith.maximumf %14, %15 : vector<8x1024xf32>
    %17 = arith.truncf %16 : vector<8x1024xf32> to vector<8x1024xbf16>
    %c0_14 = arith.constant 0 : index
    %c0_15 = arith.constant 0 : index
    %18 = vector.load %arg7[%c0_14, %c0_15] : memref<1024x512xbf16, #tpu.memory_space<vmem>>, vector<1024x512xbf16>
    %cst_16 = arith.constant dense<0.000000e+00> : vector<8x512xf32>
    %19 = tpu.matmul %17, %18, %cst_16 {dimension_numbers = #tpu.dot_dimension_numbers<[1], [0], [0], [1], [0, 0, 1, 1], [], []>} : vector<8x1024xbf16>, vector<1024x512xbf16>, vector<8x512xf32> -> vector<8x512xf32>
    %c0_17 = arith.constant 0 : index
    %c0_18 = arith.constant 0 : index
    %20 = vector.load %arg8[%c0_17, %c0_18] : memref<1x512xf32, #tpu.memory_space<vmem>>, vector<1x512xf32>
    %21 = vector.broadcast %20 : vector<1x512xf32> to vector<8x512xf32>
    %22 = arith.addf %19, %21 : vector<8x512xf32>
    %cst_19 = arith.constant 0.000000e+00 : f32
    %23 = vector.broadcast %cst_19 : f32 to vector<8x512xf32>
    %24 = arith.maximumf %22, %23 : vector<8x512xf32>
    %25 = arith.truncf %24 : vector<8x512xf32> to vector<8x512xbf16>
    %c0_20 = arith.constant 0 : index
    %c0_21 = arith.constant 0 : index
    %26 = vector.load %arg9[%c0_20, %c0_21] : memref<512x256xbf16, #tpu.memory_space<vmem>>, vector<512x256xbf16>
    %cst_22 = arith.constant dense<0.000000e+00> : vector<8x256xf32>
    %27 = tpu.matmul %25, %26, %cst_22 {dimension_numbers = #tpu.dot_dimension_numbers<[1], [0], [0], [1], [0, 0, 1, 1], [], []>} : vector<8x512xbf16>, vector<512x256xbf16>, vector<8x256xf32> -> vector<8x256xf32>
    %c0_23 = arith.constant 0 : index
    %c0_24 = arith.constant 0 : index
    %28 = vector.load %arg10[%c0_23, %c0_24] : memref<1x256xf32, #tpu.memory_space<vmem>>, vector<1x256xf32>
    %29 = vector.broadcast %28 : vector<1x256xf32> to vector<8x256xf32>
    %30 = arith.addf %27, %29 : vector<8x256xf32>
    %cst_25 = arith.constant 0.000000e+00 : f32
    %31 = vector.broadcast %cst_25 : f32 to vector<8x256xf32>
    %32 = arith.maximumf %30, %31 : vector<8x256xf32>
    %33 = arith.truncf %32 : vector<8x256xf32> to vector<8x256xbf16>
    %c0_26 = arith.constant 0 : index
    %c0_27 = arith.constant 0 : index
    %34 = vector.load %arg11[%c0_26, %c0_27] : memref<256x256xbf16, #tpu.memory_space<vmem>>, vector<256x256xbf16>
    %cst_28 = arith.constant dense<0.000000e+00> : vector<8x256xf32>
    %35 = tpu.matmul %33, %34, %cst_28 {dimension_numbers = #tpu.dot_dimension_numbers<[1], [0], [0], [1], [0, 0, 1, 1], [], []>} : vector<8x256xbf16>, vector<256x256xbf16>, vector<8x256xf32> -> vector<8x256xf32>
    %c0_29 = arith.constant 0 : index
    %c0_30 = arith.constant 0 : index
    %36 = vector.load %arg12[%c0_29, %c0_30] : memref<1x256xf32, #tpu.memory_space<vmem>>, vector<1x256xf32>
    %37 = vector.broadcast %36 : vector<1x256xf32> to vector<8x256xf32>
    %38 = arith.addf %35, %37 : vector<8x256xf32>
    %39 = arith.addf %8, %38 : vector<8x256xf32>
    %40 = arith.truncf %39 : vector<8x256xf32> to vector<8x256xbf16>
    %c0_31 = arith.constant 0 : index
    %c0_32 = arith.constant 0 : index
    %41 = vector.load %arg13[%c0_31, %c0_32] : memref<256x128xbf16, #tpu.memory_space<vmem>>, vector<256x128xbf16>
    %cst_33 = arith.constant dense<0.000000e+00> : vector<8x128xf32>
    %42 = tpu.matmul %40, %41, %cst_33 {dimension_numbers = #tpu.dot_dimension_numbers<[1], [0], [0], [1], [0, 0, 1, 1], [], []>} : vector<8x256xbf16>, vector<256x128xbf16>, vector<8x128xf32> -> vector<8x128xf32>
    %c0_34 = arith.constant 0 : index
    %c0_35 = arith.constant 0 : index
    %43 = vector.load %arg14[%c0_34, %c0_35] : memref<1x128xf32, #tpu.memory_space<vmem>>, vector<1x128xf32>
    %44 = vector.broadcast %43 : vector<1x128xf32> to vector<8x128xf32>
    %45 = arith.addf %42, %44 : vector<8x128xf32>
    %cst_36 = arith.constant 0.000000e+00 : f32
    %46 = vector.broadcast %cst_36 : f32 to vector<8x128xf32>
    %47 = arith.maximumf %45, %46 : vector<8x128xf32>
    %48 = arith.truncf %47 : vector<8x128xf32> to vector<8x128xbf16>
    %c0_37 = arith.constant 0 : index
    %c0_38 = arith.constant 0 : index
    %49 = vector.load %arg15[%c0_37, %c0_38] : memref<128x128xbf16, #tpu.memory_space<vmem>>, vector<128x128xbf16>
    %cst_39 = arith.constant dense<0.000000e+00> : vector<8x128xf32>
    %50 = tpu.matmul %48, %49, %cst_39 {dimension_numbers = #tpu.dot_dimension_numbers<[1], [0], [0], [1], [0, 0, 1, 1], [], []>} : vector<8x128xbf16>, vector<128x128xbf16>, vector<8x128xf32> -> vector<8x128xf32>
    %c0_40 = arith.constant 0 : index
    %c0_41 = arith.constant 0 : index
    %51 = vector.load %arg16[%c0_40, %c0_41] : memref<1x128xf32, #tpu.memory_space<vmem>>, vector<1x128xf32>
    %52 = vector.broadcast %51 : vector<1x128xf32> to vector<8x128xf32>
    %53 = arith.addf %50, %52 : vector<8x128xf32>
    %cst_42 = arith.constant 0.000000e+00 : f32
    %54 = vector.broadcast %cst_42 : f32 to vector<8x128xf32>
    %55 = arith.maximumf %53, %54 : vector<8x128xf32>
    %56 = arith.truncf %55 : vector<8x128xf32> to vector<8x128xbf16>
    %c0_43 = arith.constant 0 : index
    %c0_44 = arith.constant 0 : index
    %57 = vector.load %arg17[%c0_43, %c0_44] : memref<128x32xbf16, #tpu.memory_space<vmem>>, vector<128x32xbf16>
    %cst_45 = arith.constant dense<0.000000e+00> : vector<8x32xf32>
    %58 = tpu.matmul %56, %57, %cst_45 {dimension_numbers = #tpu.dot_dimension_numbers<[1], [0], [0], [1], [0, 0, 1, 1], [], []>} : vector<8x128xbf16>, vector<128x32xbf16>, vector<8x32xf32> -> vector<8x32xf32>
    %c0_46 = arith.constant 0 : index
    %c0_47 = arith.constant 0 : index
    %59 = vector.load %arg18[%c0_46, %c0_47] : memref<1x32xf32, #tpu.memory_space<vmem>>, vector<1x32xf32>
    %60 = vector.broadcast %59 : vector<1x32xf32> to vector<8x32xf32>
    %61 = arith.addf %58, %60 : vector<8x32xf32>
    %cst_48 = arith.constant 0.000000e+00 : f32
    %62 = vector.broadcast %cst_48 : f32 to vector<8x32xf32>
    %63 = arith.maximumf %61, %62 : vector<8x32xf32>
    %64 = arith.truncf %63 : vector<8x32xf32> to vector<8x32xbf16>
    %c0_49 = arith.constant 0 : index
    %c0_50 = arith.constant 0 : index
    %65 = vector.load %arg19[%c0_49, %c0_50] : memref<32x128xbf16, #tpu.memory_space<vmem>>, vector<32x128xbf16>
    %cst_51 = arith.constant dense<0.000000e+00> : vector<8x128xf32>
    %66 = tpu.matmul %64, %65, %cst_51 {dimension_numbers = #tpu.dot_dimension_numbers<[1], [0], [0], [1], [0, 0, 1, 1], [], []>} : vector<8x32xbf16>, vector<32x128xbf16>, vector<8x128xf32> -> vector<8x128xf32>
    %c0_52 = arith.constant 0 : index
    %c0_53 = arith.constant 0 : index
    %67 = vector.load %arg20[%c0_52, %c0_53] : memref<1x128xf32, #tpu.memory_space<vmem>>, vector<1x128xf32>
    %68 = vector.broadcast %67 : vector<1x128xf32> to vector<8x128xf32>
    %69 = arith.addf %66, %68 : vector<8x128xf32>
    %70 = tpu.iota {dimensions = array<i32: 1>} : vector<8x128xi32>
    %c3_i32 = arith.constant 3 : i32
    %71 = vector.broadcast %c3_i32 : i32 to vector<8x128xi32>
    %72 = arith.cmpi sge, %70, %71 : vector<8x128xi32>
    %c6_i32 = arith.constant 6 : i32
    %73 = vector.broadcast %c6_i32 : i32 to vector<8x128xi32>
    %74 = arith.cmpi slt, %70, %73 : vector<8x128xi32>
    %75 = arith.andi %72, %74 : vector<8x128xi1>
    %cst_54 = arith.constant 0.000000e+00 : f32
    %76 = vector.broadcast %cst_54 : f32 to vector<8x128xf32>
    %77 = arith.select %75, %69, %76 : vector<8x128xi1>, vector<8x128xf32>
    %cst_55 = arith.constant 0.000000e+00 : f32
    %78 = vector.broadcast %cst_55 : f32 to vector<8x128xf32>
    %79 = arith.subf %78, %77 : vector<8x128xf32>
    %80 = math.exp %79 : vector<8x128xf32>
    %cst_56 = arith.constant 1.000000e+00 : f32
    %81 = vector.broadcast %cst_56 : f32 to vector<8x128xf32>
    %82 = arith.addf %81, %80 : vector<8x128xf32>
    %83 = tpu.reciprocal %82 : vector<8x128xf32> -> vector<8x128xf32>
    %84 = arith.select %75, %83, %69 : vector<8x128xi1>, vector<8x128xf32>
    %c0_57 = arith.constant 0 : index
    %c0_58 = arith.constant 0 : index
    %85 = vector.load %arg21[%c0_57, %c0_58] : memref<8x128xf32, #tpu.memory_space<vmem>>, vector<8x128xf32>
    tpu.vector_store %arg21[%c0_57, %c0_58], %84 {strides = array<i32>} : memref<8x128xf32, #tpu.memory_space<vmem>>, vector<8x128xf32>,
    return
  }
  func.func @transform_0(%arg0: i32) -> (i32, i32) {
    %c0_i32 = arith.constant 0 : i32
    %c0_i32_0 = arith.constant 0 : i32
    return %arg0, %c0_i32 : i32, i32
  }
  func.func @transform_1(%arg0: i32) -> (i32, i32) {
    %c0_i32 = arith.constant 0 : i32
    %c0_i32_0 = arith.constant 0 : i32
    return %arg0, %c0_i32 : i32, i32
  }
  func.func @transform_2(%arg0: i32) -> (i32, i32) {
    %c0_i32 = arith.constant 0 : i32
    %c0_i32_0 = arith.constant 0 : i32
    %c0_i32_1 = arith.constant 0 : i32
    return %c0_i32, %c0_i32_0 : i32, i32
  }
  func.func @transform_3(%arg0: i32) -> (i32, i32) {
    %c0_i32 = arith.constant 0 : i32
    %c0_i32_0 = arith.constant 0 : i32
    %c0_i32_1 = arith.constant 0 : i32
    return %c0_i32, %c0_i32_0 : i32, i32
  }
  func.func @transform_4(%arg0: i32) -> (i32, i32) {
    %c0_i32 = arith.constant 0 : i32
    %c0_i32_0 = arith.constant 0 : i32
    %c0_i32_1 = arith.constant 0 : i32
    return %c0_i32, %c0_i32_0 : i32, i32
  }
  func.func @transform_5(%arg0: i32) -> (i32, i32) {
    %c0_i32 = arith.constant 0 : i32
    %c0_i32_0 = arith.constant 0 : i32
    %c0_i32_1 = arith.constant 0 : i32
    return %c0_i32, %c0_i32_0 : i32, i32
  }
  func.func @transform_6(%arg0: i32) -> (i32, i32) {
    %c0_i32 = arith.constant 0 : i32
    %c0_i32_0 = arith.constant 0 : i32
    %c0_i32_1 = arith.constant 0 : i32
    return %c0_i32, %c0_i32_0 : i32, i32
  }
  func.func @transform_7(%arg0: i32) -> (i32, i32) {
    %c0_i32 = arith.constant 0 : i32
    %c0_i32_0 = arith.constant 0 : i32
    %c0_i32_1 = arith.constant 0 : i32
    return %c0_i32, %c0_i32_0 : i32, i32
  }
  func.func @transform_8(%arg0: i32) -> (i32, i32) {
    %c0_i32 = arith.constant 0 : i32
    %c0_i32_0 = arith.constant 0 : i32
    %c0_i32_1 = arith.constant 0 : i32
    return %c0_i32, %c0_i32_0 : i32, i32
  }
  func.func @transform_9(%arg0: i32) -> (i32, i32) {
    %c0_i32 = arith.constant 0 : i32
    %c0_i32_0 = arith.constant 0 : i32
    %c0_i32_1 = arith.constant 0 : i32
    return %c0_i32, %c0_i32_0 : i32, i32
  }
  func.func @transform_10(%arg0: i32) -> (i32, i32) {
    %c0_i32 = arith.constant 0 : i32
    %c0_i32_0 = arith.constant 0 : i32
    %c0_i32_1 = arith.constant 0 : i32
    return %c0_i32, %c0_i32_0 : i32, i32
  }
  func.func @transform_11(%arg0: i32) -> (i32, i32) {
    %c0_i32 = arith.constant 0 : i32
    %c0_i32_0 = arith.constant 0 : i32
    %c0_i32_1 = arith.constant 0 : i32
    return %c0_i32, %c0_i32_0 : i32, i32
  }
  func.func @transform_12(%arg0: i32) -> (i32, i32) {
    %c0_i32 = arith.constant 0 : i32
    %c0_i32_0 = arith.constant 0 : i32
    %c0_i32_1 = arith.constant 0 : i32
    return %c0_i32, %c0_i32_0 : i32, i32
  }
  func.func @transform_13(%arg0: i32) -> (i32, i32) {
    %c0_i32 = arith.constant 0 : i32
    %c0_i32_0 = arith.constant 0 : i32
    %c0_i32_1 = arith.constant 0 : i32
    return %c0_i32, %c0_i32_0 : i32, i32
  }
  func.func @transform_14(%arg0: i32) -> (i32, i32) {
    %c0_i32 = arith.constant 0 : i32
    %c0_i32_0 = arith.constant 0 : i32
    %c0_i32_1 = arith.constant 0 : i32
    return %c0_i32, %c0_i32_0 : i32, i32
  }
  func.func @transform_15(%arg0: i32) -> (i32, i32) {
    %c0_i32 = arith.constant 0 : i32
    %c0_i32_0 = arith.constant 0 : i32
    %c0_i32_1 = arith.constant 0 : i32
    return %c0_i32, %c0_i32_0 : i32, i32
  }
  func.func @transform_16(%arg0: i32) -> (i32, i32) {
    %c0_i32 = arith.constant 0 : i32
    %c0_i32_0 = arith.constant 0 : i32
    %c0_i32_1 = arith.constant 0 : i32
    return %c0_i32, %c0_i32_0 : i32, i32
  }
  func.func @transform_17(%arg0: i32) -> (i32, i32) {
    %c0_i32 = arith.constant 0 : i32
    %c0_i32_0 = arith.constant 0 : i32
    %c0_i32_1 = arith.constant 0 : i32
    return %c0_i32, %c0_i32_0 : i32, i32
  }
  func.func @transform_18(%arg0: i32) -> (i32, i32) {
    %c0_i32 = arith.constant 0 : i32
    %c0_i32_0 = arith.constant 0 : i32
    %c0_i32_1 = arith.constant 0 : i32
    return %c0_i32, %c0_i32_0 : i32, i32
  }
  func.func @transform_19(%arg0: i32) -> (i32, i32) {
    %c0_i32 = arith.constant 0 : i32
    %c0_i32_0 = arith.constant 0 : i32
    %c0_i32_1 = arith.constant 0 : i32
    return %c0_i32, %c0_i32_0 : i32, i32
  }
  func.func @transform_20(%arg0: i32) -> (i32, i32) {
    %c0_i32 = arith.constant 0 : i32
    %c0_i32_0 = arith.constant 0 : i32
    return %arg0, %c0_i32 : i32, i32
  }
}

</mosaic_0001>

<llo_original>
// kernel: tpu_custom_call.1
$region0: #{tpu_custom_call.1}
  #allocation0 [shape = 'u32[]', space=smem, size = 0x4, offset = 0x4, fixed_abs, tag = 'smem constant byte address 0x4 - core index']
  #allocation1 [shape = 'u32[72,128]{1,0:T(1,128)}', space=vmem, size = 0x9000, scoped, tag = 'internal scratch']
  %s0 = inlined_call_operand.hbm [shape: f32[8,20], index: 0, kind: input, shape index: {}]
  %s1 = inlined_call_operand.hbm [shape: bf16[8,256], index: 1, kind: input, shape index: {}]
  %s2 = inlined_call_operand.vmem [shape: bf16[20,256], index: 2, kind: input, shape index: {}]
  %s3 = inlined_call_operand.hbm [shape: f32[1,256], index: 3, kind: input, shape index: {}]
  %s4 = inlined_call_operand.hbm [shape: bf16[256,1024], index: 4, kind: input, shape index: {}]
  %s5 = inlined_call_operand.hbm [shape: f32[1,1024], index: 5, kind: input, shape index: {}]
  %s6 = inlined_call_operand.hbm [shape: bf16[1024,512], index: 6, kind: input, shape index: {}]
  %s7 = inlined_call_operand.vmem [shape: f32[1,512], index: 7, kind: input, shape index: {}]
  %s8 = inlined_call_operand.hbm [shape: bf16[512,256], index: 8, kind: input, shape index: {}]
  %s9 = inlined_call_operand.hbm [shape: f32[1,256], index: 9, kind: input, shape index: {}]
  %s10 = inlined_call_operand.hbm [shape: bf16[256,256], index: 10, kind: input, shape index: {}]
  %s11 = inlined_call_operand.hbm [shape: f32[1,256], index: 11, kind: input, shape index: {}]
  %s12 = inlined_call_operand.hbm [shape: bf16[256,128], index: 12, kind: input, shape index: {}]
  %s13 = inlined_call_operand.vmem [shape: f32[1,128], index: 13, kind: input, shape index: {}]
  %s14 = inlined_call_operand.vmem [shape: bf16[128,128], index: 14, kind: input, shape index: {}]
  %s15 = inlined_call_operand.vmem [shape: f32[1,128], index: 15, kind: input, shape index: {}]
  %s16 = inlined_call_operand.vmem [shape: bf16[128,32], index: 16, kind: input, shape index: {}]
  %s17 = inlined_call_operand.vmem [shape: f32[1,32], index: 17, kind: input, shape index: {}]
  %s18 = inlined_call_operand.hbm [shape: bf16[32,128], index: 18, kind: input, shape index: {}]
  %s19 = inlined_call_operand.vmem [shape: f32[1,128], index: 19, kind: input, shape index: {}]
  %s20 = inlined_call_operand.hbm [shape: f32[8,128], index: 20, kind: output, shape index: {}]
  %s21 = sld [smem:[#allocation0]]
  $region138: #{tpu_custom_call.1} parent=0
    _
  %s23 = ssub.s32 1, %s21
  %s24 = scalar_select 0, %s23, %s21
  $region1: #{tpu_custom_call.1} parent=0
    #allocation2 [shape = 'u8[4096]{0}', space=vmem, size = 0x1000, scoped, tag = 'input window, operand 0, single buffered']
    #allocation3 [shape = 's32[1]{0}', space=sflag, size = 0x4, scoped, tag = 'scoped memory for tpu_custom_call.1']
    #allocation4 [shape = 's32[1]{0}', space=sflag, size = 0x4, scoped, tag = 'scoped memory for tpu_custom_call.1']
    #allocation5 [shape = 'u8[4096]{0}', space=vmem, size = 0x1000, scoped, tag = 'input window, operand 1, single buffered']
    #allocation6 [shape = 's32[1]{0}', space=sflag, size = 0x4, scoped, tag = 'scoped memory for tpu_custom_call.1']
    #allocation7 [shape = 'u8[1024]{0}', space=vmem, size = 0x400, scoped, tag = 'input window, operand 3, single buffered']
    #allocation8 [shape = 'u8[524288]{0}', space=vmem, size = 0x80000, scoped, tag = 'input window, operand 4, single buffered']
    #allocation9 [shape = 's32[1]{0}', space=sflag, size = 0x4, scoped, tag = 'scoped memory for tpu_custom_call.1']
    #allocation10 [shape = 'u8[4096]{0}', space=vmem, size = 0x1000, scoped, tag = 'input window, operand 5, single buffered']
    #allocation11 [shape = 'u8[1048576]{0}', space=vmem, size = 0x100000, scoped, tag = 'input window, operand 6, single buffered']
    #allocation12 [shape = 's32[1]{0}', space=sflag, size = 0x4, scoped, tag = 'scoped memory for tpu_custom_call.1']
    #allocation13 [shape = 'u8[262144]{0}', space=vmem, size = 0x40000, scoped, tag = 'input window, operand 8, single buffered']
    #allocation14 [shape = 'u8[1024]{0}', space=vmem, size = 0x400, scoped, tag = 'input window, operand 9, single buffered']
    #allocation15 [shape = 's32[1]{0}', space=sflag, size = 0x4, scoped, tag = 'scoped memory for tpu_custom_call.1']
    #allocation16 [shape = 'u8[131072]{0}', space=vmem, size = 0x20000, scoped, tag = 'input window, operand 10, single buffered']
    #allocation17 [shape = 'u8[1024]{0}', space=vmem, size = 0x400, scoped, tag = 'input window, operand 11, single buffered']
    #allocation18 [shape = 's32[1]{0}', space=sflag, size = 0x4, scoped, tag = 'scoped memory for tpu_custom_call.1']
    #allocation19 [shape = 'u8[65536]{0}', space=vmem, size = 0x10000, scoped, tag = 'input window, operand 12, single buffered']
    #allocation20 [shape = 'u8[8192]{0}', space=vmem, size = 0x2000, scoped, tag = 'input window, operand 18, single buffered']
    #allocation21 [shape = 's32[1]{0}', space=sflag, size = 0x4, scoped, tag = 'scoped memory for tpu_custom_call.1']
    #allocation22 [shape = 'u8[4096]{0}', space=vmem, size = 0x1000, scoped, tag = 'output window, operand 0, single buffered']
    %25 = vsyncpa [#allocation3], 0
    %26 = vsyncpa [#allocation6], 0
    %27 = vsyncpa [#allocation9], 0
    %28 = vsyncpa [#allocation12], 0
    %29 = vsyncpa [#allocation15], 0
    %30 = vsyncpa [#allocation18], 0
    %31 = vsyncpa [#allocation21], 0
    %32 = vsyncpa [#allocation4], 0
    // Predicated region
    $region2: #{tpu_custom_call.1} parent=1 // pred_check
      _
    $region3: #{tpu_custom_call.1} parent=1 // pred_check_branch
      %34 = sbr.rel (0) target = $region5
    $region4: #{tpu_custom_call.1} parent=1 // pred_region
      %36 = vsyncadd [#allocation3], 0
      %s38 = sshll.u32 %s0, 4
      %s39 = int_to_ptr.hbm [resolvable:$true] %s38
      %s40 = sshll.u32 [#allocation2], 4
      %s41 = int_to_ptr.vmem [resolvable:$true] %s40
      %43 = dma.hbm_to_vmem [thread:$0]  %s39, 128, %s41, [#allocation3]
    $region5: #{tpu_custom_call.1} parent=1 // pred_fallthru
      _
    // Predicated region
    $region6: #{tpu_custom_call.1} parent=1 // pred_check
      _
    $region7: #{tpu_custom_call.1} parent=1 // pred_check_branch
      %45 = sbr.rel (0) target = $region9
    $region8: #{tpu_custom_call.1} parent=1 // pred_region
      %47 = vsyncadd [#allocation6], 0
      %s49 = sshll.u32 %s1, 4
      %s50 = int_to_ptr.hbm [resolvable:$true] %s49
      %s51 = sshll.u32 [#allocation5], 4
      %s52 = int_to_ptr.vmem [resolvable:$true] %s51
      %54 = dma.hbm_to_vmem [thread:$0]  %s50, 128, %s52, [#allocation6]
    $region9: #{tpu_custom_call.1} parent=1 // pred_fallthru
      _
    // Predicated region
    $region10: #{tpu_custom_call.1} parent=1 // pred_check
      _
    $region11: #{tpu_custom_call.1} parent=1 // pred_check_branch
      %56 = sbr.rel (0) target = $region13
    $region12: #{tpu_custom_call.1} parent=1 // pred_region
      _
    $region13: #{tpu_custom_call.1} parent=1 // pred_fallthru
      _
    // Predicated region
    $region14: #{tpu_custom_call.1} parent=1 // pred_check
      _
    $region15: #{tpu_custom_call.1} parent=1 // pred_check_branch
      %58 = sbr.rel (0) target = $region17
    $region16: #{tpu_custom_call.1} parent=1 // pred_region
      %60 = vsyncadd [#allocation6], 0
      %s62 = sshll.u32 %s3, 4
      %s63 = int_to_ptr.hbm [resolvable:$true] %s62
      %s64 = sshll.u32 [#allocation7], 4
      %s65 = int_to_ptr.vmem [resolvable:$true] %s64
      %67 = dma.hbm_to_vmem [thread:$0]  %s63, 32, %s65, [#allocation6]
    $region17: #{tpu_custom_call.1} parent=1 // pred_fallthru
      _
    // Predicated region
    $region18: #{tpu_custom_call.1} parent=1 // pred_check
      _
    $region19: #{tpu_custom_call.1} parent=1 // pred_check_branch
      %69 = sbr.rel (0) target = $region21
    $region20: #{tpu_custom_call.1} parent=1 // pred_region
      %71 = vsyncadd [#allocation9], 0
      %s72 = sshll.u32 %s4, 4
      %s73 = int_to_ptr.hbm [resolvable:$true] %s72
      %s74 = sshll.u32 [#allocation8], 4
      %s75 = int_to_ptr.vmem [resolvable:$true] %s74
      %80 = dma.hbm_to_vmem [thread:$0]  %s73, 16384, %s75, [#allocation9], 512, 512, 32
    $region21: #{tpu_custom_call.1} parent=1 // pred_fallthru
      _
    // Predicated region
    $region22: #{tpu_custom_call.1} parent=1 // pred_check
      _
    $region23: #{tpu_custom_call.1} parent=1 // pred_check_branch
      %82 = sbr.rel (0) target = $region25
    $region24: #{tpu_custom_call.1} parent=1 // pred_region
      %84 = vsyncadd [#allocation9], 0
      %s86 = sshll.u32 %s5, 4
      %s87 = int_to_ptr.hbm [resolvable:$true] %s86
      %s88 = sshll.u32 [#allocation10], 4
      %s89 = int_to_ptr.vmem [resolvable:$true] %s88
      %91 = dma.hbm_to_vmem [thread:$0]  %s87, 128, %s89, [#allocation9]
    $region25: #{tpu_custom_call.1} parent=1 // pred_fallthru
      _
    // Predicated region
    $region26: #{tpu_custom_call.1} parent=1 // pred_check
      _
    $region27: #{tpu_custom_call.1} parent=1 // pred_check_branch
      %93 = sbr.rel (0) target = $region29
    $region28: #{tpu_custom_call.1} parent=1 // pred_region
      %95 = vsyncadd [#allocation12], 0
      %s96 = sshll.u32 %s6, 4
      %s97 = int_to_ptr.hbm [resolvable:$true] %s96
      %s98 = sshll.u32 [#allocation11], 4
      %s99 = int_to_ptr.vmem [resolvable:$true] %s98
      %104 = dma.hbm_to_vmem [thread:$0]  %s97, 32768, %s99, [#allocation12], 256, 256, 16
    $region29: #{tpu_custom_call.1} parent=1 // pred_fallthru
      _
    // Predicated region
    $region30: #{tpu_custom_call.1} parent=1 // pred_check
      _
    $region31: #{tpu_custom_call.1} parent=1 // pred_check_branch
      %106 = sbr.rel (0) target = $region33
    $region32: #{tpu_custom_call.1} parent=1 // pred_region
      _
    $region33: #{tpu_custom_call.1} parent=1 // pred_fallthru
      _
    // Predicated region
    $region34: #{tpu_custom_call.1} parent=1 // pred_check
      _
    $region35: #{tpu_custom_call.1} parent=1 // pred_check_branch
      %108 = sbr.rel (0) target = $region37
    $region36: #{tpu_custom_call.1} parent=1 // pred_region
      %110 = vsyncadd [#allocation12], 0
      %s111 = sshll.u32 %s8, 4
      %s112 = int_to_ptr.hbm [resolvable:$true] %s111
      %s113 = sshll.u32 [#allocation13], 4
      %s114 = int_to_ptr.vmem [resolvable:$true] %s113
      %119 = dma.hbm_to_vmem [thread:$0]  %s112, 8192, %s114, [#allocation12], 128, 128, 8
    $region37: #{tpu_custom_call.1} parent=1 // pred_fallthru
      _
    // Predicated region
    $region38: #{tpu_custom_call.1} parent=1 // pred_check
      _
    $region39: #{tpu_custom_call.1} parent=1 // pred_check_branch
      %121 = sbr.rel (0) target = $region41
    $region40: #{tpu_custom_call.1} parent=1 // pred_region
      %123 = vsyncadd [#allocation15], 0
      %s125 = sshll.u32 %s9, 4
      %s126 = int_to_ptr.hbm [resolvable:$true] %s125
      %s127 = sshll.u32 [#allocation14], 4
      %s128 = int_to_ptr.vmem [resolvable:$true] %s127
      %130 = dma.hbm_to_vmem [thread:$0]  %s126, 32, %s128, [#allocation15]
    $region41: #{tpu_custom_call.1} parent=1 // pred_fallthru
      _
    // Predicated region
    $region42: #{tpu_custom_call.1} parent=1 // pred_check
      _
    $region43: #{tpu_custom_call.1} parent=1 // pred_check_branch
      %132 = sbr.rel (0) target = $region45
    $region44: #{tpu_custom_call.1} parent=1 // pred_region
      %134 = vsyncadd [#allocation15], 0
      %s135 = sshll.u32 %s10, 4
      %s136 = int_to_ptr.hbm [resolvable:$true] %s135
      %s137 = sshll.u32 [#allocation16], 4
      %s138 = int_to_ptr.vmem [resolvable:$true] %s137
      %143 = dma.hbm_to_vmem [thread:$0]  %s136, 4096, %s138, [#allocation15], 128, 128, 8
    $region45: #{tpu_custom_call.1} parent=1 // pred_fallthru
      _
    // Predicated region
    $region46: #{tpu_custom_call.1} parent=1 // pred_check
      _
    $region47: #{tpu_custom_call.1} parent=1 // pred_check_branch
      %145 = sbr.rel (0) target = $region49
    $region48: #{tpu_custom_call.1} parent=1 // pred_region
      %147 = vsyncadd [#allocation18], 0
      %s149 = sshll.u32 %s11, 4
      %s150 = int_to_ptr.hbm [resolvable:$true] %s149
      %s151 = sshll.u32 [#allocation17], 4
      %s152 = int_to_ptr.vmem [resolvable:$true] %s151
      %154 = dma.hbm_to_vmem [thread:$0]  %s150, 32, %s152, [#allocation18]
    $region49: #{tpu_custom_call.1} parent=1 // pred_fallthru
      _
    // Predicated region
    $region50: #{tpu_custom_call.1} parent=1 // pred_check
      _
    $region51: #{tpu_custom_call.1} parent=1 // pred_check_branch
      %156 = sbr.rel (0) target = $region53
    $region52: #{tpu_custom_call.1} parent=1 // pred_region
      %158 = vsyncadd [#allocation18], 0
      %s159 = sshll.u32 %s12, 4
      %s160 = int_to_ptr.hbm [resolvable:$true] %s159
      %s161 = sshll.u32 [#allocation19], 4
      %s162 = int_to_ptr.vmem [resolvable:$true] %s161
      %167 = dma.hbm_to_vmem [thread:$0]  %s160, 2048, %s162, [#allocation18], 64, 64, 4
    $region53: #{tpu_custom_call.1} parent=1 // pred_fallthru
      _
    // Predicated region
    $region54: #{tpu_custom_call.1} parent=1 // pred_check
      _
    $region55: #{tpu_custom_call.1} parent=1 // pred_check_branch
      %169 = sbr.rel (0) target = $region57
    $region56: #{tpu_custom_call.1} parent=1 // pred_region
      _
    $region57: #{tpu_custom_call.1} parent=1 // pred_fallthru
      _
    // Predicated region
    $region58: #{tpu_custom_call.1} parent=1 // pred_check
      _
    $region59: #{tpu_custom_call.1} parent=1 // pred_check_branch
      %171 = sbr.rel (0) target = $region61
    $region60: #{tpu_custom_call.1} parent=1 // pred_region
      _
    $region61: #{tpu_custom_call.1} parent=1 // pred_fallthru
      _
    // Predicated region
    $region62: #{tpu_custom_call.1} parent=1 // pred_check
      _
    $region63: #{tpu_custom_call.1} parent=1 // pred_check_branch
      %173 = sbr.rel (0) target = $region65
    $region64: #{tpu_custom_call.1} parent=1 // pred_region
      _
    $region65: #{tpu_custom_call.1} parent=1 // pred_fallthru
      _
    // Predicated region
    $region66: #{tpu_custom_call.1} parent=1 // pred_check
      _
    $region67: #{tpu_custom_call.1} parent=1 // pred_check_branch
      %175 = sbr.rel (0) target = $region69
    $region68: #{tpu_custom_call.1} parent=1 // pred_region
      _
    $region69: #{tpu_custom_call.1} parent=1 // pred_fallthru
      _
    // Predicated region
    $region70: #{tpu_custom_call.1} parent=1 // pred_check
      _
    $region71: #{tpu_custom_call.1} parent=1 // pred_check_branch
      %177 = sbr.rel (0) target = $region73
    $region72: #{tpu_custom_call.1} parent=1 // pred_region
      _
    $region73: #{tpu_custom_call.1} parent=1 // pred_fallthru
      _
    // Predicated region
    $region74: #{tpu_custom_call.1} parent=1 // pred_check
      _
    $region75: #{tpu_custom_call.1} parent=1 // pred_check_branch
      %179 = sbr.rel (0) target = $region77
    $region76: #{tpu_custom_call.1} parent=1 // pred_region
      %181 = vsyncadd [#allocation21], 0
      %s182 = sshll.u32 %s18, 4
      %s183 = int_to_ptr.hbm [resolvable:$true] %s182
      %s184 = sshll.u32 [#allocation20], 4
      %s185 = int_to_ptr.vmem [resolvable:$true] %s184
      %190 = dma.hbm_to_vmem [thread:$0]  %s183, 256, %s185, [#allocation21], 64, 64, 4
    $region77: #{tpu_custom_call.1} parent=1 // pred_fallthru
      _
    // Predicated region
    $region78: #{tpu_custom_call.1} parent=1 // pred_check
      _
    $region79: #{tpu_custom_call.1} parent=1 // pred_check_branch
      %192 = sbr.rel (0) target = $region81
    $region80: #{tpu_custom_call.1} parent=1 // pred_region
      _
    $region81: #{tpu_custom_call.1} parent=1 // pred_fallthru
      _
    // Predicated region
    $region82: #{tpu_custom_call.1} parent=1 // pred_check
      _
    $region83: #{tpu_custom_call.1} parent=1 // pred_check_branch
      %194 = sbr.rel (0) target = $region85
    $region84: #{tpu_custom_call.1} parent=1 // pred_region
      %196 = dma.done [#allocation3], 128
    $region85: #{tpu_custom_call.1} parent=1 // pred_fallthru
      _
    // Predicated region
    $region86: #{tpu_custom_call.1} parent=1 // pred_check
      _
    $region87: #{tpu_custom_call.1} parent=1 // pred_check_branch
      %198 = sbr.rel (0) target = $region89
    $region88: #{tpu_custom_call.1} parent=1 // pred_region
      %200 = dma.done [#allocation6], 128
    $region89: #{tpu_custom_call.1} parent=1 // pred_fallthru
      _
    // Predicated region
    $region90: #{tpu_custom_call.1} parent=1 // pred_check
      _
    $region91: #{tpu_custom_call.1} parent=1 // pred_check_branch
      %202 = sbr.rel (0) target = $region93
    $region92: #{tpu_custom_call.1} parent=1 // pred_region
      %204 = dma.done [#allocation6], 32
    $region93: #{tpu_custom_call.1} parent=1 // pred_fallthru
      _
    // Predicated region
    $region94: #{tpu_custom_call.1} parent=1 // pred_check
      _
    $region95: #{tpu_custom_call.1} parent=1 // pred_check_branch
      %206 = sbr.rel (0) target = $region97
    $region96: #{tpu_custom_call.1} parent=1 // pred_region
      %208 = dma.done [#allocation9], 16384
    $region97: #{tpu_custom_call.1} parent=1 // pred_fallthru
      _
    // Predicated region
    $region98: #{tpu_custom_call.1} parent=1 // pred_check
      _
    $region99: #{tpu_custom_call.1} parent=1 // pred_check_branch
      %210 = sbr.rel (0) target = $region101
    $region100: #{tpu_custom_call.1} parent=1 // pred_region
      %212 = dma.done [#allocation9], 128
    $region101: #{tpu_custom_call.1} parent=1 // pred_fallthru
      _
    // Predicated region
    $region102: #{tpu_custom_call.1} parent=1 // pred_check
      _
    $region103: #{tpu_custom_call.1} parent=1 // pred_check_branch
      %214 = sbr.rel (0) target = $region105
    $region104: #{tpu_custom_call.1} parent=1 // pred_region
      %216 = dma.done [#allocation12], 32768
    $region105: #{tpu_custom_call.1} parent=1 // pred_fallthru
      _
    // Predicated region
    $region106: #{tpu_custom_call.1} parent=1 // pred_check
      _
    $region107: #{tpu_custom_call.1} parent=1 // pred_check_branch
      %218 = sbr.rel (0) target = $region109
    $region108: #{tpu_custom_call.1} parent=1 // pred_region
      %220 = dma.done [#allocation12], 8192
    $region109: #{tpu_custom_call.1} parent=1 // pred_fallthru
      _
    // Predicated region
    $region110: #{tpu_custom_call.1} parent=1 // pred_check
      _
    $region111: #{tpu_custom_call.1} parent=1 // pred_check_branch
      %222 = sbr.rel (0) target = $region113
    $region112: #{tpu_custom_call.1} parent=1 // pred_region
      %224 = dma.done [#allocation15], 32
    $region113: #{tpu_custom_call.1} parent=1 // pred_fallthru
      _
    // Predicated region
    $region114: #{tpu_custom_call.1} parent=1 // pred_check
      _
    $region115: #{tpu_custom_call.1} parent=1 // pred_check_branch
      %226 = sbr.rel (0) target = $region117
    $region116: #{tpu_custom_call.1} parent=1 // pred_region
      %228 = dma.done [#allocation15], 4096
    $region117: #{tpu_custom_call.1} parent=1 // pred_fallthru
      _
    // Predicated region
    $region118: #{tpu_custom_call.1} parent=1 // pred_check
      _
    $region119: #{tpu_custom_call.1} parent=1 // pred_check_branch
      %230 = sbr.rel (0) target = $region121
    $region120: #{tpu_custom_call.1} parent=1 // pred_region
      %232 = dma.done [#allocation18], 32
    $region121: #{tpu_custom_call.1} parent=1 // pred_fallthru
      _
    // Predicated region
    $region122: #{tpu_custom_call.1} parent=1 // pred_check
      _
    $region123: #{tpu_custom_call.1} parent=1 // pred_check_branch
      %234 = sbr.rel (0) target = $region125
    $region124: #{tpu_custom_call.1} parent=1 // pred_region
      %236 = dma.done [#allocation18], 2048
    $region125: #{tpu_custom_call.1} parent=1 // pred_fallthru
      _
    // Predicated region
    $region126: #{tpu_custom_call.1} parent=1 // pred_check
      _
    $region127: #{tpu_custom_call.1} parent=1 // pred_check_branch
      %238 = sbr.rel (0) target = $region129
    $region128: #{tpu_custom_call.1} parent=1 // pred_region
      %240 = dma.done [#allocation21], 256
    $region129: #{tpu_custom_call.1} parent=1 // pred_fallthru
      _
    %v242 = vld [vmem:[#allocation2] sm:$0xff]
    %v243 = vpack.c.bf16 %v242, %v242
    %v244 = vld [vmem:[%s2] sm:$0xff]
    %v245 = vld [vmem:[%s2 + $0x8] sm:$0xff]
    %v246 = vld [vmem:[%s2 + $0x10] sm:$0x33]
    %v247 = vld [vmem:[#allocation7] sm:$0x3]
    %v249 = vperm.slane %v247, 0
    %v250 = vperm.slane %v247, 1
    %v256 = vunpack.c.l.b16 %v244
    %v257 = vunpack.c.h.b16 %v244
    %v258 = vunpack.c.l.b16 %v245
    %v259 = vunpack.c.h.b16 %v245
    %v260 = vunpack.c.l.b16 %v246
    %v261 = vunpack.c.h.b16 %v246
    %v262 = vpack.c.b16 %v258, %v256
    %v263 = vpack.c.b16 %v259, %v257
    %v264 = vpack.c.b16 %v260, %v260
    %v265 = vpack.c.b16 %v261, %v261
    %vm268 = vcmask 162816
    %v270 = vsel %vm268, %v243, 0
    %vm272 = vcmask 1041408
    %v274 = vsel %vm272, %v264, 0
    %v277 = vsel %vm272, %v265, 0
    %279 = vmatpush.bf16.msra.mxu0 0
    %280 = vmatpush.bf16.msra.mxu0 0
    %281 = vmatpush.bf16.msra.mxu0 0
    %282 = vmatpush.bf16.msra.mxu0 0
    %283 = vmatpush.bf16.msra.mxu0 0
    %284 = vmatpush.bf16.msra.mxu0 0
    %285 = vmatpush.bf16.msra.mxu0 %v274
    %286 = vmatpush.bf16.msra.mxu0 %v262
    %287 = vmatmul.bf16.gmra.mxu0 %v270
    %v288 = vpop.f32.mrf.mxu0
    %v289 = vadd.f32 %v249, %v288
    %v290 = vpop.f32.mrf.mxu0
    %291 = vdwg.mxu0
    %292 = vmatpush.bf16.msra.mxu0 0
    %293 = vmatpush.bf16.msra.mxu0 0
    %294 = vmatpush.bf16.msra.mxu0 0
    %295 = vmatpush.bf16.msra.mxu0 0
    %296 = vmatpush.bf16.msra.mxu0 0
    %297 = vmatpush.bf16.msra.mxu0 0
    %298 = vmatpush.bf16.msra.mxu0 %v277
    %299 = vmatpush.bf16.msra.mxu0 %v263
    %300 = vmatmul.bf16.gmra.mxu0 %v270
    %v301 = vpop.f32.mrf.mxu0
    %v302 = vadd.f32 %v250, %v301
    %v303 = vpop.f32.mrf.mxu0
    %304 = vdwg.mxu0
    %v305 = vmax.f32 %v289, 0.0
    %v306 = vmax.f32 %v302, 0.0
    %v307 = vld [vmem:[#allocation5] sm:$0xff]
    %v308 = vld [vmem:[#allocation8] sm:$0xff]
    %v309 = vld [vmem:[#allocation8 + $0x8] sm:$0xff]
    %v310 = vld [vmem:[#allocation8 + $0x10] sm:$0xff]
    %v311 = vld [vmem:[#allocation8 + $0x18] sm:$0xff]
    %v312 = vld [vmem:[#allocation8 + $0x20] sm:$0xff]
    %v313 = vld [vmem:[#allocation8 + $0x28] sm:$0xff]
    %v314 = vld [vmem:[#allocation8 + $0x30] sm:$0xff]
    %v315 = vld [vmem:[#allocation8 + $0x38] sm:$0xff]
    %v316 = vld [vmem:[#allocation8 + $0x40] sm:$0xff]
    %v317 = vld [vmem:[#allocation8 + $0x48] sm:$0xff]
    %v318 = vld [vmem:[#allocation8 + $0x50] sm:$0xff]
    %v319 = vld [vmem:[#allocation8 + $0x58] sm:$0xff]
    %v320 = vld [vmem:[#allocation8 + $0x60] sm:$0xff]
    %v321 = vld [vmem:[#allocation8 + $0x68] sm:$0xff]
    %v322 = vld [vmem:[#allocation8 + $0x70] sm:$0xff]
    %v323 = vld [vmem:[#allocation8 + $0x78] sm:$0xff]
    %v324 = vld [vmem:[#allocation8 + $0x80] sm:$0xff]
    %v325 = vld [vmem:[#allocation8 + $0x88] sm:$0xff]
    %v326 = vld [vmem:[#allocation8 + $0x90] sm:$0xff]
    %v327 = vld [vmem:[#allocation8 + $0x98] sm:$0xff]
    %v328 = vld [vmem:[#allocation8 + $0xa0] sm:$0xff]
    %v329 = vld [vmem:[#allocation8 + $0xa8] sm:$0xff]
    %v330 = vld [vmem:[#allocation8 + $0xb0] sm:$0xff]
    %v331 = vld [vmem:[#allocation8 + $0xb8] sm:$0xff]
    %v332 = vld [vmem:[#allocation8 + $0xc0] sm:$0xff]
    %v333 = vld [vmem:[#allocation8 + $0xc8] sm:$0xff]
    %v334 = vld [vmem:[#allocation8 + $0xd0] sm:$0xff]
    %v335 = vld [vmem:[#allocation8 + $0xd8] sm:$0xff]
    %v336 = vld [vmem:[#allocation8 + $0xe0] sm:$0xff]
    %v337 = vld [vmem:[#allocation8 + $0xe8] sm:$0xff]
    %v338 = vld [vmem:[#allocation8 + $0xf0] sm:$0xff]
    %v339 = vld [vmem:[#allocation8 + $0xf8] sm:$0xff]
    %v340 = vld [vmem:[#allocation8 + $0x100] sm:$0xff]
    %v341 = vld [vmem:[#allocation8 + $0x108] sm:$0xff]
    %v342 = vld [vmem:[#allocation8 + $0x110] sm:$0xff]
    %v343 = vld [vmem:[#allocation8 + $0x118] sm:$0xff]
    %v344 = vld [vmem:[#allocation8 + $0x120] sm:$0xff]
    %v345 = vld [vmem:[#allocation8 + $0x128] sm:$0xff]
    %v346 = vld [vmem:[#allocation8 + $0x130] sm:$0xff]
    %v347 = vld [vmem:[#allocation8 + $0x138] sm:$0xff]
    %v348 = vld [vmem:[#allocation8 + $0x140] sm:$0xff]
    %v349 = vld [vmem:[#allocation8 + $0x148] sm:$0xff]
    %v350 = vld [vmem:[#allocation8 + $0x150] sm:$0xff]
    %v351 = vld [vmem:[#allocation8 + $0x158] sm:$0xff]
    %v352 = vld [vmem:[#allocation8 + $0x160] sm:$0xff]
    %v353 = vld [vmem:[#allocation8 + $0x168] sm:$0xff]
    %v354 = vld [vmem:[#allocation8 + $0x170] sm:$0xff]
    %v355 = vld [vmem:[#allocation8 + $0x178] sm:$0xff]
    %v356 = vld [vmem:[#allocation8 + $0x180] sm:$0xff]
    %v357 = vld [vmem:[#allocation8 + $0x188] sm:$0xff]
    %v358 = vld [vmem:[#allocation8 + $0x190] sm:$0xff]
    %v359 = vld [vmem:[#allocation8 + $0x198] sm:$0xff]
    %v360 = vld [vmem:[#allocation8 + $0x1a0] sm:$0xff]
    %v361 = vld [vmem:[#allocation8 + $0x1a8] sm:$0xff]
    %v362 = vld [vmem:[#allocation8 + $0x1b0] sm:$0xff]
    %v363 = vld [vmem:[#allocation8 + $0x1b8] sm:$0xff]
    %v364 = vld [vmem:[#allocation8 + $0x1c0] sm:$0xff]
    %v365 = vld [vmem:[#allocation8 + $0x1c8] sm:$0xff]
    %v366 = vld [vmem:[#allocation8 + $0x1d0] sm:$0xff]
    %v367 = vld [vmem:[#allocation8 + $0x1d8] sm:$0xff]
    %v368 = vld [vmem:[#allocation8 + $0x1e0] sm:$0xff]
    %v369 = vld [vmem:[#allocation8 + $0x1e8] sm:$0xff]
    %v370 = vld [vmem:[#allocation8 + $0x1f0] sm:$0xff]
    %v371 = vld [vmem:[#allocation8 + $0x1f8] sm:$0xff]
    %v372 = vld [vmem:[#allocation8 + $0x200] sm:$0xff]
    %v373 = vld [vmem:[#allocation8 + $0x208] sm:$0xff]
    %v374 = vld [vmem:[#allocation8 + $0x210] sm:$0xff]
    %v375 = vld [vmem:[#allocation8 + $0x218] sm:$0xff]
    %v376 = vld [vmem:[#allocation8 + $0x220] sm:$0xff]
    %v377 = vld [vmem:[#allocation8 + $0x228] sm:$0xff]
    %v378 = vld [vmem:[#allocation8 + $0x230] sm:$0xff]
    %v379 = vld [vmem:[#allocation8 + $0x238] sm:$0xff]
    %v380 = vld [vmem:[#allocation8 + $0x240] sm:$0xff]
    %v381 = vld [vmem:[#allocation8 + $0x248] sm:$0xff]
    %v382 = vld [vmem:[#allocation8 + $0x250] sm:$0xff]
    %v383 = vld [vmem:[#allocation8 + $0x258] sm:$0xff]
    %v384 = vld [vmem:[#allocation8 + $0x260] sm:$0xff]
    %v385 = vld [vmem:[#allocation8 + $0x268] sm:$0xff]
    %v386 = vld [vmem:[#allocation8 + $0x270] sm:$0xff]
    %v387 = vld [vmem:[#allocation8 + $0x278] sm:$0xff]
    %v388 = vld [vmem:[#allocation8 + $0x280] sm:$0xff]
    %v389 = vld [vmem:[#allocation8 + $0x288] sm:$0xff]
    %v390 = vld [vmem:[#allocation8 + $0x290] sm:$0xff]
    %v391 = vld [vmem:[#allocation8 + $0x298] sm:$0xff]
    %v392 = vld [vmem:[#allocation8 + $0x2a0] sm:$0xff]
    %v393 = vld [vmem:[#allocation8 + $0x2a8] sm:$0xff]
    %v394 = vld [vmem:[#allocation8 + $0x2b0] sm:$0xff]
    %v395 = vld [vmem:[#allocation8 + $0x2b8] sm:$0xff]
    %v396 = vld [vmem:[#allocation8 + $0x2c0] sm:$0xff]
    %v397 = vld [vmem:[#allocation8 + $0x2c8] sm:$0xff]
    %v398 = vld [vmem:[#allocation8 + $0x2d0] sm:$0xff]
    %v399 = vld [vmem:[#allocation8 + $0x2d8] sm:$0xff]
    %v400 = vld [vmem:[#allocation8 + $0x2e0] sm:$0xff]
    %v401 = vld [vmem:[#allocation8 + $0x2e8] sm:$0xff]
    %v402 = vld [vmem:[#allocation8 + $0x2f0] sm:$0xff]
    %v403 = vld [vmem:[#allocation8 + $0x2f8] sm:$0xff]
    %v404 = vld [vmem:[#allocation8 + $0x300] sm:$0xff]
    %v405 = vld [vmem:[#allocation8 + $0x308] sm:$0xff]
    %v406 = vld [vmem:[#allocation8 + $0x310] sm:$0xff]
    %v407 = vld [vmem:[#allocation8 + $0x318] sm:$0xff]
    %v408 = vld [vmem:[#allocation8 + $0x320] sm:$0xff]
    %v409 = vld [vmem:[#allocation8 + $0x328] sm:$0xff]
    %v410 = vld [vmem:[#allocation8 + $0x330] sm:$0xff]
    %v411 = vld [vmem:[#allocation8 + $0x338] sm:$0xff]
    %v412 = vld [vmem:[#allocation8 + $0x340] sm:$0xff]
    %v413 = vld [vmem:[#allocation8 + $0x348] sm:$0xff]
    %v414 = vld [vmem:[#allocation8 + $0x350] sm:$0xff]
    %v415 = vld [vmem:[#allocation8 + $0x358] sm:$0xff]
    %v416 = vld [vmem:[#allocation8 + $0x360] sm:$0xff]
    %v417 = vld [vmem:[#allocation8 + $0x368] sm:$0xff]
    %v418 = vld [vmem:[#allocation8 + $0x370] sm:$0xff]
    %v419 = vld [vmem:[#allocation8 + $0x378] sm:$0xff]
    %v420 = vld [vmem:[#allocation8 + $0x380] sm:$0xff]
    %v421 = vld [vmem:[#allocation8 + $0x388] sm:$0xff]
    %v422 = vld [vmem:[#allocation8 + $0x390] sm:$0xff]
    %v423 = vld [vmem:[#allocation8 + $0x398] sm:$0xff]
    %v424 = vld [vmem:[#allocation8 + $0x3a0] sm:$0xff]
    %v425 = vld [vmem:[#allocation8 + $0x3a8] sm:$0xff]
    %v426 = vld [vmem:[#allocation8 + $0x3b0] sm:$0xff]
    %v427 = vld [vmem:[#allocation8 + $0x3b8] sm:$0xff]
    %v428 = vld [vmem:[#allocation8 + $0x3c0] sm:$0xff]
    %v429 = vld [vmem:[#allocation8 + $0x3c8] sm:$0xff]
    %v430 = vld [vmem:[#allocation8 + $0x3d0] sm:$0xff]
    %v431 = vld [vmem:[#allocation8 + $0x3d8] sm:$0xff]
    %v432 = vld [vmem:[#allocation8 + $0x3e0] sm:$0xff]
    %v433 = vld [vmem:[#allocation8 + $0x3e8] sm:$0xff]
    %v434 = vld [vmem:[#allocation8 + $0x3f0] sm:$0xff]
    %v435 = vld [vmem:[#allocation8 + $0x3f8] sm:$0xff]
    %v436 = vld [vmem:[#allocation10] sm:$0xff]
    %v438 = vperm.slane %v436, 0
    %v439 = vperm.slane %v436, 1
    %v440 = vperm.slane %v436, 2
    %v441 = vperm.slane %v436, 3
    %v442 = vperm.slane %v436, 4
    %v443 = vperm.slane %v436, 5
    %v444 = vperm.slane %v436, 6
    %v445 = vperm.slane %v436, 7
    %v455 = vunpack.c.l.b16 %v307
    %v456 = vunpack.c.h.b16 %v307
    %v457 = vpack.c.b16 %v455, %v455
    %v458 = vpack.c.b16 %v456, %v456
    %v589 = vunpack.c.l.b16 %v308
    %v590 = vunpack.c.h.b16 %v308
    %v591 = vunpack.c.l.b16 %v309
    %v592 = vunpack.c.h.b16 %v309
    %v593 = vunpack.c.l.b16 %v310
    %v594 = vunpack.c.h.b16 %v310
    %v595 = vunpack.c.l.b16 %v311
    %v596 = vunpack.c.h.b16 %v311
    %v597 = vunpack.c.l.b16 %v312
    %v598 = vunpack.c.h.b16 %v312
    %v599 = vunpack.c.l.b16 %v313
    %v600 = vunpack.c.h.b16 %v313
    %v601 = vunpack.c.l.b16 %v314
    %v602 = vunpack.c.h.b16 %v314
    %v603 = vunpack.c.l.b16 %v315
    %v604 = vunpack.c.h.b16 %v315
    %v605 = vunpack.c.l.b16 %v316
    %v606 = vunpack.c.h.b16 %v316
    %v607 = vunpack.c.l.b16 %v317
    %v608 = vunpack.c.h.b16 %v317
    %v609 = vunpack.c.l.b16 %v318
    %v610 = vunpack.c.h.b16 %v318
    %v611 = vunpack.c.l.b16 %v319
    %v612 = vunpack.c.h.b16 %v319
    %v613 = vunpack.c.l.b16 %v320
    %v614 = vunpack.c.h.b16 %v320
    %v615 = vunpack.c.l.b16 %v321
    %v616 = vunpack.c.h.b16 %v321
    %v617 = vunpack.c.l.b16 %v322
    %v618 = vunpack.c.h.b16 %v322
    %v619 = vunpack.c.l.b16 %v323
    %v620 = vunpack.c.h.b16 %v323
    %v621 = vunpack.c.l.b16 %v324
    %v622 = vunpack.c.h.b16 %v324
    %v623 = vunpack.c.l.b16 %v325
    %v624 = vunpack.c.h.b16 %v325
    %v625 = vunpack.c.l.b16 %v326
    %v626 = vunpack.c.h.b16 %v326
    %v627 = vunpack.c.l.b16 %v327
    %v628 = vunpack.c.h.b16 %v327
    %v629 = vunpack.c.l.b16 %v328
    %v630 = vunpack.c.h.b16 %v328
    %v631 = vunpack.c.l.b16 %v329
    %v632 = vunpack.c.h.b16 %v329
    %v633 = vunpack.c.l.b16 %v330
    %v634 = vunpack.c.h.b16 %v330
    %v635 = vunpack.c.l.b16 %v331
    %v636 = vunpack.c.h.b16 %v331
    %v637 = vunpack.c.l.b16 %v332
    %v638 = vunpack.c.h.b16 %v332
    %v639 = vunpack.c.l.b16 %v333
    %v640 = vunpack.c.h.b16 %v333
    %v641 = vunpack.c.l.b16 %v334
    %v642 = vunpack.c.h.b16 %v334
    %v643 = vunpack.c.l.b16 %v335
    %v644 = vunpack.c.h.b16 %v335
    %v645 = vunpack.c.l.b16 %v336
    %v646 = vunpack.c.h.b16 %v336
    %v647 = vunpack.c.l.b16 %v337
    %v648 = vunpack.c.h.b16 %v337
    %v649 = vunpack.c.l.b16 %v338
    %v650 = vunpack.c.h.b16 %v338
    %v651 = vunpack.c.l.b16 %v339
    %v652 = vunpack.c.h.b16 %v339
    %v653 = vunpack.c.l.b16 %v340
    %v654 = vunpack.c.h.b16 %v340
    %v655 = vunpack.c.l.b16 %v341
    %v656 = vunpack.c.h.b16 %v341
    %v657 = vunpack.c.l.b16 %v342
    %v658 = vunpack.c.h.b16 %v342
    %v659 = vunpack.c.l.b16 %v343
    %v660 = vunpack.c.h.b16 %v343
    %v661 = vunpack.c.l.b16 %v344
    %v662 = vunpack.c.h.b16 %v344
    %v663 = vunpack.c.l.b16 %v345
    %v664 = vunpack.c.h.b16 %v345
    %v665 = vunpack.c.l.b16 %v346
    %v666 = vunpack.c.h.b16 %v346
    %v667 = vunpack.c.l.b16 %v347
    %v668 = vunpack.c.h.b16 %v347
    %v669 = vunpack.c.l.b16 %v348
    %v670 = vunpack.c.h.b16 %v348
    %v671 = vunpack.c.l.b16 %v349
    %v672 = vunpack.c.h.b16 %v349
    %v673 = vunpack.c.l.b16 %v350
    %v674 = vunpack.c.h.b16 %v350
    %v675 = vunpack.c.l.b16 %v351
    %v676 = vunpack.c.h.b16 %v351
    %v677 = vunpack.c.l.b16 %v352
    %v678 = vunpack.c.h.b16 %v352
    %v679 = vunpack.c.l.b16 %v353
    %v680 = vunpack.c.h.b16 %v353
    %v681 = vunpack.c.l.b16 %v354
    %v682 = vunpack.c.h.b16 %v354
    %v683 = vunpack.c.l.b16 %v355
    %v684 = vunpack.c.h.b16 %v355
    %v685 = vunpack.c.l.b16 %v356
    %v686 = vunpack.c.h.b16 %v356
    %v687 = vunpack.c.l.b16 %v357
    %v688 = vunpack.c.h.b16 %v357
    %v689 = vunpack.c.l.b16 %v358
    %v690 = vunpack.c.h.b16 %v358
    %v691 = vunpack.c.l.b16 %v359
    %v692 = vunpack.c.h.b16 %v359
    %v693 = vunpack.c.l.b16 %v360
    %v694 = vunpack.c.h.b16 %v360
    %v695 = vunpack.c.l.b16 %v361
    %v696 = vunpack.c.h.b16 %v361
    %v697 = vunpack.c.l.b16 %v362
    %v698 = vunpack.c.h.b16 %v362
    %v699 = vunpack.c.l.b16 %v363
    %v700 = vunpack.c.h.b16 %v363
    %v701 = vunpack.c.l.b16 %v364
    %v702 = vunpack.c.h.b16 %v364
    %v703 = vunpack.c.l.b16 %v365
    %v704 = vunpack.c.h.b16 %v365
    %v705 = vunpack.c.l.b16 %v366
    %v706 = vunpack.c.h.b16 %v366
    %v707 = vunpack.c.l.b16 %v367
    %v708 = vunpack.c.h.b16 %v367
    %v709 = vunpack.c.l.b16 %v368
    %v710 = vunpack.c.h.b16 %v368
    %v711 = vunpack.c.l.b16 %v369
    %v712 = vunpack.c.h.b16 %v369
    %v713 = vunpack.c.l.b16 %v370
    %v714 = vunpack.c.h.b16 %v370
    %v715 = vunpack.c.l.b16 %v371
    %v716 = vunpack.c.h.b16 %v371
    %v717 = vunpack.c.l.b16 %v372
    %v718 = vunpack.c.h.b16 %v372
    %v719 = vunpack.c.l.b16 %v373
    %v720 = vunpack.c.h.b16 %v373
    %v721 = vunpack.c.l.b16 %v374
    %v722 = vunpack.c.h.b16 %v374
    %v723 = vunpack.c.l.b16 %v375
    %v724 = vunpack.c.h.b16 %v375
    %v725 = vunpack.c.l.b16 %v376
    %v726 = vunpack.c.h.b16 %v376
    %v727 = vunpack.c.l.b16 %v377
    %v728 = vunpack.c.h.b16 %v377
    %v729 = vunpack.c.l.b16 %v378
    %v730 = vunpack.c.h.b16 %v378
    %v731 = vunpack.c.l.b16 %v379
    %v732 = vunpack.c.h.b16 %v379
    %v733 = vunpack.c.l.b16 %v380
    %v734 = vunpack.c.h.b16 %v380
    %v735 = vunpack.c.l.b16 %v381
    %v736 = vunpack.c.h.b16 %v381
    %v737 = vunpack.c.l.b16 %v382
    %v738 = vunpack.c.h.b16 %v382
    %v739 = vunpack.c.l.b16 %v383
    %v740 = vunpack.c.h.b16 %v383
    %v741 = vunpack.c.l.b16 %v384
    %v742 = vunpack.c.h.b16 %v384
    %v743 = vunpack.c.l.b16 %v385
    %v744 = vunpack.c.h.b16 %v385
    %v745 = vunpack.c.l.b16 %v386
    %v746 = vunpack.c.h.b16 %v386
    %v747 = vunpack.c.l.b16 %v387
    %v748 = vunpack.c.h.b16 %v387
    %v749 = vunpack.c.l.b16 %v388
    %v750 = vunpack.c.h.b16 %v388
    %v751 = vunpack.c.l.b16 %v389
    %v752 = vunpack.c.h.b16 %v389
    %v753 = vunpack.c.l.b16 %v390
    %v754 = vunpack.c.h.b16 %v390
    %v755 = vunpack.c.l.b16 %v391
    %v756 = vunpack.c.h.b16 %v391
    %v757 = vunpack.c.l.b16 %v392
    %v758 = vunpack.c.h.b16 %v392
    %v759 = vunpack.c.l.b16 %v393
    %v760 = vunpack.c.h.b16 %v393
    %v761 = vunpack.c.l.b16 %v394
    %v762 = vunpack.c.h.b16 %v394
    %v763 = vunpack.c.l.b16 %v395
    %v764 = vunpack.c.h.b16 %v395
    %v765 = vunpack.c.l.b16 %v396
    %v766 = vunpack.c.h.b16 %v396
    %v767 = vunpack.c.l.b16 %v397
    %v768 = vunpack.c.h.b16 %v397
    %v769 = vunpack.c.l.b16 %v398
    %v770 = vunpack.c.h.b16 %v398
    %v771 = vunpack.c.l.b16 %v399
    %v772 = vunpack.c.h.b16 %v399
    %v773 = vunpack.c.l.b16 %v400
    %v774 = vunpack.c.h.b16 %v400
    %v775 = vunpack.c.l.b16 %v401
    %v776 = vunpack.c.h.b16 %v401
    %v777 = vunpack.c.l.b16 %v402
    %v778 = vunpack.c.h.b16 %v402
    %v779 = vunpack.c.l.b16 %v403
    %v780 = vunpack.c.h.b16 %v403
    %v781 = vunpack.c.l.b16 %v404
    %v782 = vunpack.c.h.b16 %v404
    %v783 = vunpack.c.l.b16 %v405
    %v784 = vunpack.c.h.b16 %v405
    %v785 = vunpack.c.l.b16 %v406
    %v786 = vunpack.c.h.b16 %v406
    %v787 = vunpack.c.l.b16 %v407
    %v788 = vunpack.c.h.b16 %v407
    %v789 = vunpack.c.l.b16 %v408
    %v790 = vunpack.c.h.b16 %v408
    %v791 = vunpack.c.l.b16 %v409
    %v792 = vunpack.c.h.b16 %v409
    %v793 = vunpack.c.l.b16 %v410
    %v794 = vunpack.c.h.b16 %v410
    %v795 = vunpack.c.l.b16 %v411
    %v796 = vunpack.c.h.b16 %v411
    %v797 = vunpack.c.l.b16 %v412
    %v798 = vunpack.c.h.b16 %v412
    %v799 = vunpack.c.l.b16 %v413
    %v800 = vunpack.c.h.b16 %v413
    %v801 = vunpack.c.l.b16 %v414
    %v802 = vunpack.c.h.b16 %v414
    %v803 = vunpack.c.l.b16 %v415
    %v804 = vunpack.c.h.b16 %v415
    %v805 = vunpack.c.l.b16 %v416
    %v806 = vunpack.c.h.b16 %v416
    %v807 = vunpack.c.l.b16 %v417
    %v808 = vunpack.c.h.b16 %v417
    %v809 = vunpack.c.l.b16 %v418
    %v810 = vunpack.c.h.b16 %v418
    %v811 = vunpack.c.l.b16 %v419
    %v812 = vunpack.c.h.b16 %v419
    %v813 = vunpack.c.l.b16 %v420
    %v814 = vunpack.c.h.b16 %v420
    %v815 = vunpack.c.l.b16 %v421
    %v816 = vunpack.c.h.b16 %v421
    %v817 = vunpack.c.l.b16 %v422
    %v818 = vunpack.c.h.b16 %v422
    %v819 = vunpack.c.l.b16 %v423
    %v820 = vunpack.c.h.b16 %v423
    %v821 = vunpack.c.l.b16 %v424
    %v822 = vunpack.c.h.b16 %v424
    %v823 = vunpack.c.l.b16 %v425
    %v824 = vunpack.c.h.b16 %v425
    %v825 = vunpack.c.l.b16 %v426
    %v826 = vunpack.c.h.b16 %v426
    %v827 = vunpack.c.l.b16 %v427
    %v828 = vunpack.c.h.b16 %v427
    %v829 = vunpack.c.l.b16 %v428
    %v830 = vunpack.c.h.b16 %v428
    %v831 = vunpack.c.l.b16 %v429
    %v832 = vunpack.c.h.b16 %v429
    %v833 = vunpack.c.l.b16 %v430
    %v834 = vunpack.c.h.b16 %v430
    %v835 = vunpack.c.l.b16 %v431
    %v836 = vunpack.c.h.b16 %v431
    %v837 = vunpack.c.l.b16 %v432
    %v838 = vunpack.c.h.b16 %v432
    %v839 = vunpack.c.l.b16 %v433
    %v840 = vunpack.c.h.b16 %v433
    %v841 = vunpack.c.l.b16 %v434
    %v842 = vunpack.c.h.b16 %v434
    %v843 = vunpack.c.l.b16 %v435
    %v844 = vunpack.c.h.b16 %v435
    %v845 = vpack.c.b16 %v597, %v589
    %v846 = vpack.c.b16 %v598, %v590
    %v847 = vpack.c.b16 %v599, %v591
    %v848 = vpack.c.b16 %v600, %v592
    %v849 = vpack.c.b16 %v601, %v593
    %v850 = vpack.c.b16 %v602, %v594
    %v851 = vpack.c.b16 %v603, %v595
    %v852 = vpack.c.b16 %v604, %v596
    %v853 = vpack.c.b16 %v613, %v605
    %v854 = vpack.c.b16 %v614, %v606
    %v855 = vpack.c.b16 %v615, %v607
    %v856 = vpack.c.b16 %v616, %v608
    %v857 = vpack.c.b16 %v617, %v609
    %v858 = vpack.c.b16 %v618, %v610
    %v859 = vpack.c.b16 %v619, %v611
    %v860 = vpack.c.b16 %v620, %v612
    %v861 = vpack.c.b16 %v629, %v621
    %v862 = vpack.c.b16 %v630, %v622
    %v863 = vpack.c.b16 %v631, %v623
    %v864 = vpack.c.b16 %v632, %v624
    %v865 = vpack.c.b16 %v633, %v625
    %v866 = vpack.c.b16 %v634, %v626
    %v867 = vpack.c.b16 %v635, %v627
    %v868 = vpack.c.b16 %v636, %v628
    %v869 = vpack.c.b16 %v645, %v637
    %v870 = vpack.c.b16 %v646, %v638
    %v871 = vpack.c.b16 %v647, %v639
    %v872 = vpack.c.b16 %v648, %v640
    %v873 = vpack.c.b16 %v649, %v641
    %v874 = vpack.c.b16 %v650, %v642
    %v875 = vpack.c.b16 %v651, %v643
    %v876 = vpack.c.b16 %v652, %v644
    %v877 = vpack.c.b16 %v661, %v653
    %v878 = vpack.c.b16 %v662, %v654
    %v879 = vpack.c.b16 %v663, %v655
    %v880 = vpack.c.b16 %v664, %v656
    %v881 = vpack.c.b16 %v665, %v657
    %v882 = vpack.c.b16 %v666, %v658
    %v883 = vpack.c.b16 %v667, %v659
    %v884 = vpack.c.b16 %v668, %v660
    %v885 = vpack.c.b16 %v677, %v669
    %v886 = vpack.c.b16 %v678, %v670
    %v887 = vpack.c.b16 %v679, %v671
    %v888 = vpack.c.b16 %v680, %v672
    %v889 = vpack.c.b16 %v681, %v673
    %v890 = vpack.c.b16 %v682, %v674
    %v891 = vpack.c.b16 %v683, %v675
    %v892 = vpack.c.b16 %v684, %v676
    %v893 = vpack.c.b16 %v693, %v685
    %v894 = vpack.c.b16 %v694, %v686
    %v895 = vpack.c.b16 %v695, %v687
    %v896 = vpack.c.b16 %v696, %v688
    %v897 = vpack.c.b16 %v697, %v689
    %v898 = vpack.c.b16 %v698, %v690
    %v899 = vpack.c.b16 %v699, %v691
    %v900 = vpack.c.b16 %v700, %v692
    %v901 = vpack.c.b16 %v709, %v701
    %v902 = vpack.c.b16 %v710, %v702
    %v903 = vpack.c.b16 %v711, %v703
    %v904 = vpack.c.b16 %v712, %v704
    %v905 = vpack.c.b16 %v713, %v705
    %v906 = vpack.c.b16 %v714, %v706
    %v907 = vpack.c.b16 %v715, %v707
    %v908 = vpack.c.b16 %v716, %v708
    %v909 = vpack.c.b16 %v725, %v717
    %v910 = vpack.c.b16 %v726, %v718
    %v911 = vpack.c.b16 %v727, %v719
    %v912 = vpack.c.b16 %v728, %v720
    %v913 = vpack.c.b16 %v729, %v721
    %v914 = vpack.c.b16 %v730, %v722
    %v915 = vpack.c.b16 %v731, %v723
    %v916 = vpack.c.b16 %v732, %v724
    %v917 = vpack.c.b16 %v741, %v733
    %v918 = vpack.c.b16 %v742, %v734
    %v919 = vpack.c.b16 %v743, %v735
    %v920 = vpack.c.b16 %v744, %v736
    %v921 = vpack.c.b16 %v745, %v737
    %v922 = vpack.c.b16 %v746, %v738
    %v923 = vpack.c.b16 %v747, %v739
    %v924 = vpack.c.b16 %v748, %v740
    %v925 = vpack.c.b16 %v757, %v749
    %v926 = vpack.c.b16 %v758, %v750
    %v927 = vpack.c.b16 %v759, %v751
    %v928 = vpack.c.b16 %v760, %v752
    %v929 = vpack.c.b16 %v761, %v753
    %v930 = vpack.c.b16 %v762, %v754
    %v931 = vpack.c.b16 %v763, %v755
    %v932 = vpack.c.b16 %v764, %v756
    %v933 = vpack.c.b16 %v773, %v765
    %v934 = vpack.c.b16 %v774, %v766
    %v935 = vpack.c.b16 %v775, %v767
    %v936 = vpack.c.b16 %v776, %v768
    %v937 = vpack.c.b16 %v777, %v769
    %v938 = vpack.c.b16 %v778, %v770
    %v939 = vpack.c.b16 %v779, %v771
    %v940 = vpack.c.b16 %v780, %v772
    %v941 = vpack.c.b16 %v789, %v781
    %v942 = vpack.c.b16 %v790, %v782
    %v943 = vpack.c.b16 %v791, %v783
    %v944 = vpack.c.b16 %v792, %v784
    %v945 = vpack.c.b16 %v793, %v785
    %v946 = vpack.c.b16 %v794, %v786
    %v947 = vpack.c.b16 %v795, %v787
    %v948 = vpack.c.b16 %v796, %v788
    %v949 = vpack.c.b16 %v805, %v797
    %v950 = vpack.c.b16 %v806, %v798
    %v951 = vpack.c.b16 %v807, %v799
    %v952 = vpack.c.b16 %v808, %v800
    %v953 = vpack.c.b16 %v809, %v801
    %v954 = vpack.c.b16 %v810, %v802
    %v955 = vpack.c.b16 %v811, %v803
    %v956 = vpack.c.b16 %v812, %v804
    %v957 = vpack.c.b16 %v821, %v813
    %v958 = vpack.c.b16 %v822, %v814
    %v959 = vpack.c.b16 %v823, %v815
    %v960 = vpack.c.b16 %v824, %v816
    %v961 = vpack.c.b16 %v825, %v817
    %v962 = vpack.c.b16 %v826, %v818
    %v963 = vpack.c.b16 %v827, %v819
    %v964 = vpack.c.b16 %v828, %v820
    %v965 = vpack.c.b16 %v837, %v829
    %v966 = vpack.c.b16 %v838, %v830
    %v967 = vpack.c.b16 %v839, %v831
    %v968 = vpack.c.b16 %v840, %v832
    %v969 = vpack.c.b16 %v841, %v833
    %v970 = vpack.c.b16 %v842, %v834
    %v971 = vpack.c.b16 %v843, %v835
    %v972 = vpack.c.b16 %v844, %v836
    %1101 = vmatpush.bf16.msra.mxu0 %v901
    %1102 = vmatpush.bf16.msra.mxu0 %v893
    %1103 = vmatpush.bf16.msra.mxu0 %v885
    %1104 = vmatpush.bf16.msra.mxu0 %v877
    %1105 = vmatpush.bf16.msra.mxu0 %v869
    %1106 = vmatpush.bf16.msra.mxu0 %v861
    %1107 = vmatpush.bf16.msra.mxu0 %v853
    %1108 = vmatpush.bf16.msra.mxu0 %v845
    %1109 = vmatmul.bf16.gmra.mxu0 %v457
    %v1110 = vpop.f32.mrf.mxu0
    %v1111 = vadd.f32 %v438, %v1110
    %v1112 = vpop.f32.mrf.mxu0
    %1113 = vdwg.mxu0
    %1114 = vmatpush.bf16.msra.mxu0 %v965
    %1115 = vmatpush.bf16.msra.mxu0 %v957
    %1116 = vmatpush.bf16.msra.mxu0 %v949
    %1117 = vmatpush.bf16.msra.mxu0 %v941
    %1118 = vmatpush.bf16.msra.mxu0 %v933
    %1119 = vmatpush.bf16.msra.mxu0 %v925
    %1120 = vmatpush.bf16.msra.mxu0 %v917
    %1121 = vmatpush.bf16.msra.mxu0 %v909
    %1122 = vmatmul.bf16.gmra.mxu0 %v458
    %v1123 = vpop.f32.mrf.mxu0
    %v1124 = vadd.f32 %v1111, %v1123
    %v1125 = vpop.f32.mrf.mxu0
    %1126 = vdwg.mxu0
    %1127 = vmatpush.bf16.msra.mxu0 %v902
    %1128 = vmatpush.bf16.msra.mxu0 %v894
    %1129 = vmatpush.bf16.msra.mxu0 %v886
    %1130 = vmatpush.bf16.msra.mxu0 %v878
    %1131 = vmatpush.bf16.msra.mxu0 %v870
    %1132 = vmatpush.bf16.msra.mxu0 %v862
    %1133 = vmatpush.bf16.msra.mxu0 %v854
    %1134 = vmatpush.bf16.msra.mxu0 %v846
    %1135 = vmatmul.bf16.gmra.mxu0 %v457
    %v1136 = vpop.f32.mrf.mxu0
    %v1137 = vadd.f32 %v439, %v1136
    %v1138 = vpop.f32.mrf.mxu0
    %1139 = vdwg.mxu0
    %1140 = vmatpush.bf16.msra.mxu0 %v966
    %1141 = vmatpush.bf16.msra.mxu0 %v958
    %1142 = vmatpush.bf16.msra.mxu0 %v950
    %1143 = vmatpush.bf16.msra.mxu0 %v942
    %1144 = vmatpush.bf16.msra.mxu0 %v934
    %1145 = vmatpush.bf16.msra.mxu0 %v926
    %1146 = vmatpush.bf16.msra.mxu0 %v918
    %1147 = vmatpush.bf16.msra.mxu0 %v910
    %1148 = vmatmul.bf16.gmra.mxu0 %v458
    %v1149 = vpop.f32.mrf.mxu0
    %v1150 = vadd.f32 %v1137, %v1149
    %v1151 = vpop.f32.mrf.mxu0
    %1152 = vdwg.mxu0
    %1153 = vmatpush.bf16.msra.mxu0 %v903
    %1154 = vmatpush.bf16.msra.mxu0 %v895
    %1155 = vmatpush.bf16.msra.mxu0 %v887
    %1156 = vmatpush.bf16.msra.mxu0 %v879
    %1157 = vmatpush.bf16.msra.mxu0 %v871
    %1158 = vmatpush.bf16.msra.mxu0 %v863
    %1159 = vmatpush.bf16.msra.mxu0 %v855
    %1160 = vmatpush.bf16.msra.mxu0 %v847
    %1161 = vmatmul.bf16.gmra.mxu0 %v457
    %v1162 = vpop.f32.mrf.mxu0
    %v1163 = vadd.f32 %v440, %v1162
    %v1164 = vpop.f32.mrf.mxu0
    %1165 = vdwg.mxu0
    %1166 = vmatpush.bf16.msra.mxu0 %v967
    %1167 = vmatpush.bf16.msra.mxu0 %v959
    %1168 = vmatpush.bf16.msra.mxu0 %v951
    %1169 = vmatpush.bf16.msra.mxu0 %v943
    %1170 = vmatpush.bf16.msra.mxu0 %v935
    %1171 = vmatpush.bf16.msra.mxu0 %v927
    %1172 = vmatpush.bf16.msra.mxu0 %v919
    %1173 = vmatpush.bf16.msra.mxu0 %v911
    %1174 = vmatmul.bf16.gmra.mxu0 %v458
    %v1175 = vpop.f32.mrf.mxu0
    %v1176 = vadd.f32 %v1163, %v1175
    %v1177 = vpop.f32.mrf.mxu0
    %1178 = vdwg.mxu0
    %1179 = vmatpush.bf16.msra.mxu0 %v904
    %1180 = vmatpush.bf16.msra.mxu0 %v896
    %1181 = vmatpush.bf16.msra.mxu0 %v888
    %1182 = vmatpush.bf16.msra.mxu0 %v880
    %1183 = vmatpush.bf16.msra.mxu0 %v872
    %1184 = vmatpush.bf16.msra.mxu0 %v864
    %1185 = vmatpush.bf16.msra.mxu0 %v856
    %1186 = vmatpush.bf16.msra.mxu0 %v848
    %1187 = vmatmul.bf16.gmra.mxu0 %v457
    %v1188 = vpop.f32.mrf.mxu0
    %v1189 = vadd.f32 %v441, %v1188
    %v1190 = vpop.f32.mrf.mxu0
    %1191 = vdwg.mxu0
    %1192 = vmatpush.bf16.msra.mxu0 %v968
    %1193 = vmatpush.bf16.msra.mxu0 %v960
    %1194 = vmatpush.bf16.msra.mxu0 %v952
    %1195 = vmatpush.bf16.msra.mxu0 %v944
    %1196 = vmatpush.bf16.msra.mxu0 %v936
    %1197 = vmatpush.bf16.msra.mxu0 %v928
    %1198 = vmatpush.bf16.msra.mxu0 %v920
    %1199 = vmatpush.bf16.msra.mxu0 %v912
    %1200 = vmatmul.bf16.gmra.mxu0 %v458
    %v1201 = vpop.f32.mrf.mxu0
    %v1202 = vadd.f32 %v1189, %v1201
    %v1203 = vpop.f32.mrf.mxu0
    %1204 = vdwg.mxu0
    %1205 = vmatpush.bf16.msra.mxu0 %v905
    %1206 = vmatpush.bf16.msra.mxu0 %v897
    %1207 = vmatpush.bf16.msra.mxu0 %v889
    %1208 = vmatpush.bf16.msra.mxu0 %v881
    %1209 = vmatpush.bf16.msra.mxu0 %v873
    %1210 = vmatpush.bf16.msra.mxu0 %v865
    %1211 = vmatpush.bf16.msra.mxu0 %v857
    %1212 = vmatpush.bf16.msra.mxu0 %v849
    %1213 = vmatmul.bf16.gmra.mxu0 %v457
    %v1214 = vpop.f32.mrf.mxu0
    %v1215 = vadd.f32 %v442, %v1214
    %v1216 = vpop.f32.mrf.mxu0
    %1217 = vdwg.mxu0
    %1218 = vmatpush.bf16.msra.mxu0 %v969
    %1219 = vmatpush.bf16.msra.mxu0 %v961
    %1220 = vmatpush.bf16.msra.mxu0 %v953
    %1221 = vmatpush.bf16.msra.mxu0 %v945
    %1222 = vmatpush.bf16.msra.mxu0 %v937
    %1223 = vmatpush.bf16.msra.mxu0 %v929
    %1224 = vmatpush.bf16.msra.mxu0 %v921
    %1225 = vmatpush.bf16.msra.mxu0 %v913
    %1226 = vmatmul.bf16.gmra.mxu0 %v458
    %v1227 = vpop.f32.mrf.mxu0
    %v1228 = vadd.f32 %v1215, %v1227
    %v1229 = vpop.f32.mrf.mxu0
    %1230 = vdwg.mxu0
    %1231 = vmatpush.bf16.msra.mxu0 %v906
    %1232 = vmatpush.bf16.msra.mxu0 %v898
    %1233 = vmatpush.bf16.msra.mxu0 %v890
    %1234 = vmatpush.bf16.msra.mxu0 %v882
    %1235 = vmatpush.bf16.msra.mxu0 %v874
    %1236 = vmatpush.bf16.msra.mxu0 %v866
    %1237 = vmatpush.bf16.msra.mxu0 %v858
    %1238 = vmatpush.bf16.msra.mxu0 %v850
    %1239 = vmatmul.bf16.gmra.mxu0 %v457
    %v1240 = vpop.f32.mrf.mxu0
    %v1241 = vadd.f32 %v443, %v1240
    %v1242 = vpop.f32.mrf.mxu0
    %1243 = vdwg.mxu0
    %1244 = vmatpush.bf16.msra.mxu0 %v970
    %1245 = vmatpush.bf16.msra.mxu0 %v962
    %1246 = vmatpush.bf16.msra.mxu0 %v954
    %1247 = vmatpush.bf16.msra.mxu0 %v946
    %1248 = vmatpush.bf16.msra.mxu0 %v938
    %1249 = vmatpush.bf16.msra.mxu0 %v930
    %1250 = vmatpush.bf16.msra.mxu0 %v922
    %1251 = vmatpush.bf16.msra.mxu0 %v914
    %1252 = vmatmul.bf16.gmra.mxu0 %v458
    %v1253 = vpop.f32.mrf.mxu0
    %v1254 = vadd.f32 %v1241, %v1253
    %v1255 = vpop.f32.mrf.mxu0
    %1256 = vdwg.mxu0
    %1257 = vmatpush.bf16.msra.mxu0 %v907
    %1258 = vmatpush.bf16.msra.mxu0 %v899
    %1259 = vmatpush.bf16.msra.mxu0 %v891
    %1260 = vmatpush.bf16.msra.mxu0 %v883
    %1261 = vmatpush.bf16.msra.mxu0 %v875
    %1262 = vmatpush.bf16.msra.mxu0 %v867
    %1263 = vmatpush.bf16.msra.mxu0 %v859
    %1264 = vmatpush.bf16.msra.mxu0 %v851
    %1265 = vmatmul.bf16.gmra.mxu0 %v457
    %v1266 = vpop.f32.mrf.mxu0
    %v1267 = vadd.f32 %v444, %v1266
    %v1268 = vpop.f32.mrf.mxu0
    %1269 = vdwg.mxu0
    %1270 = vmatpush.bf16.msra.mxu0 %v971
    %1271 = vmatpush.bf16.msra.mxu0 %v963
    %1272 = vmatpush.bf16.msra.mxu0 %v955
    %1273 = vmatpush.bf16.msra.mxu0 %v947
    %1274 = vmatpush.bf16.msra.mxu0 %v939
    %1275 = vmatpush.bf16.msra.mxu0 %v931
    %1276 = vmatpush.bf16.msra.mxu0 %v923
    %1277 = vmatpush.bf16.msra.mxu0 %v915
    %1278 = vmatmul.bf16.gmra.mxu0 %v458
    %v1279 = vpop.f32.mrf.mxu0
    %v1280 = vadd.f32 %v1267, %v1279
    %v1281 = vpop.f32.mrf.mxu0
    %1282 = vdwg.mxu0
    %1283 = vmatpush.bf16.msra.mxu0 %v908
    %1284 = vmatpush.bf16.msra.mxu0 %v900
    %1285 = vmatpush.bf16.msra.mxu0 %v892
    %1286 = vmatpush.bf16.msra.mxu0 %v884
    %1287 = vmatpush.bf16.msra.mxu0 %v876
    %1288 = vmatpush.bf16.msra.mxu0 %v868
    %1289 = vmatpush.bf16.msra.mxu0 %v860
    %1290 = vmatpush.bf16.msra.mxu0 %v852
    %1291 = vmatmul.bf16.gmra.mxu0 %v457
    %v1292 = vpop.f32.mrf.mxu0
    %v1293 = vadd.f32 %v445, %v1292
    %v1294 = vpop.f32.mrf.mxu0
    %1295 = vdwg.mxu0
    %1296 = vmatpush.bf16.msra.mxu0 %v972
    %1297 = vmatpush.bf16.msra.mxu0 %v964
    %1298 = vmatpush.bf16.msra.mxu0 %v956
    %1299 = vmatpush.bf16.msra.mxu0 %v948
    %1300 = vmatpush.bf16.msra.mxu0 %v940
    %1301 = vmatpush.bf16.msra.mxu0 %v932
    %1302 = vmatpush.bf16.msra.mxu0 %v924
    %1303 = vmatpush.bf16.msra.mxu0 %v916
    %1304 = vmatmul.bf16.gmra.mxu0 %v458
    %v1305 = vpop.f32.mrf.mxu0
    %v1306 = vadd.f32 %v1293, %v1305
    %v1307 = vpop.f32.mrf.mxu0
    %1308 = vdwg.mxu0
    %v1309 = vmax.f32 %v1124, 0.0
    %v1310 = vmax.f32 %v1150, 0.0
    %v1311 = vmax.f32 %v1176, 0.0
    %v1312 = vmax.f32 %v1202, 0.0
    %v1313 = vmax.f32 %v1228, 0.0
    %v1314 = vmax.f32 %v1254, 0.0
    %v1315 = vmax.f32 %v1280, 0.0
    %v1316 = vmax.f32 %v1306, 0.0
    %v1317 = vpack.c.bf16 %v1309, %v1309
    %v1318 = vpack.c.bf16 %v1310, %v1310
    %v1319 = vpack.c.bf16 %v1311, %v1311
    %v1320 = vpack.c.bf16 %v1312, %v1312
    %v1321 = vpack.c.bf16 %v1313, %v1313
    %v1322 = vpack.c.bf16 %v1314, %v1314
    %v1323 = vpack.c.bf16 %v1315, %v1315
    %v1324 = vpack.c.bf16 %v1316, %v1316
    %v1325 = vld [vmem:[#allocation11] sm:$0xff]
    %v1326 = vld [vmem:[#allocation11 + $0x8] sm:$0xff]
    %v1327 = vld [vmem:[#allocation11 + $0x10] sm:$0xff]
    %v1328 = vld [vmem:[#allocation11 + $0x18] sm:$0xff]
    %v1329 = vld [vmem:[#allocation11 + $0x20] sm:$0xff]
    %v1330 = vld [vmem:[#allocation11 + $0x28] sm:$0xff]
    %v1331 = vld [vmem:[#allocation11 + $0x30] sm:$0xff]
    %v1332 = vld [vmem:[#allocation11 + $0x38] sm:$0xff]
    %v1333 = vld [vmem:[#allocation11 + $0x40] sm:$0xff]
    %v1334 = vld [vmem:[#allocation11 + $0x48] sm:$0xff]
    %v1335 = vld [vmem:[#allocation11 + $0x50] sm:$0xff]
    %v1336 = vld [vmem:[#allocation11 + $0x58] sm:$0xff]
    %v1337 = vld [vmem:[#allocation11 + $0x60] sm:$0xff]
    %v1338 = vld [vmem:[#allocation11 + $0x68] sm:$0xff]
    %v1339 = vld [vmem:[#allocation11 + $0x70] sm:$0xff]
    %v1340 = vld [vmem:[#allocation11 + $0x78] sm:$0xff]
    %v1341 = vld [vmem:[#allocation11 + $0x80] sm:$0xff]
    %v1342 = vld [vmem:[#allocation11 + $0x88] sm:$0xff]
    %v1343 = vld [vmem:[#allocation11 + $0x90] sm:$0xff]
    %v1344 = vld [vmem:[#allocation11 + $0x98] sm:$0xff]
    %v1345 = vld [vmem:[#allocation11 + $0xa0] sm:$0xff]
    %v1346 = vld [vmem:[#allocation11 + $0xa8] sm:$0xff]
    %v1347 = vld [vmem:[#allocation11 + $0xb0] sm:$0xff]
    %v1348 = vld [vmem:[#allocation11 + $0xb8] sm:$0xff]
    %v1349 = vld [vmem:[#allocation11 + $0xc0] sm:$0xff]
    %v1350 = vld [vmem:[#allocation11 + $0xc8] sm:$0xff]
    %v1351 = vld [vmem:[#allocation11 + $0xd0] sm:$0xff]
    %v1352 = vld [vmem:[#allocation11 + $0xd8] sm:$0xff]
    %v1353 = vld [vmem:[#allocation11 + $0xe0] sm:$0xff]
    %v1354 = vld [vmem:[#allocation11 + $0xe8] sm:$0xff]
    %v1355 = vld [vmem:[#allocation11 + $0xf0] sm:$0xff]
    %v1356 = vld [vmem:[#allocation11 + $0xf8] sm:$0xff]
    %v1357 = vld [vmem:[#allocation11 + $0x100] sm:$0xff]
    %v1358 = vld [vmem:[#allocation11 + $0x108] sm:$0xff]
    %v1359 = vld [vmem:[#allocation11 + $0x110] sm:$0xff]
    %v1360 = vld [vmem:[#allocation11 + $0x118] sm:$0xff]
    %v1361 = vld [vmem:[#allocation11 + $0x120] sm:$0xff]
    %v1362 = vld [vmem:[#allocation11 + $0x128] sm:$0xff]
    %v1363 = vld [vmem:[#allocation11 + $0x130] sm:$0xff]
    %v1364 = vld [vmem:[#allocation11 + $0x138] sm:$0xff]
    %v1365 = vld [vmem:[#allocation11 + $0x140] sm:$0xff]
    %v1366 = vld [vmem:[#allocation11 + $0x148] sm:$0xff]
    %v1367 = vld [vmem:[#allocation11 + $0x150] sm:$0xff]
    %v1368 = vld [vmem:[#allocation11 + $0x158] sm:$0xff]
    %v1369 = vld [vmem:[#allocation11 + $0x160] sm:$0xff]
    %v1370 = vld [vmem:[#allocation11 + $0x168] sm:$0xff]
    %v1371 = vld [vmem:[#allocation11 + $0x170] sm:$0xff]
    %v1372 = vld [vmem:[#allocation11 + $0x178] sm:$0xff]
    %v1373 = vld [vmem:[#allocation11 + $0x180] sm:$0xff]
    %v1374 = vld [vmem:[#allocation11 + $0x188] sm:$0xff]
    %v1375 = vld [vmem:[#allocation11 + $0x190] sm:$0xff]
    %v1376 = vld [vmem:[#allocation11 + $0x198] sm:$0xff]
    %v1377 = vld [vmem:[#allocation11 + $0x1a0] sm:$0xff]
    %v1378 = vld [vmem:[#allocation11 + $0x1a8] sm:$0xff]
    %v1379 = vld [vmem:[#allocation11 + $0x1b0] sm:$0xff]
    %v1380 = vld [vmem:[#allocation11 + $0x1b8] sm:$0xff]
    %v1381 = vld [vmem:[#allocation11 + $0x1c0] sm:$0xff]
    %v1382 = vld [vmem:[#allocation11 + $0x1c8] sm:$0xff]
    %v1383 = vld [vmem:[#allocation11 + $0x1d0] sm:$0xff]
    %v1384 = vld [vmem:[#allocation11 + $0x1d8] sm:$0xff]
    %v1385 = vld [vmem:[#allocation11 + $0x1e0] sm:$0xff]
    %v1386 = vld [vmem:[#allocation11 + $0x1e8] sm:$0xff]
    %v1387 = vld [vmem:[#allocation11 + $0x1f0] sm:$0xff]
    %v1388 = vld [vmem:[#allocation11 + $0x1f8] sm:$0xff]
    %v1389 = vld [vmem:[#allocation11 + $0x200] sm:$0xff]
    %v1390 = vld [vmem:[#allocation11 + $0x208] sm:$0xff]
    %v1391 = vld [vmem:[#allocation11 + $0x210] sm:$0xff]
    %v1392 = vld [vmem:[#allocation11 + $0x218] sm:$0xff]
    %v1393 = vld [vmem:[#allocation11 + $0x220] sm:$0xff]
    %v1394 = vld [vmem:[#allocation11 + $0x228] sm:$0xff]
    %v1395 = vld [vmem:[#allocation11 + $0x230] sm:$0xff]
    %v1396 = vld [vmem:[#allocation11 + $0x238] sm:$0xff]
    %v1397 = vld [vmem:[#allocation11 + $0x240] sm:$0xff]
    %v1398 = vld [vmem:[#allocation11 + $0x248] sm:$0xff]
    %v1399 = vld [vmem:[#allocation11 + $0x250] sm:$0xff]
    %v1400 = vld [vmem:[#allocation11 + $0x258] sm:$0xff]
    %v1401 = vld [vmem:[#allocation11 + $0x260] sm:$0xff]
    %v1402 = vld [vmem:[#allocation11 + $0x268] sm:$0xff]
    %v1403 = vld [vmem:[#allocation11 + $0x270] sm:$0xff]
    %v1404 = vld [vmem:[#allocation11 + $0x278] sm:$0xff]
    %v1405 = vld [vmem:[#allocation11 + $0x280] sm:$0xff]
    %v1406 = vld [vmem:[#allocation11 + $0x288] sm:$0xff]
    %v1407 = vld [vmem:[#allocation11 + $0x290] sm:$0xff]
    %v1408 = vld [vmem:[#allocation11 + $0x298] sm:$0xff]
    %v1409 = vld [vmem:[#allocation11 + $0x2a0] sm:$0xff]
    %v1410 = vld [vmem:[#allocation11 + $0x2a8] sm:$0xff]
    %v1411 = vld [vmem:[#allocation11 + $0x2b0] sm:$0xff]
    %v1412 = vld [vmem:[#allocation11 + $0x2b8] sm:$0xff]
    %v1413 = vld [vmem:[#allocation11 + $0x2c0] sm:$0xff]
    %v1414 = vld [vmem:[#allocation11 + $0x2c8] sm:$0xff]
    %v1415 = vld [vmem:[#allocation11 + $0x2d0] sm:$0xff]
    %v1416 = vld [vmem:[#allocation11 + $0x2d8] sm:$0xff]
    %v1417 = vld [vmem:[#allocation11 + $0x2e0] sm:$0xff]
    %v1418 = vld [vmem:[#allocation11 + $0x2e8] sm:$0xff]
    %v1419 = vld [vmem:[#allocation11 + $0x2f0] sm:$0xff]
    %v1420 = vld [vmem:[#allocation11 + $0x2f8] sm:$0xff]
    %v1421 = vld [vmem:[#allocation11 + $0x300] sm:$0xff]
    %v1422 = vld [vmem:[#allocation11 + $0x308] sm:$0xff]
    %v1423 = vld [vmem:[#allocation11 + $0x310] sm:$0xff]
    %v1424 = vld [vmem:[#allocation11 + $0x318] sm:$0xff]
    %v1425 = vld [vmem:[#allocation11 + $0x320] sm:$0xff]
    %v1426 = vld [vmem:[#allocation11 + $0x328] sm:$0xff]
    %v1427 = vld [vmem:[#allocation11 + $0x330] sm:$0xff]
    %v1428 = vld [vmem:[#allocation11 + $0x338] sm:$0xff]
    %v1429 = vld [vmem:[#allocation11 + $0x340] sm:$0xff]
    %v1430 = vld [vmem:[#allocation11 + $0x348] sm:$0xff]
    %v1431 = vld [vmem:[#allocation11 + $0x350] sm:$0xff]
    %v1432 = vld [vmem:[#allocation11 + $0x358] sm:$0xff]
    %v1433 = vld [vmem:[#allocation11 + $0x360] sm:$0xff]
    %v1434 = vld [vmem:[#allocation11 + $0x368] sm:$0xff]
    %v1435 = vld [vmem:[#allocation11 + $0x370] sm:$0xff]
    %v1436 = vld [vmem:[#allocation11 + $0x378] sm:$0xff]
    %v1437 = vld [vmem:[#allocation11 + $0x380] sm:$0xff]
    %v1438 = vld [vmem:[#allocation11 + $0x388] sm:$0xff]
    %v1439 = vld [vmem:[#allocation11 + $0x390] sm:$0xff]
    %v1440 = vld [vmem:[#allocation11 + $0x398] sm:$0xff]
    %v1441 = vld [vmem:[#allocation11 + $0x3a0] sm:$0xff]
    %v1442 = vld [vmem:[#allocation11 + $0x3a8] sm:$0xff]
    %v1443 = vld [vmem:[#allocation11 + $0x3b0] sm:$0xff]
    %v1444 = vld [vmem:[#allocation11 + $0x3b8] sm:$0xff]
    %v1445 = vld [vmem:[#allocation11 + $0x3c0] sm:$0xff]
    %v1446 = vld [vmem:[#allocation11 + $0x3c8] sm:$0xff]
    %v1447 = vld [vmem:[#allocation11 + $0x3d0] sm:$0xff]
    %v1448 = vld [vmem:[#allocation11 + $0x3d8] sm:$0xff]
    %v1449 = vld [vmem:[#allocation11 + $0x3e0] sm:$0xff]
    %v1450 = vld [vmem:[#allocation11 + $0x3e8] sm:$0xff]
    %v1451 = vld [vmem:[#allocation11 + $0x3f0] sm:$0xff]
    %v1452 = vld [vmem:[#allocation11 + $0x3f8] sm:$0xff]
    %v1453 = vld [vmem:[#allocation11 + $0x400] sm:$0xff]
    %v1454 = vld [vmem:[#allocation11 + $0x408] sm:$0xff]
    %v1455 = vld [vmem:[#allocation11 + $0x410] sm:$0xff]
    %v1456 = vld [vmem:[#allocation11 + $0x418] sm:$0xff]
    %v1457 = vld [vmem:[#allocation11 + $0x420] sm:$0xff]
    %v1458 = vld [vmem:[#allocation11 + $0x428] sm:$0xff]
    %v1459 = vld [vmem:[#allocation11 + $0x430] sm:$0xff]
    %v1460 = vld [vmem:[#allocation11 + $0x438] sm:$0xff]
    %v1461 = vld [vmem:[#allocation11 + $0x440] sm:$0xff]
    %v1462 = vld [vmem:[#allocation11 + $0x448] sm:$0xff]
    %v1463 = vld [vmem:[#allocation11 + $0x450] sm:$0xff]
    %v1464 = vld [vmem:[#allocation11 + $0x458] sm:$0xff]
    %v1465 = vld [vmem:[#allocation11 + $0x460] sm:$0xff]
    %v1466 = vld [vmem:[#allocation11 + $0x468] sm:$0xff]
    %v1467 = vld [vmem:[#allocation11 + $0x470] sm:$0xff]
    %v1468 = vld [vmem:[#allocation11 + $0x478] sm:$0xff]
    %v1469 = vld [vmem:[#allocation11 + $0x480] sm:$0xff]
    %v1470 = vld [vmem:[#allocation11 + $0x488] sm:$0xff]
    %v1471 = vld [vmem:[#allocation11 + $0x490] sm:$0xff]
    %v1472 = vld [vmem:[#allocation11 + $0x498] sm:$0xff]
    %v1473 = vld [vmem:[#allocation11 + $0x4a0] sm:$0xff]
    %v1474 = vld [vmem:[#allocation11 + $0x4a8] sm:$0xff]
    %v1475 = vld [vmem:[#allocation11 + $0x4b0] sm:$0xff]
    %v1476 = vld [vmem:[#allocation11 + $0x4b8] sm:$0xff]
    %v1477 = vld [vmem:[#allocation11 + $0x4c0] sm:$0xff]
    %v1478 = vld [vmem:[#allocation11 + $0x4c8] sm:$0xff]
    %v1479 = vld [vmem:[#allocation11 + $0x4d0] sm:$0xff]
    %v1480 = vld [vmem:[#allocation11 + $0x4d8] sm:$0xff]
    %v1481 = vld [vmem:[#allocation11 + $0x4e0] sm:$0xff]
    %v1482 = vld [vmem:[#allocation11 + $0x4e8] sm:$0xff]
    %v1483 = vld [vmem:[#allocation11 + $0x4f0] sm:$0xff]
    %v1484 = vld [vmem:[#allocation11 + $0x4f8] sm:$0xff]
    %v1485 = vld [vmem:[#allocation11 + $0x500] sm:$0xff]
    %v1486 = vld [vmem:[#allocation11 + $0x508] sm:$0xff]
    %v1487 = vld [vmem:[#allocation11 + $0x510] sm:$0xff]
    %v1488 = vld [vmem:[#allocation11 + $0x518] sm:$0xff]
    %v1489 = vld [vmem:[#allocation11 + $0x520] sm:$0xff]
    %v1490 = vld [vmem:[#allocation11 + $0x528] sm:$0xff]
    %v1491 = vld [vmem:[#allocation11 + $0x530] sm:$0xff]
    %v1492 = vld [vmem:[#allocation11 + $0x538] sm:$0xff]
    %v1493 = vld [vmem:[#allocation11 + $0x540] sm:$0xff]
    %v1494 = vld [vmem:[#allocation11 + $0x548] sm:$0xff]
    %v1495 = vld [vmem:[#allocation11 + $0x550] sm:$0xff]
    %v1496 = vld [vmem:[#allocation11 + $0x558] sm:$0xff]
    %v1497 = vld [vmem:[#allocation11 + $0x560] sm:$0xff]
    %v1498 = vld [vmem:[#allocation11 + $0x568] sm:$0xff]
    %v1499 = vld [vmem:[#allocation11 + $0x570] sm:$0xff]
    %v1500 = vld [vmem:[#allocation11 + $0x578] sm:$0xff]
    %v1501 = vld [vmem:[#allocation11 + $0x580] sm:$0xff]
    %v1502 = vld [vmem:[#allocation11 + $0x588] sm:$0xff]
    %v1503 = vld [vmem:[#allocation11 + $0x590] sm:$0xff]
    %v1504 = vld [vmem:[#allocation11 + $0x598] sm:$0xff]
    %v1505 = vld [vmem:[#allocation11 + $0x5a0] sm:$0xff]
    %v1506 = vld [vmem:[#allocation11 + $0x5a8] sm:$0xff]
    %v1507 = vld [vmem:[#allocation11 + $0x5b0] sm:$0xff]
    %v1508 = vld [vmem:[#allocation11 + $0x5b8] sm:$0xff]
    %v1509 = vld [vmem:[#allocation11 + $0x5c0] sm:$0xff]
    %v1510 = vld [vmem:[#allocation11 + $0x5c8] sm:$0xff]
    %v1511 = vld [vmem:[#allocation11 + $0x5d0] sm:$0xff]
    %v1512 = vld [vmem:[#allocation11 + $0x5d8] sm:$0xff]
    %v1513 = vld [vmem:[#allocation11 + $0x5e0] sm:$0xff]
    %v1514 = vld [vmem:[#allocation11 + $0x5e8] sm:$0xff]
    %v1515 = vld [vmem:[#allocation11 + $0x5f0] sm:$0xff]
    %v1516 = vld [vmem:[#allocation11 + $0x5f8] sm:$0xff]
    %v1517 = vld [vmem:[#allocation11 + $0x600] sm:$0xff]
    %v1518 = vld [vmem:[#allocation11 + $0x608] sm:$0xff]
    %v1519 = vld [vmem:[#allocation11 + $0x610] sm:$0xff]
    %v1520 = vld [vmem:[#allocation11 + $0x618] sm:$0xff]
    %v1521 = vld [vmem:[#allocation11 + $0x620] sm:$0xff]
    %v1522 = vld [vmem:[#allocation11 + $0x628] sm:$0xff]
    %v1523 = vld [vmem:[#allocation11 + $0x630] sm:$0xff]
    %v1524 = vld [vmem:[#allocation11 + $0x638] sm:$0xff]
    %v1525 = vld [vmem:[#allocation11 + $0x640] sm:$0xff]
    %v1526 = vld [vmem:[#allocation11 + $0x648] sm:$0xff]
    %v1527 = vld [vmem:[#allocation11 + $0x650] sm:$0xff]
    %v1528 = vld [vmem:[#allocation11 + $0x658] sm:$0xff]
    %v1529 = vld [vmem:[#allocation11 + $0x660] sm:$0xff]
    %v1530 = vld [vmem:[#allocation11 + $0x668] sm:$0xff]
    %v1531 = vld [vmem:[#allocation11 + $0x670] sm:$0xff]
    %v1532 = vld [vmem:[#allocation11 + $0x678] sm:$0xff]
    %v1533 = vld [vmem:[#allocation11 + $0x680] sm:$0xff]
    %v1534 = vld [vmem:[#allocation11 + $0x688] sm:$0xff]
    %v1535 = vld [vmem:[#allocation11 + $0x690] sm:$0xff]
    %v1536 = vld [vmem:[#allocation11 + $0x698] sm:$0xff]
    %v1537 = vld [vmem:[#allocation11 + $0x6a0] sm:$0xff]
    %v1538 = vld [vmem:[#allocation11 + $0x6a8] sm:$0xff]
    %v1539 = vld [vmem:[#allocation11 + $0x6b0] sm:$0xff]
    %v1540 = vld [vmem:[#allocation11 + $0x6b8] sm:$0xff]
    %v1541 = vld [vmem:[#allocation11 + $0x6c0] sm:$0xff]
    %v1542 = vld [vmem:[#allocation11 + $0x6c8] sm:$0xff]
    %v1543 = vld [vmem:[#allocation11 + $0x6d0] sm:$0xff]
    %v1544 = vld [vmem:[#allocation11 + $0x6d8] sm:$0xff]
    %v1545 = vld [vmem:[#allocation11 + $0x6e0] sm:$0xff]
    %v1546 = vld [vmem:[#allocation11 + $0x6e8] sm:$0xff]
    %v1547 = vld [vmem:[#allocation11 + $0x6f0] sm:$0xff]
    %v1548 = vld [vmem:[#allocation11 + $0x6f8] sm:$0xff]
    %v1549 = vld [vmem:[#allocation11 + $0x700] sm:$0xff]
    %v1550 = vld [vmem:[#allocation11 + $0x708] sm:$0xff]
    %v1551 = vld [vmem:[#allocation11 + $0x710] sm:$0xff]
    %v1552 = vld [vmem:[#allocation11 + $0x718] sm:$0xff]
    %v1553 = vld [vmem:[#allocation11 + $0x720] sm:$0xff]
    %v1554 = vld [vmem:[#allocation11 + $0x728] sm:$0xff]
    %v1555 = vld [vmem:[#allocation11 + $0x730] sm:$0xff]
    %v1556 = vld [vmem:[#allocation11 + $0x738] sm:$0xff]
    %v1557 = vld [vmem:[#allocation11 + $0x740] sm:$0xff]
    %v1558 = vld [vmem:[#allocation11 + $0x748] sm:$0xff]
    %v1559 = vld [vmem:[#allocation11 + $0x750] sm:$0xff]
    %v1560 = vld [vmem:[#allocation11 + $0x758] sm:$0xff]
    %v1561 = vld [vmem:[#allocation11 + $0x760] sm:$0xff]
    %v1562 = vld [vmem:[#allocation11 + $0x768] sm:$0xff]
    %v1563 = vld [vmem:[#allocation11 + $0x770] sm:$0xff]
    %v1564 = vld [vmem:[#allocation11 + $0x778] sm:$0xff]
    %v1565 = vld [vmem:[#allocation11 + $0x780] sm:$0xff]
    %v1566 = vld [vmem:[#allocation11 + $0x788] sm:$0xff]
    %v1567 = vld [vmem:[#allocation11 + $0x790] sm:$0xff]
    %v1568 = vld [vmem:[#allocation11 + $0x798] sm:$0xff]
    %v1569 = vld [vmem:[#allocation11 + $0x7a0] sm:$0xff]
    %v1570 = vld [vmem:[#allocation11 + $0x7a8] sm:$0xff]
    %v1571 = vld [vmem:[#allocation11 + $0x7b0] sm:$0xff]
    %v1572 = vld [vmem:[#allocation11 + $0x7b8] sm:$0xff]
    %v1573 = vld [vmem:[#allocation11 + $0x7c0] sm:$0xff]
    %v1574 = vld [vmem:[#allocation11 + $0x7c8] sm:$0xff]
    %v1575 = vld [vmem:[#allocation11 + $0x7d0] sm:$0xff]
    %v1576 = vld [vmem:[#allocation11 + $0x7d8] sm:$0xff]
    %v1577 = vld [vmem:[#allocation11 + $0x7e0] sm:$0xff]
    %v1578 = vld [vmem:[#allocation11 + $0x7e8] sm:$0xff]
    %v1579 = vld [vmem:[#allocation11 + $0x7f0] sm:$0xff]
    %v1580 = vld [vmem:[#allocation11 + $0x7f8] sm:$0xff]
    %v1581 = vld [vmem:[%s7] sm:$0xf]
    %v1583 = vperm.slane %v1581, 0
    %v1584 = vperm.slane %v1581, 1
    %v1585 = vperm.slane %v1581, 2
    %v1586 = vperm.slane %v1581, 3
    %v1847 = vunpack.c.l.b16 %v1325
    %v1848 = vunpack.c.h.b16 %v1325
    %v1849 = vunpack.c.l.b16 %v1326
    %v1850 = vunpack.c.h.b16 %v1326
    %v1851 = vunpack.c.l.b16 %v1327
    %v1852 = vunpack.c.h.b16 %v1327
    %v1853 = vunpack.c.l.b16 %v1328
    %v1854 = vunpack.c.h.b16 %v1328
    %v1855 = vunpack.c.l.b16 %v1329
    %v1856 = vunpack.c.h.b16 %v1329
    %v1857 = vunpack.c.l.b16 %v1330
    %v1858 = vunpack.c.h.b16 %v1330
    %v1859 = vunpack.c.l.b16 %v1331
    %v1860 = vunpack.c.h.b16 %v1331
    %v1861 = vunpack.c.l.b16 %v1332
    %v1862 = vunpack.c.h.b16 %v1332
    %v1863 = vunpack.c.l.b16 %v1333
    %v1864 = vunpack.c.h.b16 %v1333
    %v1865 = vunpack.c.l.b16 %v1334
    %v1866 = vunpack.c.h.b16 %v1334
    %v1867 = vunpack.c.l.b16 %v1335
    %v1868 = vunpack.c.h.b16 %v1335
    %v1869 = vunpack.c.l.b16 %v1336
    %v1870 = vunpack.c.h.b16 %v1336
    %v1871 = vunpack.c.l.b16 %v1337
    %v1872 = vunpack.c.h.b16 %v1337
    %v1873 = vunpack.c.l.b16 %v1338
    %v1874 = vunpack.c.h.b16 %v1338
    %v1875 = vunpack.c.l.b16 %v1339
    %v1876 = vunpack.c.h.b16 %v1339
    %v1877 = vunpack.c.l.b16 %v1340
    %v1878 = vunpack.c.h.b16 %v1340
    %v1879 = vunpack.c.l.b16 %v1341
    %v1880 = vunpack.c.h.b16 %v1341
    %v1881 = vunpack.c.l.b16 %v1342
    %v1882 = vunpack.c.h.b16 %v1342
    %v1883 = vunpack.c.l.b16 %v1343
    %v1884 = vunpack.c.h.b16 %v1343
    %v1885 = vunpack.c.l.b16 %v1344
    %v1886 = vunpack.c.h.b16 %v1344
    %v1887 = vunpack.c.l.b16 %v1345
    %v1888 = vunpack.c.h.b16 %v1345
    %v1889 = vunpack.c.l.b16 %v1346
    %v1890 = vunpack.c.h.b16 %v1346
    %v1891 = vunpack.c.l.b16 %v1347
    %v1892 = vunpack.c.h.b16 %v1347
    %v1893 = vunpack.c.l.b16 %v1348
    %v1894 = vunpack.c.h.b16 %v1348
    %v1895 = vunpack.c.l.b16 %v1349
    %v1896 = vunpack.c.h.b16 %v1349
    %v1897 = vunpack.c.l.b16 %v1350
    %v1898 = vunpack.c.h.b16 %v1350
    %v1899 = vunpack.c.l.b16 %v1351
    %v1900 = vunpack.c.h.b16 %v1351
    %v1901 = vunpack.c.l.b16 %v1352
    %v1902 = vunpack.c.h.b16 %v1352
    %v1903 = vunpack.c.l.b16 %v1353
    %v1904 = vunpack.c.h.b16 %v1353
    %v1905 = vunpack.c.l.b16 %v1354
    %v1906 = vunpack.c.h.b16 %v1354
    %v1907 = vunpack.c.l.b16 %v1355
    %v1908 = vunpack.c.h.b16 %v1355
    %v1909 = vunpack.c.l.b16 %v1356
    %v1910 = vunpack.c.h.b16 %v1356
    %v1911 = vunpack.c.l.b16 %v1357
    %v1912 = vunpack.c.h.b16 %v1357
    %v1913 = vunpack.c.l.b16 %v1358
    %v1914 = vunpack.c.h.b16 %v1358
    %v1915 = vunpack.c.l.b16 %v1359
    %v1916 = vunpack.c.h.b16 %v1359
    %v1917 = vunpack.c.l.b16 %v1360
    %v1918 = vunpack.c.h.b16 %v1360
    %v1919 = vunpack.c.l.b16 %v1361
    %v1920 = vunpack.c.h.b16 %v1361
    %v1921 = vunpack.c.l.b16 %v1362
    %v1922 = vunpack.c.h.b16 %v1362
    %v1923 = vunpack.c.l.b16 %v1363
    %v1924 = vunpack.c.h.b16 %v1363
    %v1925 = vunpack.c.l.b16 %v1364
    %v1926 = vunpack.c.h.b16 %v1364
    %v1927 = vunpack.c.l.b16 %v1365
    %v1928 = vunpack.c.h.b16 %v1365
    %v1929 = vunpack.c.l.b16 %v1366
    %v1930 = vunpack.c.h.b16 %v1366
    %v1931 = vunpack.c.l.b16 %v1367
    %v1932 = vunpack.c.h.b16 %v1367
    %v1933 = vunpack.c.l.b16 %v1368
    %v1934 = vunpack.c.h.b16 %v1368
    %v1935 = vunpack.c.l.b16 %v1369
    %v1936 = vunpack.c.h.b16 %v1369
    %v1937 = vunpack.c.l.b16 %v1370
    %v1938 = vunpack.c.h.b16 %v1370
    %v1939 = vunpack.c.l.b16 %v1371
    %v1940 = vunpack.c.h.b16 %v1371
    %v1941 = vunpack.c.l.b16 %v1372
    %v1942 = vunpack.c.h.b16 %v1372
    %v1943 = vunpack.c.l.b16 %v1373
    %v1944 = vunpack.c.h.b16 %v1373
    %v1945 = vunpack.c.l.b16 %v1374
    %v1946 = vunpack.c.h.b16 %v1374
    %v1947 = vunpack.c.l.b16 %v1375
    %v1948 = vunpack.c.h.b16 %v1375
    %v1949 = vunpack.c.l.b16 %v1376
    %v1950 = vunpack.c.h.b16 %v1376
    %v1951 = vunpack.c.l.b16 %v1377
    %v1952 = vunpack.c.h.b16 %v1377
    %v1953 = vunpack.c.l.b16 %v1378
    %v1954 = vunpack.c.h.b16 %v1378
    %v1955 = vunpack.c.l.b16 %v1379
    %v1956 = vunpack.c.h.b16 %v1379
    %v1957 = vunpack.c.l.b16 %v1380
    %v1958 = vunpack.c.h.b16 %v1380
    %v1959 = vunpack.c.l.b16 %v1381
    %v1960 = vunpack.c.h.b16 %v1381
    %v1961 = vunpack.c.l.b16 %v1382
    %v1962 = vunpack.c.h.b16 %v1382
    %v1963 = vunpack.c.l.b16 %v1383
    %v1964 = vunpack.c.h.b16 %v1383
    %v1965 = vunpack.c.l.b16 %v1384
    %v1966 = vunpack.c.h.b16 %v1384
    %v1967 = vunpack.c.l.b16 %v1385
    %v1968 = vunpack.c.h.b16 %v1385
    %v1969 = vunpack.c.l.b16 %v1386
    %v1970 = vunpack.c.h.b16 %v1386
    %v1971 = vunpack.c.l.b16 %v1387
    %v1972 = vunpack.c.h.b16 %v1387
    %v1973 = vunpack.c.l.b16 %v1388
    %v1974 = vunpack.c.h.b16 %v1388
    %v1975 = vunpack.c.l.b16 %v1389
    %v1976 = vunpack.c.h.b16 %v1389
    %v1977 = vunpack.c.l.b16 %v1390
    %v1978 = vunpack.c.h.b16 %v1390
    %v1979 = vunpack.c.l.b16 %v1391
    %v1980 = vunpack.c.h.b16 %v1391
    %v1981 = vunpack.c.l.b16 %v1392
    %v1982 = vunpack.c.h.b16 %v1392
    %v1983 = vunpack.c.l.b16 %v1393
    %v1984 = vunpack.c.h.b16 %v1393
    %v1985 = vunpack.c.l.b16 %v1394
    %v1986 = vunpack.c.h.b16 %v1394
    %v1987 = vunpack.c.l.b16 %v1395
    %v1988 = vunpack.c.h.b16 %v1395
    %v1989 = vunpack.c.l.b16 %v1396
    %v1990 = vunpack.c.h.b16 %v1396
    %v1991 = vunpack.c.l.b16 %v1397
    %v1992 = vunpack.c.h.b16 %v1397
    %v1993 = vunpack.c.l.b16 %v1398
    %v1994 = vunpack.c.h.b16 %v1398
    %v1995 = vunpack.c.l.b16 %v1399
    %v1996 = vunpack.c.h.b16 %v1399
    %v1997 = vunpack.c.l.b16 %v1400
    %v1998 = vunpack.c.h.b16 %v1400
    %v1999 = vunpack.c.l.b16 %v1401
    %v2000 = vunpack.c.h.b16 %v1401
    %v2001 = vunpack.c.l.b16 %v1402
    %v2002 = vunpack.c.h.b16 %v1402
    %v2003 = vunpack.c.l.b16 %v1403
    %v2004 = vunpack.c.h.b16 %v1403
    %v2005 = vunpack.c.l.b16 %v1404
    %v2006 = vunpack.c.h.b16 %v1404
    %v2007 = vunpack.c.l.b16 %v1405
    %v2008 = vunpack.c.h.b16 %v1405
    %v2009 = vunpack.c.l.b16 %v1406
    %v2010 = vunpack.c.h.b16 %v1406
    %v2011 = vunpack.c.l.b16 %v1407
    %v2012 = vunpack.c.h.b16 %v1407
    %v2013 = vunpack.c.l.b16 %v1408
    %v2014 = vunpack.c.h.b16 %v1408
    %v2015 = vunpack.c.l.b16 %v1409
    %v2016 = vunpack.c.h.b16 %v1409
    %v2017 = vunpack.c.l.b16 %v1410
    %v2018 = vunpack.c.h.b16 %v1410
    %v2019 = vunpack.c.l.b16 %v1411
    %v2020 = vunpack.c.h.b16 %v1411
    %v2021 = vunpack.c.l.b16 %v1412
    %v2022 = vunpack.c.h.b16 %v1412
    %v2023 = vunpack.c.l.b16 %v1413
    %v2024 = vunpack.c.h.b16 %v1413
    %v2025 = vunpack.c.l.b16 %v1414
    %v2026 = vunpack.c.h.b16 %v1414
    %v2027 = vunpack.c.l.b16 %v1415
    %v2028 = vunpack.c.h.b16 %v1415
    %v2029 = vunpack.c.l.b16 %v1416
    %v2030 = vunpack.c.h.b16 %v1416
    %v2031 = vunpack.c.l.b16 %v1417
    %v2032 = vunpack.c.h.b16 %v1417
    %v2033 = vunpack.c.l.b16 %v1418
    %v2034 = vunpack.c.h.b16 %v1418
    %v2035 = vunpack.c.l.b16 %v1419
    %v2036 = vunpack.c.h.b16 %v1419
    %v2037 = vunpack.c.l.b16 %v1420
    %v2038 = vunpack.c.h.b16 %v1420
    %v2039 = vunpack.c.l.b16 %v1421
    %v2040 = vunpack.c.h.b16 %v1421
    %v2041 = vunpack.c.l.b16 %v1422
    %v2042 = vunpack.c.h.b16 %v1422
    %v2043 = vunpack.c.l.b16 %v1423
    %v2044 = vunpack.c.h.b16 %v1423
    %v2045 = vunpack.c.l.b16 %v1424
    %v2046 = vunpack.c.h.b16 %v1424
    %v2047 = vunpack.c.l.b16 %v1425
    %v2048 = vunpack.c.h.b16 %v1425
    %v2049 = vunpack.c.l.b16 %v1426
    %v2050 = vunpack.c.h.b16 %v1426
    %v2051 = vunpack.c.l.b16 %v1427
    %v2052 = vunpack.c.h.b16 %v1427
    %v2053 = vunpack.c.l.b16 %v1428
    %v2054 = vunpack.c.h.b16 %v1428
    %v2055 = vunpack.c.l.b16 %v1429
    %v2056 = vunpack.c.h.b16 %v1429
    %v2057 = vunpack.c.l.b16 %v1430
    %v2058 = vunpack.c.h.b16 %v1430
    %v2059 = vunpack.c.l.b16 %v1431
    %v2060 = vunpack.c.h.b16 %v1431
    %v2061 = vunpack.c.l.b16 %v1432
    %v2062 = vunpack.c.h.b16 %v1432
    %v2063 = vunpack.c.l.b16 %v1433
    %v2064 = vunpack.c.h.b16 %v1433
    %v2065 = vunpack.c.l.b16 %v1434
    %v2066 = vunpack.c.h.b16 %v1434
    %v2067 = vunpack.c.l.b16 %v1435
    %v2068 = vunpack.c.h.b16 %v1435
    %v2069 = vunpack.c.l.b16 %v1436
    %v2070 = vunpack.c.h.b16 %v1436
    %v2071 = vunpack.c.l.b16 %v1437
    %v2072 = vunpack.c.h.b16 %v1437
    %v2073 = vunpack.c.l.b16 %v1438
    %v2074 = vunpack.c.h.b16 %v1438
    %v2075 = vunpack.c.l.b16 %v1439
    %v2076 = vunpack.c.h.b16 %v1439
    %v2077 = vunpack.c.l.b16 %v1440
    %v2078 = vunpack.c.h.b16 %v1440
    %v2079 = vunpack.c.l.b16 %v1441
    %v2080 = vunpack.c.h.b16 %v1441
    %v2081 = vunpack.c.l.b16 %v1442
    %v2082 = vunpack.c.h.b16 %v1442
    %v2083 = vunpack.c.l.b16 %v1443
    %v2084 = vunpack.c.h.b16 %v1443
    %v2085 = vunpack.c.l.b16 %v1444
    %v2086 = vunpack.c.h.b16 %v1444
    %v2087 = vunpack.c.l.b16 %v1445
    %v2088 = vunpack.c.h.b16 %v1445
    %v2089 = vunpack.c.l.b16 %v1446
    %v2090 = vunpack.c.h.b16 %v1446
    %v2091 = vunpack.c.l.b16 %v1447
    %v2092 = vunpack.c.h.b16 %v1447
    %v2093 = vunpack.c.l.b16 %v1448
    %v2094 = vunpack.c.h.b16 %v1448
    %v2095 = vunpack.c.l.b16 %v1449
    %v2096 = vunpack.c.h.b16 %v1449
    %v2097 = vunpack.c.l.b16 %v1450
    %v2098 = vunpack.c.h.b16 %v1450
    %v2099 = vunpack.c.l.b16 %v1451
    %v2100 = vunpack.c.h.b16 %v1451
    %v2101 = vunpack.c.l.b16 %v1452
    %v2102 = vunpack.c.h.b16 %v1452
    %v2103 = vunpack.c.l.b16 %v1453
    %v2104 = vunpack.c.h.b16 %v1453
    %v2105 = vunpack.c.l.b16 %v1454
    %v2106 = vunpack.c.h.b16 %v1454
    %v2107 = vunpack.c.l.b16 %v1455
    %v2108 = vunpack.c.h.b16 %v1455
    %v2109 = vunpack.c.l.b16 %v1456
    %v2110 = vunpack.c.h.b16 %v1456
    %v2111 = vunpack.c.l.b16 %v1457
    %v2112 = vunpack.c.h.b16 %v1457
    %v2113 = vunpack.c.l.b16 %v1458
    %v2114 = vunpack.c.h.b16 %v1458
    %v2115 = vunpack.c.l.b16 %v1459
    %v2116 = vunpack.c.h.b16 %v1459
    %v2117 = vunpack.c.l.b16 %v1460
    %v2118 = vunpack.c.h.b16 %v1460
    %v2119 = vunpack.c.l.b16 %v1461
    %v2120 = vunpack.c.h.b16 %v1461
    %v2121 = vunpack.c.l.b16 %v1462
    %v2122 = vunpack.c.h.b16 %v1462
    %v2123 = vunpack.c.l.b16 %v1463
    %v2124 = vunpack.c.h.b16 %v1463
    %v2125 = vunpack.c.l.b16 %v1464
    %v2126 = vunpack.c.h.b16 %v1464
    %v2127 = vunpack.c.l.b16 %v1465
    %v2128 = vunpack.c.h.b16 %v1465
    %v2129 = vunpack.c.l.b16 %v1466
    %v2130 = vunpack.c.h.b16 %v1466
    %v2131 = vunpack.c.l.b16 %v1467
    %v2132 = vunpack.c.h.b16 %v1467
    %v2133 = vunpack.c.l.b16 %v1468
    %v2134 = vunpack.c.h.b16 %v1468
    %v2135 = vunpack.c.l.b16 %v1469
    %v2136 = vunpack.c.h.b16 %v1469
    %v2137 = vunpack.c.l.b16 %v1470
    %v2138 = vunpack.c.h.b16 %v1470
    %v2139 = vunpack.c.l.b16 %v1471
    %v2140 = vunpack.c.h.b16 %v1471
    %v2141 = vunpack.c.l.b16 %v1472
    %v2142 = vunpack.c.h.b16 %v1472
    %v2143 = vunpack.c.l.b16 %v1473
    %v2144 = vunpack.c.h.b16 %v1473
    %v2145 = vunpack.c.l.b16 %v1474
    %v2146 = vunpack.c.h.b16 %v1474
    %v2147 = vunpack.c.l.b16 %v1475
    %v2148 = vunpack.c.h.b16 %v1475
    %v2149 = vunpack.c.l.b16 %v1476
    %v2150 = vunpack.c.h.b16 %v1476
    %v2151 = vunpack.c.l.b16 %v1477
    %v2152 = vunpack.c.h.b16 %v1477
    %v2153 = vunpack.c.l.b16 %v1478
    %v2154 = vunpack.c.h.b16 %v1478
    %v2155 = vunpack.c.l.b16 %v1479
    %v2156 = vunpack.c.h.b16 %v1479
    %v2157 = vunpack.c.l.b16 %v1480
    %v2158 = vunpack.c.h.b16 %v1480
    %v2159 = vunpack.c.l.b16 %v1481
    %v2160 = vunpack.c.h.b16 %v1481
    %v2161 = vunpack.c.l.b16 %v1482
    %v2162 = vunpack.c.h.b16 %v1482
    %v2163 = vunpack.c.l.b16 %v1483
    %v2164 = vunpack.c.h.b16 %v1483
    %v2165 = vunpack.c.l.b16 %v1484
    %v2166 = vunpack.c.h.b16 %v1484
    %v2167 = vunpack.c.l.b16 %v1485
    %v2168 = vunpack.c.h.b16 %v1485
    %v2169 = vunpack.c.l.b16 %v1486
    %v2170 = vunpack.c.h.b16 %v1486
    %v2171 = vunpack.c.l.b16 %v1487
    %v2172 = vunpack.c.h.b16 %v1487
    %v2173 = vunpack.c.l.b16 %v1488
    %v2174 = vunpack.c.h.b16 %v1488
    %v2175 = vunpack.c.l.b16 %v1489
    %v2176 = vunpack.c.h.b16 %v1489
    %v2177 = vunpack.c.l.b16 %v1490
    %v2178 = vunpack.c.h.b16 %v1490
    %v2179 = vunpack.c.l.b16 %v1491
    %v2180 = vunpack.c.h.b16 %v1491
    %v2181 = vunpack.c.l.b16 %v1492
    %v2182 = vunpack.c.h.b16 %v1492
    %v2183 = vunpack.c.l.b16 %v1493
    %v2184 = vunpack.c.h.b16 %v1493
    %v2185 = vunpack.c.l.b16 %v1494
    %v2186 = vunpack.c.h.b16 %v1494
    %v2187 = vunpack.c.l.b16 %v1495
    %v2188 = vunpack.c.h.b16 %v1495
    %v2189 = vunpack.c.l.b16 %v1496
    %v2190 = vunpack.c.h.b16 %v1496
    %v2191 = vunpack.c.l.b16 %v1497
    %v2192 = vunpack.c.h.b16 %v1497
    %v2193 = vunpack.c.l.b16 %v1498
    %v2194 = vunpack.c.h.b16 %v1498
    %v2195 = vunpack.c.l.b16 %v1499
    %v2196 = vunpack.c.h.b16 %v1499
    %v2197 = vunpack.c.l.b16 %v1500
    %v2198 = vunpack.c.h.b16 %v1500
    %v2199 = vunpack.c.l.b16 %v1501
    %v2200 = vunpack.c.h.b16 %v1501
    %v2201 = vunpack.c.l.b16 %v1502
    %v2202 = vunpack.c.h.b16 %v1502
    %v2203 = vunpack.c.l.b16 %v1503
    %v2204 = vunpack.c.h.b16 %v1503
    %v2205 = vunpack.c.l.b16 %v1504
    %v2206 = vunpack.c.h.b16 %v1504
    %v2207 = vunpack.c.l.b16 %v1505
    %v2208 = vunpack.c.h.b16 %v1505
    %v2209 = vunpack.c.l.b16 %v1506
    %v2210 = vunpack.c.h.b16 %v1506
    %v2211 = vunpack.c.l.b16 %v1507
    %v2212 = vunpack.c.h.b16 %v1507
    %v2213 = vunpack.c.l.b16 %v1508
    %v2214 = vunpack.c.h.b16 %v1508
    %v2215 = vunpack.c.l.b16 %v1509
    %v2216 = vunpack.c.h.b16 %v1509
    %v2217 = vunpack.c.l.b16 %v1510
    %v2218 = vunpack.c.h.b16 %v1510
    %v2219 = vunpack.c.l.b16 %v1511
    %v2220 = vunpack.c.h.b16 %v1511
    %v2221 = vunpack.c.l.b16 %v1512
    %v2222 = vunpack.c.h.b16 %v1512
    %v2223 = vunpack.c.l.b16 %v1513
    %v2224 = vunpack.c.h.b16 %v1513
    %v2225 = vunpack.c.l.b16 %v1514
    %v2226 = vunpack.c.h.b16 %v1514
    %v2227 = vunpack.c.l.b16 %v1515
    %v2228 = vunpack.c.h.b16 %v1515
    %v2229 = vunpack.c.l.b16 %v1516
    %v2230 = vunpack.c.h.b16 %v1516
    %v2231 = vunpack.c.l.b16 %v1517
    %v2232 = vunpack.c.h.b16 %v1517
    %v2233 = vunpack.c.l.b16 %v1518
    %v2234 = vunpack.c.h.b16 %v1518
    %v2235 = vunpack.c.l.b16 %v1519
    %v2236 = vunpack.c.h.b16 %v1519
    %v2237 = vunpack.c.l.b16 %v1520
    %v2238 = vunpack.c.h.b16 %v1520
    %v2239 = vunpack.c.l.b16 %v1521
    %v2240 = vunpack.c.h.b16 %v1521
    %v2241 = vunpack.c.l.b16 %v1522
    %v2242 = vunpack.c.h.b16 %v1522
    %v2243 = vunpack.c.l.b16 %v1523
    %v2244 = vunpack.c.h.b16 %v1523
    %v2245 = vunpack.c.l.b16 %v1524
    %v2246 = vunpack.c.h.b16 %v1524
    %v2247 = vunpack.c.l.b16 %v1525
    %v2248 = vunpack.c.h.b16 %v1525
    %v2249 = vunpack.c.l.b16 %v1526
    %v2250 = vunpack.c.h.b16 %v1526
    %v2251 = vunpack.c.l.b16 %v1527
    %v2252 = vunpack.c.h.b16 %v1527
    %v2253 = vunpack.c.l.b16 %v1528
    %v2254 = vunpack.c.h.b16 %v1528
    %v2255 = vunpack.c.l.b16 %v1529
    %v2256 = vunpack.c.h.b16 %v1529
    %v2257 = vunpack.c.l.b16 %v1530
    %v2258 = vunpack.c.h.b16 %v1530
    %v2259 = vunpack.c.l.b16 %v1531
    %v2260 = vunpack.c.h.b16 %v1531
    %v2261 = vunpack.c.l.b16 %v1532
    %v2262 = vunpack.c.h.b16 %v1532
    %v2263 = vunpack.c.l.b16 %v1533
    %v2264 = vunpack.c.h.b16 %v1533
    %v2265 = vunpack.c.l.b16 %v1534
    %v2266 = vunpack.c.h.b16 %v1534
    %v2267 = vunpack.c.l.b16 %v1535
    %v2268 = vunpack.c.h.b16 %v1535
    %v2269 = vunpack.c.l.b16 %v1536
    %v2270 = vunpack.c.h.b16 %v1536
    %v2271 = vunpack.c.l.b16 %v1537
    %v2272 = vunpack.c.h.b16 %v1537
    %v2273 = vunpack.c.l.b16 %v1538
    %v2274 = vunpack.c.h.b16 %v1538
    %v2275 = vunpack.c.l.b16 %v1539
    %v2276 = vunpack.c.h.b16 %v1539
    %v2277 = vunpack.c.l.b16 %v1540
    %v2278 = vunpack.c.h.b16 %v1540
    %v2279 = vunpack.c.l.b16 %v1541
    %v2280 = vunpack.c.h.b16 %v1541
    %v2281 = vunpack.c.l.b16 %v1542
    %v2282 = vunpack.c.h.b16 %v1542
    %v2283 = vunpack.c.l.b16 %v1543
    %v2284 = vunpack.c.h.b16 %v1543
    %v2285 = vunpack.c.l.b16 %v1544
    %v2286 = vunpack.c.h.b16 %v1544
    %v2287 = vunpack.c.l.b16 %v1545
    %v2288 = vunpack.c.h.b16 %v1545
    %v2289 = vunpack.c.l.b16 %v1546
    %v2290 = vunpack.c.h.b16 %v1546
    %v2291 = vunpack.c.l.b16 %v1547
    %v2292 = vunpack.c.h.b16 %v1547
    %v2293 = vunpack.c.l.b16 %v1548
    %v2294 = vunpack.c.h.b16 %v1548
    %v2295 = vunpack.c.l.b16 %v1549
    %v2296 = vunpack.c.h.b16 %v1549
    %v2297 = vunpack.c.l.b16 %v1550
    %v2298 = vunpack.c.h.b16 %v1550
    %v2299 = vunpack.c.l.b16 %v1551
    %v2300 = vunpack.c.h.b16 %v1551
    %v2301 = vunpack.c.l.b16 %v1552
    %v2302 = vunpack.c.h.b16 %v1552
    %v2303 = vunpack.c.l.b16 %v1553
    %v2304 = vunpack.c.h.b16 %v1553
    %v2305 = vunpack.c.l.b16 %v1554
    %v2306 = vunpack.c.h.b16 %v1554
    %v2307 = vunpack.c.l.b16 %v1555
    %v2308 = vunpack.c.h.b16 %v1555
    %v2309 = vunpack.c.l.b16 %v1556
    %v2310 = vunpack.c.h.b16 %v1556
    %v2311 = vunpack.c.l.b16 %v1557
    %v2312 = vunpack.c.h.b16 %v1557
    %v2313 = vunpack.c.l.b16 %v1558
    %v2314 = vunpack.c.h.b16 %v1558
    %v2315 = vunpack.c.l.b16 %v1559
    %v2316 = vunpack.c.h.b16 %v1559
    %v2317 = vunpack.c.l.b16 %v1560
    %v2318 = vunpack.c.h.b16 %v1560
    %v2319 = vunpack.c.l.b16 %v1561
    %v2320 = vunpack.c.h.b16 %v1561
    %v2321 = vunpack.c.l.b16 %v1562
    %v2322 = vunpack.c.h.b16 %v1562
    %v2323 = vunpack.c.l.b16 %v1563
    %v2324 = vunpack.c.h.b16 %v1563
    %v2325 = vunpack.c.l.b16 %v1564
    %v2326 = vunpack.c.h.b16 %v1564
    %v2327 = vunpack.c.l.b16 %v1565
    %v2328 = vunpack.c.h.b16 %v1565
    %v2329 = vunpack.c.l.b16 %v1566
    %v2330 = vunpack.c.h.b16 %v1566
    %v2331 = vunpack.c.l.b16 %v1567
    %v2332 = vunpack.c.h.b16 %v1567
    %v2333 = vunpack.c.l.b16 %v1568
    %v2334 = vunpack.c.h.b16 %v1568
    %v2335 = vunpack.c.l.b16 %v1569
    %v2336 = vunpack.c.h.b16 %v1569
    %v2337 = vunpack.c.l.b16 %v1570
    %v2338 = vunpack.c.h.b16 %v1570
    %v2339 = vunpack.c.l.b16 %v1571
    %v2340 = vunpack.c.h.b16 %v1571
    %v2341 = vunpack.c.l.b16 %v1572
    %v2342 = vunpack.c.h.b16 %v1572
    %v2343 = vunpack.c.l.b16 %v1573
    %v2344 = vunpack.c.h.b16 %v1573
    %v2345 = vunpack.c.l.b16 %v1574
    %v2346 = vunpack.c.h.b16 %v1574
    %v2347 = vunpack.c.l.b16 %v1575
    %v2348 = vunpack.c.h.b16 %v1575
    %v2349 = vunpack.c.l.b16 %v1576
    %v2350 = vunpack.c.h.b16 %v1576
    %v2351 = vunpack.c.l.b16 %v1577
    %v2352 = vunpack.c.h.b16 %v1577
    %v2353 = vunpack.c.l.b16 %v1578
    %v2354 = vunpack.c.h.b16 %v1578
    %v2355 = vunpack.c.l.b16 %v1579
    %v2356 = vunpack.c.h.b16 %v1579
    %v2357 = vunpack.c.l.b16 %v1580
    %v2358 = vunpack.c.h.b16 %v1580
    %v2359 = vpack.c.b16 %v1851, %v1847
    %v2360 = vpack.c.b16 %v1852, %v1848
    %v2361 = vpack.c.b16 %v1853, %v1849
    %v2362 = vpack.c.b16 %v1854, %v1850
    %v2363 = vpack.c.b16 %v1859, %v1855
    %v2364 = vpack.c.b16 %v1860, %v1856
    %v2365 = vpack.c.b16 %v1861, %v1857
    %v2366 = vpack.c.b16 %v1862, %v1858
    %v2367 = vpack.c.b16 %v1867, %v1863
    %v2368 = vpack.c.b16 %v1868, %v1864
    %v2369 = vpack.c.b16 %v1869, %v1865
    %v2370 = vpack.c.b16 %v1870, %v1866
    %v2371 = vpack.c.b16 %v1875, %v1871
    %v2372 = vpack.c.b16 %v1876, %v1872
    %v2373 = vpack.c.b16 %v1877, %v1873
    %v2374 = vpack.c.b16 %v1878, %v1874
    %v2375 = vpack.c.b16 %v1883, %v1879
    %v2376 = vpack.c.b16 %v1884, %v1880
    %v2377 = vpack.c.b16 %v1885, %v1881
    %v2378 = vpack.c.b16 %v1886, %v1882
    %v2379 = vpack.c.b16 %v1891, %v1887
    %v2380 = vpack.c.b16 %v1892, %v1888
    %v2381 = vpack.c.b16 %v1893, %v1889
    %v2382 = vpack.c.b16 %v1894, %v1890
    %v2383 = vpack.c.b16 %v1899, %v1895
    %v2384 = vpack.c.b16 %v1900, %v1896
    %v2385 = vpack.c.b16 %v1901, %v1897
    %v2386 = vpack.c.b16 %v1902, %v1898
    %v2387 = vpack.c.b16 %v1907, %v1903
    %v2388 = vpack.c.b16 %v1908, %v1904
    %v2389 = vpack.c.b16 %v1909, %v1905
    %v2390 = vpack.c.b16 %v1910, %v1906
    %v2391 = vpack.c.b16 %v1915, %v1911
    %v2392 = vpack.c.b16 %v1916, %v1912
    %v2393 = vpack.c.b16 %v1917, %v1913
    %v2394 = vpack.c.b16 %v1918, %v1914
    %v2395 = vpack.c.b16 %v1923, %v1919
    %v2396 = vpack.c.b16 %v1924, %v1920
    %v2397 = vpack.c.b16 %v1925, %v1921
    %v2398 = vpack.c.b16 %v1926, %v1922
    %v2399 = vpack.c.b16 %v1931, %v1927
    %v2400 = vpack.c.b16 %v1932, %v1928
    %v2401 = vpack.c.b16 %v1933, %v1929
    %v2402 = vpack.c.b16 %v1934, %v1930
    %v2403 = vpack.c.b16 %v1939, %v1935
    %v2404 = vpack.c.b16 %v1940, %v1936
    %v2405 = vpack.c.b16 %v1941, %v1937
    %v2406 = vpack.c.b16 %v1942, %v1938
    %v2407 = vpack.c.b16 %v1947, %v1943
    %v2408 = vpack.c.b16 %v1948, %v1944
    %v2409 = vpack.c.b16 %v1949, %v1945
    %v2410 = vpack.c.b16 %v1950, %v1946
    %v2411 = vpack.c.b16 %v1955, %v1951
    %v2412 = vpack.c.b16 %v1956, %v1952
    %v2413 = vpack.c.b16 %v1957, %v1953
    %v2414 = vpack.c.b16 %v1958, %v1954
    %v2415 = vpack.c.b16 %v1963, %v1959
    %v2416 = vpack.c.b16 %v1964, %v1960
    %v2417 = vpack.c.b16 %v1965, %v1961
    %v2418 = vpack.c.b16 %v1966, %v1962
    %v2419 = vpack.c.b16 %v1971, %v1967
    %v2420 = vpack.c.b16 %v1972, %v1968
    %v2421 = vpack.c.b16 %v1973, %v1969
    %v2422 = vpack.c.b16 %v1974, %v1970
    %v2423 = vpack.c.b16 %v1979, %v1975
    %v2424 = vpack.c.b16 %v1980, %v1976
    %v2425 = vpack.c.b16 %v1981, %v1977
    %v2426 = vpack.c.b16 %v1982, %v1978
    %v2427 = vpack.c.b16 %v1987, %v1983
    %v2428 = vpack.c.b16 %v1988, %v1984
    %v2429 = vpack.c.b16 %v1989, %v1985
    %v2430 = vpack.c.b16 %v1990, %v1986
    %v2431 = vpack.c.b16 %v1995, %v1991
    %v2432 = vpack.c.b16 %v1996, %v1992
    %v2433 = vpack.c.b16 %v1997, %v1993
    %v2434 = vpack.c.b16 %v1998, %v1994
    %v2435 = vpack.c.b16 %v2003, %v1999
    %v2436 = vpack.c.b16 %v2004, %v2000
    %v2437 = vpack.c.b16 %v2005, %v2001
    %v2438 = vpack.c.b16 %v2006, %v2002
    %v2439 = vpack.c.b16 %v2011, %v2007
    %v2440 = vpack.c.b16 %v2012, %v2008
    %v2441 = vpack.c.b16 %v2013, %v2009
    %v2442 = vpack.c.b16 %v2014, %v2010
    %v2443 = vpack.c.b16 %v2019, %v2015
    %v2444 = vpack.c.b16 %v2020, %v2016
    %v2445 = vpack.c.b16 %v2021, %v2017
    %v2446 = vpack.c.b16 %v2022, %v2018
    %v2447 = vpack.c.b16 %v2027, %v2023
    %v2448 = vpack.c.b16 %v2028, %v2024
    %v2449 = vpack.c.b16 %v2029, %v2025
    %v2450 = vpack.c.b16 %v2030, %v2026
    %v2451 = vpack.c.b16 %v2035, %v2031
    %v2452 = vpack.c.b16 %v2036, %v2032
    %v2453 = vpack.c.b16 %v2037, %v2033
    %v2454 = vpack.c.b16 %v2038, %v2034
    %v2455 = vpack.c.b16 %v2043, %v2039
    %v2456 = vpack.c.b16 %v2044, %v2040
    %v2457 = vpack.c.b16 %v2045, %v2041
    %v2458 = vpack.c.b16 %v2046, %v2042
    %v2459 = vpack.c.b16 %v2051, %v2047
    %v2460 = vpack.c.b16 %v2052, %v2048
    %v2461 = vpack.c.b16 %v2053, %v2049
    %v2462 = vpack.c.b16 %v2054, %v2050
    %v2463 = vpack.c.b16 %v2059, %v2055
    %v2464 = vpack.c.b16 %v2060, %v2056
    %v2465 = vpack.c.b16 %v2061, %v2057
    %v2466 = vpack.c.b16 %v2062, %v2058
    %v2467 = vpack.c.b16 %v2067, %v2063
    %v2468 = vpack.c.b16 %v2068, %v2064
    %v2469 = vpack.c.b16 %v2069, %v2065
    %v2470 = vpack.c.b16 %v2070, %v2066
    %v2471 = vpack.c.b16 %v2075, %v2071
    %v2472 = vpack.c.b16 %v2076, %v2072
    %v2473 = vpack.c.b16 %v2077, %v2073
    %v2474 = vpack.c.b16 %v2078, %v2074
    %v2475 = vpack.c.b16 %v2083, %v2079
    %v2476 = vpack.c.b16 %v2084, %v2080
    %v2477 = vpack.c.b16 %v2085, %v2081
    %v2478 = vpack.c.b16 %v2086, %v2082
    %v2479 = vpack.c.b16 %v2091, %v2087
    %v2480 = vpack.c.b16 %v2092, %v2088
    %v2481 = vpack.c.b16 %v2093, %v2089
    %v2482 = vpack.c.b16 %v2094, %v2090
    %v2483 = vpack.c.b16 %v2099, %v2095
    %v2484 = vpack.c.b16 %v2100, %v2096
    %v2485 = vpack.c.b16 %v2101, %v2097
    %v2486 = vpack.c.b16 %v2102, %v2098
    %v2487 = vpack.c.b16 %v2107, %v2103
    %v2488 = vpack.c.b16 %v2108, %v2104
    %v2489 = vpack.c.b16 %v2109, %v2105
    %v2490 = vpack.c.b16 %v2110, %v2106
    %v2491 = vpack.c.b16 %v2115, %v2111
    %v2492 = vpack.c.b16 %v2116, %v2112
    %v2493 = vpack.c.b16 %v2117, %v2113
    %v2494 = vpack.c.b16 %v2118, %v2114
    %v2495 = vpack.c.b16 %v2123, %v2119
    %v2496 = vpack.c.b16 %v2124, %v2120
    %v2497 = vpack.c.b16 %v2125, %v2121
    %v2498 = vpack.c.b16 %v2126, %v2122
    %v2499 = vpack.c.b16 %v2131, %v2127
    %v2500 = vpack.c.b16 %v2132, %v2128
    %v2501 = vpack.c.b16 %v2133, %v2129
    %v2502 = vpack.c.b16 %v2134, %v2130
    %v2503 = vpack.c.b16 %v2139, %v2135
    %v2504 = vpack.c.b16 %v2140, %v2136
    %v2505 = vpack.c.b16 %v2141, %v2137
    %v2506 = vpack.c.b16 %v2142, %v2138
    %v2507 = vpack.c.b16 %v2147, %v2143
    %v2508 = vpack.c.b16 %v2148, %v2144
    %v2509 = vpack.c.b16 %v2149, %v2145
    %v2510 = vpack.c.b16 %v2150, %v2146
    %v2511 = vpack.c.b16 %v2155, %v2151
    %v2512 = vpack.c.b16 %v2156, %v2152
    %v2513 = vpack.c.b16 %v2157, %v2153
    %v2514 = vpack.c.b16 %v2158, %v2154
    %v2515 = vpack.c.b16 %v2163, %v2159
    %v2516 = vpack.c.b16 %v2164, %v2160
    %v2517 = vpack.c.b16 %v2165, %v2161
    %v2518 = vpack.c.b16 %v2166, %v2162
    %v2519 = vpack.c.b16 %v2171, %v2167
    %v2520 = vpack.c.b16 %v2172, %v2168
    %v2521 = vpack.c.b16 %v2173, %v2169
    %v2522 = vpack.c.b16 %v2174, %v2170
    %v2523 = vpack.c.b16 %v2179, %v2175
    %v2524 = vpack.c.b16 %v2180, %v2176
    %v2525 = vpack.c.b16 %v2181, %v2177
    %v2526 = vpack.c.b16 %v2182, %v2178
    %v2527 = vpack.c.b16 %v2187, %v2183
    %v2528 = vpack.c.b16 %v2188, %v2184
    %v2529 = vpack.c.b16 %v2189, %v2185
    %v2530 = vpack.c.b16 %v2190, %v2186
    %v2531 = vpack.c.b16 %v2195, %v2191
    %v2532 = vpack.c.b16 %v2196, %v2192
    %v2533 = vpack.c.b16 %v2197, %v2193
    %v2534 = vpack.c.b16 %v2198, %v2194
    %v2535 = vpack.c.b16 %v2203, %v2199
    %v2536 = vpack.c.b16 %v2204, %v2200
    %v2537 = vpack.c.b16 %v2205, %v2201
    %v2538 = vpack.c.b16 %v2206, %v2202
    %v2539 = vpack.c.b16 %v2211, %v2207
    %v2540 = vpack.c.b16 %v2212, %v2208
    %v2541 = vpack.c.b16 %v2213, %v2209
    %v2542 = vpack.c.b16 %v2214, %v2210
    %v2543 = vpack.c.b16 %v2219, %v2215
    %v2544 = vpack.c.b16 %v2220, %v2216
    %v2545 = vpack.c.b16 %v2221, %v2217
    %v2546 = vpack.c.b16 %v2222, %v2218
    %v2547 = vpack.c.b16 %v2227, %v2223
    %v2548 = vpack.c.b16 %v2228, %v2224
    %v2549 = vpack.c.b16 %v2229, %v2225
    %v2550 = vpack.c.b16 %v2230, %v2226
    %v2551 = vpack.c.b16 %v2235, %v2231
    %v2552 = vpack.c.b16 %v2236, %v2232
    %v2553 = vpack.c.b16 %v2237, %v2233
    %v2554 = vpack.c.b16 %v2238, %v2234
    %v2555 = vpack.c.b16 %v2243, %v2239
    %v2556 = vpack.c.b16 %v2244, %v2240
    %v2557 = vpack.c.b16 %v2245, %v2241
    %v2558 = vpack.c.b16 %v2246, %v2242
    %v2559 = vpack.c.b16 %v2251, %v2247
    %v2560 = vpack.c.b16 %v2252, %v2248
    %v2561 = vpack.c.b16 %v2253, %v2249
    %v2562 = vpack.c.b16 %v2254, %v2250
    %v2563 = vpack.c.b16 %v2259, %v2255
    %v2564 = vpack.c.b16 %v2260, %v2256
    %v2565 = vpack.c.b16 %v2261, %v2257
    %v2566 = vpack.c.b16 %v2262, %v2258
    %v2567 = vpack.c.b16 %v2267, %v2263
    %v2568 = vpack.c.b16 %v2268, %v2264
    %v2569 = vpack.c.b16 %v2269, %v2265
    %v2570 = vpack.c.b16 %v2270, %v2266
    %v2571 = vpack.c.b16 %v2275, %v2271
    %v2572 = vpack.c.b16 %v2276, %v2272
    %v2573 = vpack.c.b16 %v2277, %v2273
    %v2574 = vpack.c.b16 %v2278, %v2274
    %v2575 = vpack.c.b16 %v2283, %v2279
    %v2576 = vpack.c.b16 %v2284, %v2280
    %v2577 = vpack.c.b16 %v2285, %v2281
    %v2578 = vpack.c.b16 %v2286, %v2282
    %v2579 = vpack.c.b16 %v2291, %v2287
    %v2580 = vpack.c.b16 %v2292, %v2288
    %v2581 = vpack.c.b16 %v2293, %v2289
    %v2582 = vpack.c.b16 %v2294, %v2290
    %v2583 = vpack.c.b16 %v2299, %v2295
    %v2584 = vpack.c.b16 %v2300, %v2296
    %v2585 = vpack.c.b16 %v2301, %v2297
    %v2586 = vpack.c.b16 %v2302, %v2298
    %v2587 = vpack.c.b16 %v2307, %v2303
    %v2588 = vpack.c.b16 %v2308, %v2304
    %v2589 = vpack.c.b16 %v2309, %v2305
    %v2590 = vpack.c.b16 %v2310, %v2306
    %v2591 = vpack.c.b16 %v2315, %v2311
    %v2592 = vpack.c.b16 %v2316, %v2312
    %v2593 = vpack.c.b16 %v2317, %v2313
    %v2594 = vpack.c.b16 %v2318, %v2314
    %v2595 = vpack.c.b16 %v2323, %v2319
    %v2596 = vpack.c.b16 %v2324, %v2320
    %v2597 = vpack.c.b16 %v2325, %v2321
    %v2598 = vpack.c.b16 %v2326, %v2322
    %v2599 = vpack.c.b16 %v2331, %v2327
    %v2600 = vpack.c.b16 %v2332, %v2328
    %v2601 = vpack.c.b16 %v2333, %v2329
    %v2602 = vpack.c.b16 %v2334, %v2330
    %v2603 = vpack.c.b16 %v2339, %v2335
    %v2604 = vpack.c.b16 %v2340, %v2336
    %v2605 = vpack.c.b16 %v2341, %v2337
    %v2606 = vpack.c.b16 %v2342, %v2338
    %v2607 = vpack.c.b16 %v2347, %v2343
    %v2608 = vpack.c.b16 %v2348, %v2344
    %v2609 = vpack.c.b16 %v2349, %v2345
    %v2610 = vpack.c.b16 %v2350, %v2346
    %v2611 = vpack.c.b16 %v2355, %v2351
    %v2612 = vpack.c.b16 %v2356, %v2352
    %v2613 = vpack.c.b16 %v2357, %v2353
    %v2614 = vpack.c.b16 %v2358, %v2354
    %2871 = vmatpush.bf16.msra.mxu0 %v2387
    %2872 = vmatpush.bf16.msra.mxu0 %v2383
    %2873 = vmatpush.bf16.msra.mxu0 %v2379
    %2874 = vmatpush.bf16.msra.mxu0 %v2375
    %2875 = vmatpush.bf16.msra.mxu0 %v2371
    %2876 = vmatpush.bf16.msra.mxu0 %v2367
    %2877 = vmatpush.bf16.msra.mxu0 %v2363
    %2878 = vmatpush.bf16.msra.mxu0 %v2359
    %2879 = vmatmul.bf16.gmra.mxu0 %v1317
    %v2880 = vpop.f32.mrf.mxu0
    %v2881 = vadd.f32 %v1583, %v2880
    %v2882 = vpop.f32.mrf.mxu0
    %2883 = vdwg.mxu0
    %2884 = vmatpush.bf16.msra.mxu0 %v2419
    %2885 = vmatpush.bf16.msra.mxu0 %v2415
    %2886 = vmatpush.bf16.msra.mxu0 %v2411
    %2887 = vmatpush.bf16.msra.mxu0 %v2407
    %2888 = vmatpush.bf16.msra.mxu0 %v2403
    %2889 = vmatpush.bf16.msra.mxu0 %v2399
    %2890 = vmatpush.bf16.msra.mxu0 %v2395
    %2891 = vmatpush.bf16.msra.mxu0 %v2391
    %2892 = vmatmul.bf16.gmra.mxu0 %v1318
    %v2893 = vpop.f32.mrf.mxu0
    %v2894 = vadd.f32 %v2881, %v2893
    %v2895 = vpop.f32.mrf.mxu0
    %2896 = vdwg.mxu0
    %2897 = vmatpush.bf16.msra.mxu0 %v2451
    %2898 = vmatpush.bf16.msra.mxu0 %v2447
    %2899 = vmatpush.bf16.msra.mxu0 %v2443
    %2900 = vmatpush.bf16.msra.mxu0 %v2439
    %2901 = vmatpush.bf16.msra.mxu0 %v2435
    %2902 = vmatpush.bf16.msra.mxu0 %v2431
    %2903 = vmatpush.bf16.msra.mxu0 %v2427
    %2904 = vmatpush.bf16.msra.mxu0 %v2423
    %2905 = vmatmul.bf16.gmra.mxu0 %v1319
    %v2906 = vpop.f32.mrf.mxu0
    %v2907 = vadd.f32 %v2894, %v2906
    %v2908 = vpop.f32.mrf.mxu0
    %2909 = vdwg.mxu0
    %2910 = vmatpush.bf16.msra.mxu0 %v2483
    %2911 = vmatpush.bf16.msra.mxu0 %v2479
    %2912 = vmatpush.bf16.msra.mxu0 %v2475
    %2913 = vmatpush.bf16.msra.mxu0 %v2471
    %2914 = vmatpush.bf16.msra.mxu0 %v2467
    %2915 = vmatpush.bf16.msra.mxu0 %v2463
    %2916 = vmatpush.bf16.msra.mxu0 %v2459
    %2917 = vmatpush.bf16.msra.mxu0 %v2455
    %2918 = vmatmul.bf16.gmra.mxu0 %v1320
    %v2919 = vpop.f32.mrf.mxu0
    %v2920 = vadd.f32 %v2907, %v2919
    %v2921 = vpop.f32.mrf.mxu0
    %2922 = vdwg.mxu0
    %2923 = vmatpush.bf16.msra.mxu0 %v2515
    %2924 = vmatpush.bf16.msra.mxu0 %v2511
    %2925 = vmatpush.bf16.msra.mxu0 %v2507
    %2926 = vmatpush.bf16.msra.mxu0 %v2503
    %2927 = vmatpush.bf16.msra.mxu0 %v2499
    %2928 = vmatpush.bf16.msra.mxu0 %v2495
    %2929 = vmatpush.bf16.msra.mxu0 %v2491
    %2930 = vmatpush.bf16.msra.mxu0 %v2487
    %2931 = vmatmul.bf16.gmra.mxu0 %v1321
    %v2932 = vpop.f32.mrf.mxu0
    %v2933 = vadd.f32 %v2920, %v2932
    %v2934 = vpop.f32.mrf.mxu0
    %2935 = vdwg.mxu0
    %2936 = vmatpush.bf16.msra.mxu0 %v2547
    %2937 = vmatpush.bf16.msra.mxu0 %v2543
    %2938 = vmatpush.bf16.msra.mxu0 %v2539
    %2939 = vmatpush.bf16.msra.mxu0 %v2535
    %2940 = vmatpush.bf16.msra.mxu0 %v2531
    %2941 = vmatpush.bf16.msra.mxu0 %v2527
    %2942 = vmatpush.bf16.msra.mxu0 %v2523
    %2943 = vmatpush.bf16.msra.mxu0 %v2519
    %2944 = vmatmul.bf16.gmra.mxu0 %v1322
    %v2945 = vpop.f32.mrf.mxu0
    %v2946 = vadd.f32 %v2933, %v2945
    %v2947 = vpop.f32.mrf.mxu0
    %2948 = vdwg.mxu0
    %2949 = vmatpush.bf16.msra.mxu0 %v2579
    %2950 = vmatpush.bf16.msra.mxu0 %v2575
    %2951 = vmatpush.bf16.msra.mxu0 %v2571
    %2952 = vmatpush.bf16.msra.mxu0 %v2567
    %2953 = vmatpush.bf16.msra.mxu0 %v2563
    %2954 = vmatpush.bf16.msra.mxu0 %v2559
    %2955 = vmatpush.bf16.msra.mxu0 %v2555
    %2956 = vmatpush.bf16.msra.mxu0 %v2551
    %2957 = vmatmul.bf16.gmra.mxu0 %v1323
    %v2958 = vpop.f32.mrf.mxu0
    %v2959 = vadd.f32 %v2946, %v2958
    %v2960 = vpop.f32.mrf.mxu0
    %2961 = vdwg.mxu0
    %2962 = vmatpush.bf16.msra.mxu0 %v2611
    %2963 = vmatpush.bf16.msra.mxu0 %v2607
    %2964 = vmatpush.bf16.msra.mxu0 %v2603
    %2965 = vmatpush.bf16.msra.mxu0 %v2599
    %2966 = vmatpush.bf16.msra.mxu0 %v2595
    %2967 = vmatpush.bf16.msra.mxu0 %v2591
    %2968 = vmatpush.bf16.msra.mxu0 %v2587
    %2969 = vmatpush.bf16.msra.mxu0 %v2583
    %2970 = vmatmul.bf16.gmra.mxu0 %v1324
    %v2971 = vpop.f32.mrf.mxu0
    %v2972 = vadd.f32 %v2959, %v2971
    %v2973 = vpop.f32.mrf.mxu0
    %2974 = vdwg.mxu0
    %2975 = vmatpush.bf16.msra.mxu0 %v2388
    %2976 = vmatpush.bf16.msra.mxu0 %v2384
    %2977 = vmatpush.bf16.msra.mxu0 %v2380
    %2978 = vmatpush.bf16.msra.mxu0 %v2376
    %2979 = vmatpush.bf16.msra.mxu0 %v2372
    %2980 = vmatpush.bf16.msra.mxu0 %v2368
    %2981 = vmatpush.bf16.msra.mxu0 %v2364
    %2982 = vmatpush.bf16.msra.mxu0 %v2360
    %2983 = vmatmul.bf16.gmra.mxu0 %v1317
    %v2984 = vpop.f32.mrf.mxu0
    %v2985 = vadd.f32 %v1584, %v2984
    %v2986 = vpop.f32.mrf.mxu0
    %2987 = vdwg.mxu0
    %2988 = vmatpush.bf16.msra.mxu0 %v2420
    %2989 = vmatpush.bf16.msra.mxu0 %v2416
    %2990 = vmatpush.bf16.msra.mxu0 %v2412
    %2991 = vmatpush.bf16.msra.mxu0 %v2408
    %2992 = vmatpush.bf16.msra.mxu0 %v2404
    %2993 = vmatpush.bf16.msra.mxu0 %v2400
    %2994 = vmatpush.bf16.msra.mxu0 %v2396
    %2995 = vmatpush.bf16.msra.mxu0 %v2392
    %2996 = vmatmul.bf16.gmra.mxu0 %v1318
    %v2997 = vpop.f32.mrf.mxu0
    %v2998 = vadd.f32 %v2985, %v2997
    %v2999 = vpop.f32.mrf.mxu0
    %3000 = vdwg.mxu0
    %3001 = vmatpush.bf16.msra.mxu0 %v2452
    %3002 = vmatpush.bf16.msra.mxu0 %v2448
    %3003 = vmatpush.bf16.msra.mxu0 %v2444
    %3004 = vmatpush.bf16.msra.mxu0 %v2440
    %3005 = vmatpush.bf16.msra.mxu0 %v2436
    %3006 = vmatpush.bf16.msra.mxu0 %v2432
    %3007 = vmatpush.bf16.msra.mxu0 %v2428
    %3008 = vmatpush.bf16.msra.mxu0 %v2424
    %3009 = vmatmul.bf16.gmra.mxu0 %v1319
    %v3010 = vpop.f32.mrf.mxu0
    %v3011 = vadd.f32 %v2998, %v3010
    %v3012 = vpop.f32.mrf.mxu0
    %3013 = vdwg.mxu0
    %3014 = vmatpush.bf16.msra.mxu0 %v2484
    %3015 = vmatpush.bf16.msra.mxu0 %v2480
    %3016 = vmatpush.bf16.msra.mxu0 %v2476
    %3017 = vmatpush.bf16.msra.mxu0 %v2472
    %3018 = vmatpush.bf16.msra.mxu0 %v2468
    %3019 = vmatpush.bf16.msra.mxu0 %v2464
    %3020 = vmatpush.bf16.msra.mxu0 %v2460
    %3021 = vmatpush.bf16.msra.mxu0 %v2456
    %3022 = vmatmul.bf16.gmra.mxu0 %v1320
    %v3023 = vpop.f32.mrf.mxu0
    %v3024 = vadd.f32 %v3011, %v3023
    %v3025 = vpop.f32.mrf.mxu0
    %3026 = vdwg.mxu0
    %3027 = vmatpush.bf16.msra.mxu0 %v2516
    %3028 = vmatpush.bf16.msra.mxu0 %v2512
    %3029 = vmatpush.bf16.msra.mxu0 %v2508
    %3030 = vmatpush.bf16.msra.mxu0 %v2504
    %3031 = vmatpush.bf16.msra.mxu0 %v2500
    %3032 = vmatpush.bf16.msra.mxu0 %v2496
    %3033 = vmatpush.bf16.msra.mxu0 %v2492
    %3034 = vmatpush.bf16.msra.mxu0 %v2488
    %3035 = vmatmul.bf16.gmra.mxu0 %v1321
    %v3036 = vpop.f32.mrf.mxu0
    %v3037 = vadd.f32 %v3024, %v3036
    %v3038 = vpop.f32.mrf.mxu0
    %3039 = vdwg.mxu0
    %3040 = vmatpush.bf16.msra.mxu0 %v2548
    %3041 = vmatpush.bf16.msra.mxu0 %v2544
    %3042 = vmatpush.bf16.msra.mxu0 %v2540
    %3043 = vmatpush.bf16.msra.mxu0 %v2536
    %3044 = vmatpush.bf16.msra.mxu0 %v2532
    %3045 = vmatpush.bf16.msra.mxu0 %v2528
    %3046 = vmatpush.bf16.msra.mxu0 %v2524
    %3047 = vmatpush.bf16.msra.mxu0 %v2520
    %3048 = vmatmul.bf16.gmra.mxu0 %v1322
    %v3049 = vpop.f32.mrf.mxu0
    %v3050 = vadd.f32 %v3037, %v3049
    %v3051 = vpop.f32.mrf.mxu0
    %3052 = vdwg.mxu0
    %3053 = vmatpush.bf16.msra.mxu0 %v2580
    %3054 = vmatpush.bf16.msra.mxu0 %v2576
    %3055 = vmatpush.bf16.msra.mxu0 %v2572
    %3056 = vmatpush.bf16.msra.mxu0 %v2568
    %3057 = vmatpush.bf16.msra.mxu0 %v2564
    %3058 = vmatpush.bf16.msra.mxu0 %v2560
    %3059 = vmatpush.bf16.msra.mxu0 %v2556
    %3060 = vmatpush.bf16.msra.mxu0 %v2552
    %3061 = vmatmul.bf16.gmra.mxu0 %v1323
    %v3062 = vpop.f32.mrf.mxu0
    %v3063 = vadd.f32 %v3050, %v3062
    %v3064 = vpop.f32.mrf.mxu0
    %3065 = vdwg.mxu0
    %3066 = vmatpush.bf16.msra.mxu0 %v2612
    %3067 = vmatpush.bf16.msra.mxu0 %v2608
    %3068 = vmatpush.bf16.msra.mxu0 %v2604
    %3069 = vmatpush.bf16.msra.mxu0 %v2600
    %3070 = vmatpush.bf16.msra.mxu0 %v2596
    %3071 = vmatpush.bf16.msra.mxu0 %v2592
    %3072 = vmatpush.bf16.msra.mxu0 %v2588
    %3073 = vmatpush.bf16.msra.mxu0 %v2584
    %3074 = vmatmul.bf16.gmra.mxu0 %v1324
    %v3075 = vpop.f32.mrf.mxu0
    %v3076 = vadd.f32 %v3063, %v3075
    %v3077 = vpop.f32.mrf.mxu0
    %3078 = vdwg.mxu0
    %3079 = vmatpush.bf16.msra.mxu0 %v2389
    %3080 = vmatpush.bf16.msra.mxu0 %v2385
    %3081 = vmatpush.bf16.msra.mxu0 %v2381
    %3082 = vmatpush.bf16.msra.mxu0 %v2377
    %3083 = vmatpush.bf16.msra.mxu0 %v2373
    %3084 = vmatpush.bf16.msra.mxu0 %v2369
    %3085 = vmatpush.bf16.msra.mxu0 %v2365
    %3086 = vmatpush.bf16.msra.mxu0 %v2361
    %3087 = vmatmul.bf16.gmra.mxu0 %v1317
    %v3088 = vpop.f32.mrf.mxu0
    %v3089 = vadd.f32 %v1585, %v3088
    %v3090 = vpop.f32.mrf.mxu0
    %3091 = vdwg.mxu0
    %3092 = vmatpush.bf16.msra.mxu0 %v2421
    %3093 = vmatpush.bf16.msra.mxu0 %v2417
    %3094 = vmatpush.bf16.msra.mxu0 %v2413
    %3095 = vmatpush.bf16.msra.mxu0 %v2409
    %3096 = vmatpush.bf16.msra.mxu0 %v2405
    %3097 = vmatpush.bf16.msra.mxu0 %v2401
    %3098 = vmatpush.bf16.msra.mxu0 %v2397
    %3099 = vmatpush.bf16.msra.mxu0 %v2393
    %3100 = vmatmul.bf16.gmra.mxu0 %v1318
    %v3101 = vpop.f32.mrf.mxu0
    %v3102 = vadd.f32 %v3089, %v3101
    %v3103 = vpop.f32.mrf.mxu0
    %3104 = vdwg.mxu0
    %3105 = vmatpush.bf16.msra.mxu0 %v2453
    %3106 = vmatpush.bf16.msra.mxu0 %v2449
    %3107 = vmatpush.bf16.msra.mxu0 %v2445
    %3108 = vmatpush.bf16.msra.mxu0 %v2441
    %3109 = vmatpush.bf16.msra.mxu0 %v2437
    %3110 = vmatpush.bf16.msra.mxu0 %v2433
    %3111 = vmatpush.bf16.msra.mxu0 %v2429
    %3112 = vmatpush.bf16.msra.mxu0 %v2425
    %3113 = vmatmul.bf16.gmra.mxu0 %v1319
    %v3114 = vpop.f32.mrf.mxu0
    %v3115 = vadd.f32 %v3102, %v3114
    %v3116 = vpop.f32.mrf.mxu0
    %3117 = vdwg.mxu0
    %3118 = vmatpush.bf16.msra.mxu0 %v2485
    %3119 = vmatpush.bf16.msra.mxu0 %v2481
    %3120 = vmatpush.bf16.msra.mxu0 %v2477
    %3121 = vmatpush.bf16.msra.mxu0 %v2473
    %3122 = vmatpush.bf16.msra.mxu0 %v2469
    %3123 = vmatpush.bf16.msra.mxu0 %v2465
    %3124 = vmatpush.bf16.msra.mxu0 %v2461
    %3125 = vmatpush.bf16.msra.mxu0 %v2457
    %3126 = vmatmul.bf16.gmra.mxu0 %v1320
    %v3127 = vpop.f32.mrf.mxu0
    %v3128 = vadd.f32 %v3115, %v3127
    %v3129 = vpop.f32.mrf.mxu0
    %3130 = vdwg.mxu0
    %3131 = vmatpush.bf16.msra.mxu0 %v2517
    %3132 = vmatpush.bf16.msra.mxu0 %v2513
    %3133 = vmatpush.bf16.msra.mxu0 %v2509
    %3134 = vmatpush.bf16.msra.mxu0 %v2505
    %3135 = vmatpush.bf16.msra.mxu0 %v2501
    %3136 = vmatpush.bf16.msra.mxu0 %v2497
    %3137 = vmatpush.bf16.msra.mxu0 %v2493
    %3138 = vmatpush.bf16.msra.mxu0 %v2489
    %3139 = vmatmul.bf16.gmra.mxu0 %v1321
    %v3140 = vpop.f32.mrf.mxu0
    %v3141 = vadd.f32 %v3128, %v3140
    %v3142 = vpop.f32.mrf.mxu0
    %3143 = vdwg.mxu0
    %3144 = vmatpush.bf16.msra.mxu0 %v2549
    %3145 = vmatpush.bf16.msra.mxu0 %v2545
    %3146 = vmatpush.bf16.msra.mxu0 %v2541
    %3147 = vmatpush.bf16.msra.mxu0 %v2537
    %3148 = vmatpush.bf16.msra.mxu0 %v2533
    %3149 = vmatpush.bf16.msra.mxu0 %v2529
    %3150 = vmatpush.bf16.msra.mxu0 %v2525
    %3151 = vmatpush.bf16.msra.mxu0 %v2521
    %3152 = vmatmul.bf16.gmra.mxu0 %v1322
    %v3153 = vpop.f32.mrf.mxu0
    %v3154 = vadd.f32 %v3141, %v3153
    %v3155 = vpop.f32.mrf.mxu0
    %3156 = vdwg.mxu0
    %3157 = vmatpush.bf16.msra.mxu0 %v2581
    %3158 = vmatpush.bf16.msra.mxu0 %v2577
    %3159 = vmatpush.bf16.msra.mxu0 %v2573
    %3160 = vmatpush.bf16.msra.mxu0 %v2569
    %3161 = vmatpush.bf16.msra.mxu0 %v2565
    %3162 = vmatpush.bf16.msra.mxu0 %v2561
    %3163 = vmatpush.bf16.msra.mxu0 %v2557
    %3164 = vmatpush.bf16.msra.mxu0 %v2553
    %3165 = vmatmul.bf16.gmra.mxu0 %v1323
    %v3166 = vpop.f32.mrf.mxu0
    %v3167 = vadd.f32 %v3154, %v3166
    %v3168 = vpop.f32.mrf.mxu0
    %3169 = vdwg.mxu0
    %3170 = vmatpush.bf16.msra.mxu0 %v2613
    %3171 = vmatpush.bf16.msra.mxu0 %v2609
    %3172 = vmatpush.bf16.msra.mxu0 %v2605
    %3173 = vmatpush.bf16.msra.mxu0 %v2601
    %3174 = vmatpush.bf16.msra.mxu0 %v2597
    %3175 = vmatpush.bf16.msra.mxu0 %v2593
    %3176 = vmatpush.bf16.msra.mxu0 %v2589
    %3177 = vmatpush.bf16.msra.mxu0 %v2585
    %3178 = vmatmul.bf16.gmra.mxu0 %v1324
    %v3179 = vpop.f32.mrf.mxu0
    %v3180 = vadd.f32 %v3167, %v3179
    %v3181 = vpop.f32.mrf.mxu0
    %3182 = vdwg.mxu0
    %3183 = vmatpush.bf16.msra.mxu0 %v2390
    %3184 = vmatpush.bf16.msra.mxu0 %v2386
    %3185 = vmatpush.bf16.msra.mxu0 %v2382
    %3186 = vmatpush.bf16.msra.mxu0 %v2378
    %3187 = vmatpush.bf16.msra.mxu0 %v2374
    %3188 = vmatpush.bf16.msra.mxu0 %v2370
    %3189 = vmatpush.bf16.msra.mxu0 %v2366
    %3190 = vmatpush.bf16.msra.mxu0 %v2362
    %3191 = vmatmul.bf16.gmra.mxu0 %v1317
    %v3192 = vpop.f32.mrf.mxu0
    %v3193 = vadd.f32 %v1586, %v3192
    %v3194 = vpop.f32.mrf.mxu0
    %3195 = vdwg.mxu0
    %3196 = vmatpush.bf16.msra.mxu0 %v2422
    %3197 = vmatpush.bf16.msra.mxu0 %v2418
    %3198 = vmatpush.bf16.msra.mxu0 %v2414
    %3199 = vmatpush.bf16.msra.mxu0 %v2410
    %3200 = vmatpush.bf16.msra.mxu0 %v2406
    %3201 = vmatpush.bf16.msra.mxu0 %v2402
    %3202 = vmatpush.bf16.msra.mxu0 %v2398
    %3203 = vmatpush.bf16.msra.mxu0 %v2394
    %3204 = vmatmul.bf16.gmra.mxu0 %v1318
    %v3205 = vpop.f32.mrf.mxu0
    %v3206 = vadd.f32 %v3193, %v3205
    %v3207 = vpop.f32.mrf.mxu0
    %3208 = vdwg.mxu0
    %3209 = vmatpush.bf16.msra.mxu0 %v2454
    %3210 = vmatpush.bf16.msra.mxu0 %v2450
    %3211 = vmatpush.bf16.msra.mxu0 %v2446
    %3212 = vmatpush.bf16.msra.mxu0 %v2442
    %3213 = vmatpush.bf16.msra.mxu0 %v2438
    %3214 = vmatpush.bf16.msra.mxu0 %v2434
    %3215 = vmatpush.bf16.msra.mxu0 %v2430
    %3216 = vmatpush.bf16.msra.mxu0 %v2426
    %3217 = vmatmul.bf16.gmra.mxu0 %v1319
    %v3218 = vpop.f32.mrf.mxu0
    %v3219 = vadd.f32 %v3206, %v3218
    %v3220 = vpop.f32.mrf.mxu0
    %3221 = vdwg.mxu0
    %3222 = vmatpush.bf16.msra.mxu0 %v2486
    %3223 = vmatpush.bf16.msra.mxu0 %v2482
    %3224 = vmatpush.bf16.msra.mxu0 %v2478
    %3225 = vmatpush.bf16.msra.mxu0 %v2474
    %3226 = vmatpush.bf16.msra.mxu0 %v2470
    %3227 = vmatpush.bf16.msra.mxu0 %v2466
    %3228 = vmatpush.bf16.msra.mxu0 %v2462
    %3229 = vmatpush.bf16.msra.mxu0 %v2458
    %3230 = vmatmul.bf16.gmra.mxu0 %v1320
    %v3231 = vpop.f32.mrf.mxu0
    %v3232 = vadd.f32 %v3219, %v3231
    %v3233 = vpop.f32.mrf.mxu0
    %3234 = vdwg.mxu0
    %3235 = vmatpush.bf16.msra.mxu0 %v2518
    %3236 = vmatpush.bf16.msra.mxu0 %v2514
    %3237 = vmatpush.bf16.msra.mxu0 %v2510
    %3238 = vmatpush.bf16.msra.mxu0 %v2506
    %3239 = vmatpush.bf16.msra.mxu0 %v2502
    %3240 = vmatpush.bf16.msra.mxu0 %v2498
    %3241 = vmatpush.bf16.msra.mxu0 %v2494
    %3242 = vmatpush.bf16.msra.mxu0 %v2490
    %3243 = vmatmul.bf16.gmra.mxu0 %v1321
    %v3244 = vpop.f32.mrf.mxu0
    %v3245 = vadd.f32 %v3232, %v3244
    %v3246 = vpop.f32.mrf.mxu0
    %3247 = vdwg.mxu0
    %3248 = vmatpush.bf16.msra.mxu0 %v2550
    %3249 = vmatpush.bf16.msra.mxu0 %v2546
    %3250 = vmatpush.bf16.msra.mxu0 %v2542
    %3251 = vmatpush.bf16.msra.mxu0 %v2538
    %3252 = vmatpush.bf16.msra.mxu0 %v2534
    %3253 = vmatpush.bf16.msra.mxu0 %v2530
    %3254 = vmatpush.bf16.msra.mxu0 %v2526
    %3255 = vmatpush.bf16.msra.mxu0 %v2522
    %3256 = vmatmul.bf16.gmra.mxu0 %v1322
    %v3257 = vpop.f32.mrf.mxu0
    %v3258 = vadd.f32 %v3245, %v3257
    %v3259 = vpop.f32.mrf.mxu0
    %3260 = vdwg.mxu0
    %3261 = vmatpush.bf16.msra.mxu0 %v2582
    %3262 = vmatpush.bf16.msra.mxu0 %v2578
    %3263 = vmatpush.bf16.msra.mxu0 %v2574
    %3264 = vmatpush.bf16.msra.mxu0 %v2570
    %3265 = vmatpush.bf16.msra.mxu0 %v2566
    %3266 = vmatpush.bf16.msra.mxu0 %v2562
    %3267 = vmatpush.bf16.msra.mxu0 %v2558
    %3268 = vmatpush.bf16.msra.mxu0 %v2554
    %3269 = vmatmul.bf16.gmra.mxu0 %v1323
    %v3270 = vpop.f32.mrf.mxu0
    %v3271 = vadd.f32 %v3258, %v3270
    %v3272 = vpop.f32.mrf.mxu0
    %3273 = vdwg.mxu0
    %3274 = vmatpush.bf16.msra.mxu0 %v2614
    %3275 = vmatpush.bf16.msra.mxu0 %v2610
    %3276 = vmatpush.bf16.msra.mxu0 %v2606
    %3277 = vmatpush.bf16.msra.mxu0 %v2602
    %3278 = vmatpush.bf16.msra.mxu0 %v2598
    %3279 = vmatpush.bf16.msra.mxu0 %v2594
    %3280 = vmatpush.bf16.msra.mxu0 %v2590
    %3281 = vmatpush.bf16.msra.mxu0 %v2586
    %3282 = vmatmul.bf16.gmra.mxu0 %v1324
    %v3283 = vpop.f32.mrf.mxu0
    %v3284 = vadd.f32 %v3271, %v3283
    %v3285 = vpop.f32.mrf.mxu0
    %3286 = vdwg.mxu0
    %v3287 = vmax.f32 %v2972, 0.0
    %v3288 = vmax.f32 %v3076, 0.0
    %v3289 = vmax.f32 %v3180, 0.0
    %v3290 = vmax.f32 %v3284, 0.0
    %v3291 = vpack.c.bf16 %v3287, %v3287
    %v3292 = vpack.c.bf16 %v3288, %v3288
    %v3293 = vpack.c.bf16 %v3289, %v3289
    %v3294 = vpack.c.bf16 %v3290, %v3290
    %v3295 = vld [vmem:[#allocation13] sm:$0xff]
    %v3296 = vld [vmem:[#allocation13 + $0x8] sm:$0xff]
    %v3297 = vld [vmem:[#allocation13 + $0x10] sm:$0xff]
    %v3298 = vld [vmem:[#allocation13 + $0x18] sm:$0xff]
    %v3299 = vld [vmem:[#allocation13 + $0x20] sm:$0xff]
    %v3300 = vld [vmem:[#allocation13 + $0x28] sm:$0xff]
    %v3301 = vld [vmem:[#allocation13 + $0x30] sm:$0xff]
    %v3302 = vld [vmem:[#allocation13 + $0x38] sm:$0xff]
    %v3303 = vld [vmem:[#allocation13 + $0x40] sm:$0xff]
    %v3304 = vld [vmem:[#allocation13 + $0x48] sm:$0xff]
    %v3305 = vld [vmem:[#allocation13 + $0x50] sm:$0xff]
    %v3306 = vld [vmem:[#allocation13 + $0x58] sm:$0xff]
    %v3307 = vld [vmem:[#allocation13 + $0x60] sm:$0xff]
    %v3308 = vld [vmem:[#allocation13 + $0x68] sm:$0xff]
    %v3309 = vld [vmem:[#allocation13 + $0x70] sm:$0xff]
    %v3310 = vld [vmem:[#allocation13 + $0x78] sm:$0xff]
    %v3311 = vld [vmem:[#allocation13 + $0x80] sm:$0xff]
    %v3312 = vld [vmem:[#allocation13 + $0x88] sm:$0xff]
    %v3313 = vld [vmem:[#allocation13 + $0x90] sm:$0xff]
    %v3314 = vld [vmem:[#allocation13 + $0x98] sm:$0xff]
    %v3315 = vld [vmem:[#allocation13 + $0xa0] sm:$0xff]
    %v3316 = vld [vmem:[#allocation13 + $0xa8] sm:$0xff]
    %v3317 = vld [vmem:[#allocation13 + $0xb0] sm:$0xff]
    %v3318 = vld [vmem:[#allocation13 + $0xb8] sm:$0xff]
    %v3319 = vld [vmem:[#allocation13 + $0xc0] sm:$0xff]
    %v3320 = vld [vmem:[#allocation13 + $0xc8] sm:$0xff]
    %v3321 = vld [vmem:[#allocation13 + $0xd0] sm:$0xff]
    %v3322 = vld [vmem:[#allocation13 + $0xd8] sm:$0xff]
    %v3323 = vld [vmem:[#allocation13 + $0xe0] sm:$0xff]
    %v3324 = vld [vmem:[#allocation13 + $0xe8] sm:$0xff]
    %v3325 = vld [vmem:[#allocation13 + $0xf0] sm:$0xff]
    %v3326 = vld [vmem:[#allocation13 + $0xf8] sm:$0xff]
    %v3327 = vld [vmem:[#allocation13 + $0x100] sm:$0xff]
    %v3328 = vld [vmem:[#allocation13 + $0x108] sm:$0xff]
    %v3329 = vld [vmem:[#allocation13 + $0x110] sm:$0xff]
    %v3330 = vld [vmem:[#allocation13 + $0x118] sm:$0xff]
    %v3331 = vld [vmem:[#allocation13 + $0x120] sm:$0xff]
    %v3332 = vld [vmem:[#allocation13 + $0x128] sm:$0xff]
    %v3333 = vld [vmem:[#allocation13 + $0x130] sm:$0xff]
    %v3334 = vld [vmem:[#allocation13 + $0x138] sm:$0xff]
    %v3335 = vld [vmem:[#allocation13 + $0x140] sm:$0xff]
    %v3336 = vld [vmem:[#allocation13 + $0x148] sm:$0xff]
    %v3337 = vld [vmem:[#allocation13 + $0x150] sm:$0xff]
    %v3338 = vld [vmem:[#allocation13 + $0x158] sm:$0xff]
    %v3339 = vld [vmem:[#allocation13 + $0x160] sm:$0xff]
    %v3340 = vld [vmem:[#allocation13 + $0x168] sm:$0xff]
    %v3341 = vld [vmem:[#allocation13 + $0x170] sm:$0xff]
    %v3342 = vld [vmem:[#allocation13 + $0x178] sm:$0xff]
    %v3343 = vld [vmem:[#allocation13 + $0x180] sm:$0xff]
    %v3344 = vld [vmem:[#allocation13 + $0x188] sm:$0xff]
    %v3345 = vld [vmem:[#allocation13 + $0x190] sm:$0xff]
    %v3346 = vld [vmem:[#allocation13 + $0x198] sm:$0xff]
    %v3347 = vld [vmem:[#allocation13 + $0x1a0] sm:$0xff]
    %v3348 = vld [vmem:[#allocation13 + $0x1a8] sm:$0xff]
    %v3349 = vld [vmem:[#allocation13 + $0x1b0] sm:$0xff]
    %v3350 = vld [vmem:[#allocation13 + $0x1b8] sm:$0xff]
    %v3351 = vld [vmem:[#allocation13 + $0x1c0] sm:$0xff]
    %v3352 = vld [vmem:[#allocation13 + $0x1c8] sm:$0xff]
    %v3353 = vld [vmem:[#allocation13 + $0x1d0] sm:$0xff]
    %v3354 = vld [vmem:[#allocation13 + $0x1d8] sm:$0xff]
    %v3355 = vld [vmem:[#allocation13 + $0x1e0] sm:$0xff]
    %v3356 = vld [vmem:[#allocation13 + $0x1e8] sm:$0xff]
    %v3357 = vld [vmem:[#allocation13 + $0x1f0] sm:$0xff]
    %v3358 = vld [vmem:[#allocation13 + $0x1f8] sm:$0xff]
    %v3359 = vld [vmem:[#allocation14] sm:$0x3]
    %v3361 = vperm.slane %v3359, 0
    %v3362 = vperm.slane %v3359, 1
    %v3429 = vunpack.c.l.b16 %v3295
    %v3430 = vunpack.c.h.b16 %v3295
    %v3431 = vunpack.c.l.b16 %v3296
    %v3432 = vunpack.c.h.b16 %v3296
    %v3433 = vunpack.c.l.b16 %v3297
    %v3434 = vunpack.c.h.b16 %v3297
    %v3435 = vunpack.c.l.b16 %v3298
    %v3436 = vunpack.c.h.b16 %v3298
    %v3437 = vunpack.c.l.b16 %v3299
    %v3438 = vunpack.c.h.b16 %v3299
    %v3439 = vunpack.c.l.b16 %v3300
    %v3440 = vunpack.c.h.b16 %v3300
    %v3441 = vunpack.c.l.b16 %v3301
    %v3442 = vunpack.c.h.b16 %v3301
    %v3443 = vunpack.c.l.b16 %v3302
    %v3444 = vunpack.c.h.b16 %v3302
    %v3445 = vunpack.c.l.b16 %v3303
    %v3446 = vunpack.c.h.b16 %v3303
    %v3447 = vunpack.c.l.b16 %v3304
    %v3448 = vunpack.c.h.b16 %v3304
    %v3449 = vunpack.c.l.b16 %v3305
    %v3450 = vunpack.c.h.b16 %v3305
    %v3451 = vunpack.c.l.b16 %v3306
    %v3452 = vunpack.c.h.b16 %v3306
    %v3453 = vunpack.c.l.b16 %v3307
    %v3454 = vunpack.c.h.b16 %v3307
    %v3455 = vunpack.c.l.b16 %v3308
    %v3456 = vunpack.c.h.b16 %v3308
    %v3457 = vunpack.c.l.b16 %v3309
    %v3458 = vunpack.c.h.b16 %v3309
    %v3459 = vunpack.c.l.b16 %v3310
    %v3460 = vunpack.c.h.b16 %v3310
    %v3461 = vunpack.c.l.b16 %v3311
    %v3462 = vunpack.c.h.b16 %v3311
    %v3463 = vunpack.c.l.b16 %v3312
    %v3464 = vunpack.c.h.b16 %v3312
    %v3465 = vunpack.c.l.b16 %v3313
    %v3466 = vunpack.c.h.b16 %v3313
    %v3467 = vunpack.c.l.b16 %v3314
    %v3468 = vunpack.c.h.b16 %v3314
    %v3469 = vunpack.c.l.b16 %v3315
    %v3470 = vunpack.c.h.b16 %v3315
    %v3471 = vunpack.c.l.b16 %v3316
    %v3472 = vunpack.c.h.b16 %v3316
    %v3473 = vunpack.c.l.b16 %v3317
    %v3474 = vunpack.c.h.b16 %v3317
    %v3475 = vunpack.c.l.b16 %v3318
    %v3476 = vunpack.c.h.b16 %v3318
    %v3477 = vunpack.c.l.b16 %v3319
    %v3478 = vunpack.c.h.b16 %v3319
    %v3479 = vunpack.c.l.b16 %v3320
    %v3480 = vunpack.c.h.b16 %v3320
    %v3481 = vunpack.c.l.b16 %v3321
    %v3482 = vunpack.c.h.b16 %v3321
    %v3483 = vunpack.c.l.b16 %v3322
    %v3484 = vunpack.c.h.b16 %v3322
    %v3485 = vunpack.c.l.b16 %v3323
    %v3486 = vunpack.c.h.b16 %v3323
    %v3487 = vunpack.c.l.b16 %v3324
    %v3488 = vunpack.c.h.b16 %v3324
    %v3489 = vunpack.c.l.b16 %v3325
    %v3490 = vunpack.c.h.b16 %v3325
    %v3491 = vunpack.c.l.b16 %v3326
    %v3492 = vunpack.c.h.b16 %v3326
    %v3493 = vunpack.c.l.b16 %v3327
    %v3494 = vunpack.c.h.b16 %v3327
    %v3495 = vunpack.c.l.b16 %v3328
    %v3496 = vunpack.c.h.b16 %v3328
    %v3497 = vunpack.c.l.b16 %v3329
    %v3498 = vunpack.c.h.b16 %v3329
    %v3499 = vunpack.c.l.b16 %v3330
    %v3500 = vunpack.c.h.b16 %v3330
    %v3501 = vunpack.c.l.b16 %v3331
    %v3502 = vunpack.c.h.b16 %v3331
    %v3503 = vunpack.c.l.b16 %v3332
    %v3504 = vunpack.c.h.b16 %v3332
    %v3505 = vunpack.c.l.b16 %v3333
    %v3506 = vunpack.c.h.b16 %v3333
    %v3507 = vunpack.c.l.b16 %v3334
    %v3508 = vunpack.c.h.b16 %v3334
    %v3509 = vunpack.c.l.b16 %v3335
    %v3510 = vunpack.c.h.b16 %v3335
    %v3511 = vunpack.c.l.b16 %v3336
    %v3512 = vunpack.c.h.b16 %v3336
    %v3513 = vunpack.c.l.b16 %v3337
    %v3514 = vunpack.c.h.b16 %v3337
    %v3515 = vunpack.c.l.b16 %v3338
    %v3516 = vunpack.c.h.b16 %v3338
    %v3517 = vunpack.c.l.b16 %v3339
    %v3518 = vunpack.c.h.b16 %v3339
    %v3519 = vunpack.c.l.b16 %v3340
    %v3520 = vunpack.c.h.b16 %v3340
    %v3521 = vunpack.c.l.b16 %v3341
    %v3522 = vunpack.c.h.b16 %v3341
    %v3523 = vunpack.c.l.b16 %v3342
    %v3524 = vunpack.c.h.b16 %v3342
    %v3525 = vunpack.c.l.b16 %v3343
    %v3526 = vunpack.c.h.b16 %v3343
    %v3527 = vunpack.c.l.b16 %v3344
    %v3528 = vunpack.c.h.b16 %v3344
    %v3529 = vunpack.c.l.b16 %v3345
    %v3530 = vunpack.c.h.b16 %v3345
    %v3531 = vunpack.c.l.b16 %v3346
    %v3532 = vunpack.c.h.b16 %v3346
    %v3533 = vunpack.c.l.b16 %v3347
    %v3534 = vunpack.c.h.b16 %v3347
    %v3535 = vunpack.c.l.b16 %v3348
    %v3536 = vunpack.c.h.b16 %v3348
    %v3537 = vunpack.c.l.b16 %v3349
    %v3538 = vunpack.c.h.b16 %v3349
    %v3539 = vunpack.c.l.b16 %v3350
    %v3540 = vunpack.c.h.b16 %v3350
    %v3541 = vunpack.c.l.b16 %v3351
    %v3542 = vunpack.c.h.b16 %v3351
    %v3543 = vunpack.c.l.b16 %v3352
    %v3544 = vunpack.c.h.b16 %v3352
    %v3545 = vunpack.c.l.b16 %v3353
    %v3546 = vunpack.c.h.b16 %v3353
    %v3547 = vunpack.c.l.b16 %v3354
    %v3548 = vunpack.c.h.b16 %v3354
    %v3549 = vunpack.c.l.b16 %v3355
    %v3550 = vunpack.c.h.b16 %v3355
    %v3551 = vunpack.c.l.b16 %v3356
    %v3552 = vunpack.c.h.b16 %v3356
    %v3553 = vunpack.c.l.b16 %v3357
    %v3554 = vunpack.c.h.b16 %v3357
    %v3555 = vunpack.c.l.b16 %v3358
    %v3556 = vunpack.c.h.b16 %v3358
    %v3557 = vpack.c.b16 %v3431, %v3429
    %v3558 = vpack.c.b16 %v3432, %v3430
    %v3559 = vpack.c.b16 %v3435, %v3433
    %v3560 = vpack.c.b16 %v3436, %v3434
    %v3561 = vpack.c.b16 %v3439, %v3437
    %v3562 = vpack.c.b16 %v3440, %v3438
    %v3563 = vpack.c.b16 %v3443, %v3441
    %v3564 = vpack.c.b16 %v3444, %v3442
    %v3565 = vpack.c.b16 %v3447, %v3445
    %v3566 = vpack.c.b16 %v3448, %v3446
    %v3567 = vpack.c.b16 %v3451, %v3449
    %v3568 = vpack.c.b16 %v3452, %v3450
    %v3569 = vpack.c.b16 %v3455, %v3453
    %v3570 = vpack.c.b16 %v3456, %v3454
    %v3571 = vpack.c.b16 %v3459, %v3457
    %v3572 = vpack.c.b16 %v3460, %v3458
    %v3573 = vpack.c.b16 %v3463, %v3461
    %v3574 = vpack.c.b16 %v3464, %v3462
    %v3575 = vpack.c.b16 %v3467, %v3465
    %v3576 = vpack.c.b16 %v3468, %v3466
    %v3577 = vpack.c.b16 %v3471, %v3469
    %v3578 = vpack.c.b16 %v3472, %v3470
    %v3579 = vpack.c.b16 %v3475, %v3473
    %v3580 = vpack.c.b16 %v3476, %v3474
    %v3581 = vpack.c.b16 %v3479, %v3477
    %v3582 = vpack.c.b16 %v3480, %v3478
    %v3583 = vpack.c.b16 %v3483, %v3481
    %v3584 = vpack.c.b16 %v3484, %v3482
    %v3585 = vpack.c.b16 %v3487, %v3485
    %v3586 = vpack.c.b16 %v3488, %v3486
    %v3587 = vpack.c.b16 %v3491, %v3489
    %v3588 = vpack.c.b16 %v3492, %v3490
    %v3589 = vpack.c.b16 %v3495, %v3493
    %v3590 = vpack.c.b16 %v3496, %v3494
    %v3591 = vpack.c.b16 %v3499, %v3497
    %v3592 = vpack.c.b16 %v3500, %v3498
    %v3593 = vpack.c.b16 %v3503, %v3501
    %v3594 = vpack.c.b16 %v3504, %v3502
    %v3595 = vpack.c.b16 %v3507, %v3505
    %v3596 = vpack.c.b16 %v3508, %v3506
    %v3597 = vpack.c.b16 %v3511, %v3509
    %v3598 = vpack.c.b16 %v3512, %v3510
    %v3599 = vpack.c.b16 %v3515, %v3513
    %v3600 = vpack.c.b16 %v3516, %v3514
    %v3601 = vpack.c.b16 %v3519, %v3517
    %v3602 = vpack.c.b16 %v3520, %v3518
    %v3603 = vpack.c.b16 %v3523, %v3521
    %v3604 = vpack.c.b16 %v3524, %v3522
    %v3605 = vpack.c.b16 %v3527, %v3525
    %v3606 = vpack.c.b16 %v3528, %v3526
    %v3607 = vpack.c.b16 %v3531, %v3529
    %v3608 = vpack.c.b16 %v3532, %v3530
    %v3609 = vpack.c.b16 %v3535, %v3533
    %v3610 = vpack.c.b16 %v3536, %v3534
    %v3611 = vpack.c.b16 %v3539, %v3537
    %v3612 = vpack.c.b16 %v3540, %v3538
    %v3613 = vpack.c.b16 %v3543, %v3541
    %v3614 = vpack.c.b16 %v3544, %v3542
    %v3615 = vpack.c.b16 %v3547, %v3545
    %v3616 = vpack.c.b16 %v3548, %v3546
    %v3617 = vpack.c.b16 %v3551, %v3549
    %v3618 = vpack.c.b16 %v3552, %v3550
    %v3619 = vpack.c.b16 %v3555, %v3553
    %v3620 = vpack.c.b16 %v3556, %v3554
    %3685 = vmatpush.bf16.msra.mxu0 %v3571
    %3686 = vmatpush.bf16.msra.mxu0 %v3569
    %3687 = vmatpush.bf16.msra.mxu0 %v3567
    %3688 = vmatpush.bf16.msra.mxu0 %v3565
    %3689 = vmatpush.bf16.msra.mxu0 %v3563
    %3690 = vmatpush.bf16.msra.mxu0 %v3561
    %3691 = vmatpush.bf16.msra.mxu0 %v3559
    %3692 = vmatpush.bf16.msra.mxu0 %v3557
    %3693 = vmatmul.bf16.gmra.mxu0 %v3291
    %v3694 = vpop.f32.mrf.mxu0
    %v3695 = vadd.f32 %v3361, %v3694
    %v3696 = vpop.f32.mrf.mxu0
    %3697 = vdwg.mxu0
    %3698 = vmatpush.bf16.msra.mxu0 %v3587
    %3699 = vmatpush.bf16.msra.mxu0 %v3585
    %3700 = vmatpush.bf16.msra.mxu0 %v3583
    %3701 = vmatpush.bf16.msra.mxu0 %v3581
    %3702 = vmatpush.bf16.msra.mxu0 %v3579
    %3703 = vmatpush.bf16.msra.mxu0 %v3577
    %3704 = vmatpush.bf16.msra.mxu0 %v3575
    %3705 = vmatpush.bf16.msra.mxu0 %v3573
    %3706 = vmatmul.bf16.gmra.mxu0 %v3292
    %v3707 = vpop.f32.mrf.mxu0
    %v3708 = vadd.f32 %v3695, %v3707
    %v3709 = vpop.f32.mrf.mxu0
    %3710 = vdwg.mxu0
    %3711 = vmatpush.bf16.msra.mxu0 %v3603
    %3712 = vmatpush.bf16.msra.mxu0 %v3601
    %3713 = vmatpush.bf16.msra.mxu0 %v3599
    %3714 = vmatpush.bf16.msra.mxu0 %v3597
    %3715 = vmatpush.bf16.msra.mxu0 %v3595
    %3716 = vmatpush.bf16.msra.mxu0 %v3593
    %3717 = vmatpush.bf16.msra.mxu0 %v3591
    %3718 = vmatpush.bf16.msra.mxu0 %v3589
    %3719 = vmatmul.bf16.gmra.mxu0 %v3293
    %v3720 = vpop.f32.mrf.mxu0
    %v3721 = vadd.f32 %v3708, %v3720
    %v3722 = vpop.f32.mrf.mxu0
    %3723 = vdwg.mxu0
    %3724 = vmatpush.bf16.msra.mxu0 %v3619
    %3725 = vmatpush.bf16.msra.mxu0 %v3617
    %3726 = vmatpush.bf16.msra.mxu0 %v3615
    %3727 = vmatpush.bf16.msra.mxu0 %v3613
    %3728 = vmatpush.bf16.msra.mxu0 %v3611
    %3729 = vmatpush.bf16.msra.mxu0 %v3609
    %3730 = vmatpush.bf16.msra.mxu0 %v3607
    %3731 = vmatpush.bf16.msra.mxu0 %v3605
    %3732 = vmatmul.bf16.gmra.mxu0 %v3294
    %v3733 = vpop.f32.mrf.mxu0
    %v3734 = vadd.f32 %v3721, %v3733
    %v3735 = vpop.f32.mrf.mxu0
    %3736 = vdwg.mxu0
    %3737 = vmatpush.bf16.msra.mxu0 %v3572
    %3738 = vmatpush.bf16.msra.mxu0 %v3570
    %3739 = vmatpush.bf16.msra.mxu0 %v3568
    %3740 = vmatpush.bf16.msra.mxu0 %v3566
    %3741 = vmatpush.bf16.msra.mxu0 %v3564
    %3742 = vmatpush.bf16.msra.mxu0 %v3562
    %3743 = vmatpush.bf16.msra.mxu0 %v3560
    %3744 = vmatpush.bf16.msra.mxu0 %v3558
    %3745 = vmatmul.bf16.gmra.mxu0 %v3291
    %v3746 = vpop.f32.mrf.mxu0
    %v3747 = vadd.f32 %v3362, %v3746
    %v3748 = vpop.f32.mrf.mxu0
    %3749 = vdwg.mxu0
    %3750 = vmatpush.bf16.msra.mxu0 %v3588
    %3751 = vmatpush.bf16.msra.mxu0 %v3586
    %3752 = vmatpush.bf16.msra.mxu0 %v3584
    %3753 = vmatpush.bf16.msra.mxu0 %v3582
    %3754 = vmatpush.bf16.msra.mxu0 %v3580
    %3755 = vmatpush.bf16.msra.mxu0 %v3578
    %3756 = vmatpush.bf16.msra.mxu0 %v3576
    %3757 = vmatpush.bf16.msra.mxu0 %v3574
    %3758 = vmatmul.bf16.gmra.mxu0 %v3292
    %v3759 = vpop.f32.mrf.mxu0
    %v3760 = vadd.f32 %v3747, %v3759
    %v3761 = vpop.f32.mrf.mxu0
    %3762 = vdwg.mxu0
    %3763 = vmatpush.bf16.msra.mxu0 %v3604
    %3764 = vmatpush.bf16.msra.mxu0 %v3602
    %3765 = vmatpush.bf16.msra.mxu0 %v3600
    %3766 = vmatpush.bf16.msra.mxu0 %v3598
    %3767 = vmatpush.bf16.msra.mxu0 %v3596
    %3768 = vmatpush.bf16.msra.mxu0 %v3594
    %3769 = vmatpush.bf16.msra.mxu0 %v3592
    %3770 = vmatpush.bf16.msra.mxu0 %v3590
    %3771 = vmatmul.bf16.gmra.mxu0 %v3293
    %v3772 = vpop.f32.mrf.mxu0
    %v3773 = vadd.f32 %v3760, %v3772
    %v3774 = vpop.f32.mrf.mxu0
    %3775 = vdwg.mxu0
    %3776 = vmatpush.bf16.msra.mxu0 %v3620
    %3777 = vmatpush.bf16.msra.mxu0 %v3618
    %3778 = vmatpush.bf16.msra.mxu0 %v3616
    %3779 = vmatpush.bf16.msra.mxu0 %v3614
    %3780 = vmatpush.bf16.msra.mxu0 %v3612
    %3781 = vmatpush.bf16.msra.mxu0 %v3610
    %3782 = vmatpush.bf16.msra.mxu0 %v3608
    %3783 = vmatpush.bf16.msra.mxu0 %v3606
    %3784 = vmatmul.bf16.gmra.mxu0 %v3294
    %v3785 = vpop.f32.mrf.mxu0
    %v3786 = vadd.f32 %v3773, %v3785
    %v3787 = vpop.f32.mrf.mxu0
    %3788 = vdwg.mxu0
    %v3789 = vmax.f32 %v3734, 0.0
    %v3790 = vmax.f32 %v3786, 0.0
    %v3791 = vpack.c.bf16 %v3789, %v3789
    %v3792 = vpack.c.bf16 %v3790, %v3790
    %v3793 = vld [vmem:[#allocation16] sm:$0xff]
    %v3794 = vld [vmem:[#allocation16 + $0x8] sm:$0xff]
    %v3795 = vld [vmem:[#allocation16 + $0x10] sm:$0xff]
    %v3796 = vld [vmem:[#allocation16 + $0x18] sm:$0xff]
    %v3797 = vld [vmem:[#allocation16 + $0x20] sm:$0xff]
    %v3798 = vld [vmem:[#allocation16 + $0x28] sm:$0xff]
    %v3799 = vld [vmem:[#allocation16 + $0x30] sm:$0xff]
    %v3800 = vld [vmem:[#allocation16 + $0x38] sm:$0xff]
    %v3801 = vld [vmem:[#allocation16 + $0x40] sm:$0xff]
    %v3802 = vld [vmem:[#allocation16 + $0x48] sm:$0xff]
    %v3803 = vld [vmem:[#allocation16 + $0x50] sm:$0xff]
    %v3804 = vld [vmem:[#allocation16 + $0x58] sm:$0xff]
    %v3805 = vld [vmem:[#allocation16 + $0x60] sm:$0xff]
    %v3806 = vld [vmem:[#allocation16 + $0x68] sm:$0xff]
    %v3807 = vld [vmem:[#allocation16 + $0x70] sm:$0xff]
    %v3808 = vld [vmem:[#allocation16 + $0x78] sm:$0xff]
    %v3809 = vld [vmem:[#allocation16 + $0x80] sm:$0xff]
    %v3810 = vld [vmem:[#allocation16 + $0x88] sm:$0xff]
    %v3811 = vld [vmem:[#allocation16 + $0x90] sm:$0xff]
    %v3812 = vld [vmem:[#allocation16 + $0x98] sm:$0xff]
    %v3813 = vld [vmem:[#allocation16 + $0xa0] sm:$0xff]
    %v3814 = vld [vmem:[#allocation16 + $0xa8] sm:$0xff]
    %v3815 = vld [vmem:[#allocation16 + $0xb0] sm:$0xff]
    %v3816 = vld [vmem:[#allocation16 + $0xb8] sm:$0xff]
    %v3817 = vld [vmem:[#allocation16 + $0xc0] sm:$0xff]
    %v3818 = vld [vmem:[#allocation16 + $0xc8] sm:$0xff]
    %v3819 = vld [vmem:[#allocation16 + $0xd0] sm:$0xff]
    %v3820 = vld [vmem:[#allocation16 + $0xd8] sm:$0xff]
    %v3821 = vld [vmem:[#allocation16 + $0xe0] sm:$0xff]
    %v3822 = vld [vmem:[#allocation16 + $0xe8] sm:$0xff]
    %v3823 = vld [vmem:[#allocation16 + $0xf0] sm:$0xff]
    %v3824 = vld [vmem:[#allocation16 + $0xf8] sm:$0xff]
    %v3825 = vld [vmem:[#allocation17] sm:$0x3]
    %v3827 = vperm.slane %v3825, 0
    %v3828 = vperm.slane %v3825, 1
    %v3863 = vunpack.c.l.b16 %v3793
    %v3864 = vunpack.c.h.b16 %v3793
    %v3865 = vunpack.c.l.b16 %v3794
    %v3866 = vunpack.c.h.b16 %v3794
    %v3867 = vunpack.c.l.b16 %v3795
    %v3868 = vunpack.c.h.b16 %v3795
    %v3869 = vunpack.c.l.b16 %v3796
    %v3870 = vunpack.c.h.b16 %v3796
    %v3871 = vunpack.c.l.b16 %v3797
    %v3872 = vunpack.c.h.b16 %v3797
    %v3873 = vunpack.c.l.b16 %v3798
    %v3874 = vunpack.c.h.b16 %v3798
    %v3875 = vunpack.c.l.b16 %v3799
    %v3876 = vunpack.c.h.b16 %v3799
    %v3877 = vunpack.c.l.b16 %v3800
    %v3878 = vunpack.c.h.b16 %v3800
    %v3879 = vunpack.c.l.b16 %v3801
    %v3880 = vunpack.c.h.b16 %v3801
    %v3881 = vunpack.c.l.b16 %v3802
    %v3882 = vunpack.c.h.b16 %v3802
    %v3883 = vunpack.c.l.b16 %v3803
    %v3884 = vunpack.c.h.b16 %v3803
    %v3885 = vunpack.c.l.b16 %v3804
    %v3886 = vunpack.c.h.b16 %v3804
    %v3887 = vunpack.c.l.b16 %v3805
    %v3888 = vunpack.c.h.b16 %v3805
    %v3889 = vunpack.c.l.b16 %v3806
    %v3890 = vunpack.c.h.b16 %v3806
    %v3891 = vunpack.c.l.b16 %v3807
    %v3892 = vunpack.c.h.b16 %v3807
    %v3893 = vunpack.c.l.b16 %v3808
    %v3894 = vunpack.c.h.b16 %v3808
    %v3895 = vunpack.c.l.b16 %v3809
    %v3896 = vunpack.c.h.b16 %v3809
    %v3897 = vunpack.c.l.b16 %v3810
    %v3898 = vunpack.c.h.b16 %v3810
    %v3899 = vunpack.c.l.b16 %v3811
    %v3900 = vunpack.c.h.b16 %v3811
    %v3901 = vunpack.c.l.b16 %v3812
    %v3902 = vunpack.c.h.b16 %v3812
    %v3903 = vunpack.c.l.b16 %v3813
    %v3904 = vunpack.c.h.b16 %v3813
    %v3905 = vunpack.c.l.b16 %v3814
    %v3906 = vunpack.c.h.b16 %v3814
    %v3907 = vunpack.c.l.b16 %v3815
    %v3908 = vunpack.c.h.b16 %v3815
    %v3909 = vunpack.c.l.b16 %v3816
    %v3910 = vunpack.c.h.b16 %v3816
    %v3911 = vunpack.c.l.b16 %v3817
    %v3912 = vunpack.c.h.b16 %v3817
    %v3913 = vunpack.c.l.b16 %v3818
    %v3914 = vunpack.c.h.b16 %v3818
    %v3915 = vunpack.c.l.b16 %v3819
    %v3916 = vunpack.c.h.b16 %v3819
    %v3917 = vunpack.c.l.b16 %v3820
    %v3918 = vunpack.c.h.b16 %v3820
    %v3919 = vunpack.c.l.b16 %v3821
    %v3920 = vunpack.c.h.b16 %v3821
    %v3921 = vunpack.c.l.b16 %v3822
    %v3922 = vunpack.c.h.b16 %v3822
    %v3923 = vunpack.c.l.b16 %v3823
    %v3924 = vunpack.c.h.b16 %v3823
    %v3925 = vunpack.c.l.b16 %v3824
    %v3926 = vunpack.c.h.b16 %v3824
    %v3927 = vpack.c.b16 %v3865, %v3863
    %v3928 = vpack.c.b16 %v3866, %v3864
    %v3929 = vpack.c.b16 %v3869, %v3867
    %v3930 = vpack.c.b16 %v3870, %v3868
    %v3931 = vpack.c.b16 %v3873, %v3871
    %v3932 = vpack.c.b16 %v3874, %v3872
    %v3933 = vpack.c.b16 %v3877, %v3875
    %v3934 = vpack.c.b16 %v3878, %v3876
    %v3935 = vpack.c.b16 %v3881, %v3879
    %v3936 = vpack.c.b16 %v3882, %v3880
    %v3937 = vpack.c.b16 %v3885, %v3883
    %v3938 = vpack.c.b16 %v3886, %v3884
    %v3939 = vpack.c.b16 %v3889, %v3887
    %v3940 = vpack.c.b16 %v3890, %v3888
    %v3941 = vpack.c.b16 %v3893, %v3891
    %v3942 = vpack.c.b16 %v3894, %v3892
    %v3943 = vpack.c.b16 %v3897, %v3895
    %v3944 = vpack.c.b16 %v3898, %v3896
    %v3945 = vpack.c.b16 %v3901, %v3899
    %v3946 = vpack.c.b16 %v3902, %v3900
    %v3947 = vpack.c.b16 %v3905, %v3903
    %v3948 = vpack.c.b16 %v3906, %v3904
    %v3949 = vpack.c.b16 %v3909, %v3907
    %v3950 = vpack.c.b16 %v3910, %v3908
    %v3951 = vpack.c.b16 %v3913, %v3911
    %v3952 = vpack.c.b16 %v3914, %v3912
    %v3953 = vpack.c.b16 %v3917, %v3915
    %v3954 = vpack.c.b16 %v3918, %v3916
    %v3955 = vpack.c.b16 %v3921, %v3919
    %v3956 = vpack.c.b16 %v3922, %v3920
    %v3957 = vpack.c.b16 %v3925, %v3923
    %v3958 = vpack.c.b16 %v3926, %v3924
    %3991 = vmatpush.bf16.msra.mxu0 %v3941
    %3992 = vmatpush.bf16.msra.mxu0 %v3939
    %3993 = vmatpush.bf16.msra.mxu0 %v3937
    %3994 = vmatpush.bf16.msra.mxu0 %v3935
    %3995 = vmatpush.bf16.msra.mxu0 %v3933
    %3996 = vmatpush.bf16.msra.mxu0 %v3931
    %3997 = vmatpush.bf16.msra.mxu0 %v3929
    %3998 = vmatpush.bf16.msra.mxu0 %v3927
    %3999 = vmatmul.bf16.gmra.mxu0 %v3791
    %v4000 = vpop.f32.mrf.mxu0
    %v4001 = vadd.f32 %v3827, %v4000
    %v4002 = vpop.f32.mrf.mxu0
    %4003 = vdwg.mxu0
    %4004 = vmatpush.bf16.msra.mxu0 %v3957
    %4005 = vmatpush.bf16.msra.mxu0 %v3955
    %4006 = vmatpush.bf16.msra.mxu0 %v3953
    %4007 = vmatpush.bf16.msra.mxu0 %v3951
    %4008 = vmatpush.bf16.msra.mxu0 %v3949
    %4009 = vmatpush.bf16.msra.mxu0 %v3947
    %4010 = vmatpush.bf16.msra.mxu0 %v3945
    %4011 = vmatpush.bf16.msra.mxu0 %v3943
    %4012 = vmatmul.bf16.gmra.mxu0 %v3792
    %v4013 = vpop.f32.mrf.mxu0
    %v4014 = vadd.f32 %v4001, %v4013
    %v4015 = vpop.f32.mrf.mxu0
    %4016 = vdwg.mxu0
    %4017 = vmatpush.bf16.msra.mxu0 %v3942
    %4018 = vmatpush.bf16.msra.mxu0 %v3940
    %4019 = vmatpush.bf16.msra.mxu0 %v3938
    %4020 = vmatpush.bf16.msra.mxu0 %v3936
    %4021 = vmatpush.bf16.msra.mxu0 %v3934
    %4022 = vmatpush.bf16.msra.mxu0 %v3932
    %4023 = vmatpush.bf16.msra.mxu0 %v3930
    %4024 = vmatpush.bf16.msra.mxu0 %v3928
    %4025 = vmatmul.bf16.gmra.mxu0 %v3791
    %v4026 = vpop.f32.mrf.mxu0
    %v4027 = vadd.f32 %v3828, %v4026
    %v4028 = vpop.f32.mrf.mxu0
    %4029 = vdwg.mxu0
    %4030 = vmatpush.bf16.msra.mxu0 %v3958
    %4031 = vmatpush.bf16.msra.mxu0 %v3956
    %4032 = vmatpush.bf16.msra.mxu0 %v3954
    %4033 = vmatpush.bf16.msra.mxu0 %v3952
    %4034 = vmatpush.bf16.msra.mxu0 %v3950
    %4035 = vmatpush.bf16.msra.mxu0 %v3948
    %4036 = vmatpush.bf16.msra.mxu0 %v3946
    %4037 = vmatpush.bf16.msra.mxu0 %v3944
    %4038 = vmatmul.bf16.gmra.mxu0 %v3792
    %v4039 = vpop.f32.mrf.mxu0
    %v4040 = vadd.f32 %v4027, %v4039
    %v4041 = vpop.f32.mrf.mxu0
    %4042 = vdwg.mxu0
    %v4043 = vadd.f32 %v305, %v4014
    %v4044 = vadd.f32 %v306, %v4040
    %v4045 = vpack.c.bf16 %v4043, %v4043
    %v4046 = vpack.c.bf16 %v4044, %v4044
    %v4047 = vld [vmem:[#allocation19] sm:$0xf]
    %v4048 = vld [vmem:[#allocation19 + $0x4] sm:$0xf]
    %v4049 = vld [vmem:[#allocation19 + $0x8] sm:$0xf]
    %v4050 = vld [vmem:[#allocation19 + $0xc] sm:$0xf]
    %v4051 = vld [vmem:[#allocation19 + $0x10] sm:$0xf]
    %v4052 = vld [vmem:[#allocation19 + $0x14] sm:$0xf]
    %v4053 = vld [vmem:[#allocation19 + $0x18] sm:$0xf]
    %v4054 = vld [vmem:[#allocation19 + $0x1c] sm:$0xf]
    %v4055 = vld [vmem:[#allocation19 + $0x20] sm:$0xf]
    %v4056 = vld [vmem:[#allocation19 + $0x24] sm:$0xf]
    %v4057 = vld [vmem:[#allocation19 + $0x28] sm:$0xf]
    %v4058 = vld [vmem:[#allocation19 + $0x2c] sm:$0xf]
    %v4059 = vld [vmem:[#allocation19 + $0x30] sm:$0xf]
    %v4060 = vld [vmem:[#allocation19 + $0x34] sm:$0xf]
    %v4061 = vld [vmem:[#allocation19 + $0x38] sm:$0xf]
    %v4062 = vld [vmem:[#allocation19 + $0x3c] sm:$0xf]
    %v4063 = vld [vmem:[#allocation19 + $0x40] sm:$0xf]
    %v4064 = vld [vmem:[#allocation19 + $0x44] sm:$0xf]
    %v4065 = vld [vmem:[#allocation19 + $0x48] sm:$0xf]
    %v4066 = vld [vmem:[#allocation19 + $0x4c] sm:$0xf]
    %v4067 = vld [vmem:[#allocation19 + $0x50] sm:$0xf]
    %v4068 = vld [vmem:[#allocation19 + $0x54] sm:$0xf]
    %v4069 = vld [vmem:[#allocation19 + $0x58] sm:$0xf]
    %v4070 = vld [vmem:[#allocation19 + $0x5c] sm:$0xf]
    %v4071 = vld [vmem:[#allocation19 + $0x60] sm:$0xf]
    %v4072 = vld [vmem:[#allocation19 + $0x64] sm:$0xf]
    %v4073 = vld [vmem:[#allocation19 + $0x68] sm:$0xf]
    %v4074 = vld [vmem:[#allocation19 + $0x6c] sm:$0xf]
    %v4075 = vld [vmem:[#allocation19 + $0x70] sm:$0xf]
    %v4076 = vld [vmem:[#allocation19 + $0x74] sm:$0xf]
    %v4077 = vld [vmem:[#allocation19 + $0x78] sm:$0xf]
    %v4078 = vld [vmem:[#allocation19 + $0x7c] sm:$0xf]
    %v4079 = vld [vmem:[%s13] sm:$0x1]
    %v4081 = vperm.slane %v4079, 0
    %v4115 = vunpack.c.l.b16 %v4047
    %v4116 = vunpack.c.l.b16 %v4048
    %v4117 = vunpack.c.l.b16 %v4049
    %v4118 = vunpack.c.l.b16 %v4050
    %v4119 = vunpack.c.l.b16 %v4051
    %v4120 = vunpack.c.l.b16 %v4052
    %v4121 = vunpack.c.l.b16 %v4053
    %v4122 = vunpack.c.l.b16 %v4054
    %v4123 = vunpack.c.l.b16 %v4055
    %v4124 = vunpack.c.l.b16 %v4056
    %v4125 = vunpack.c.l.b16 %v4057
    %v4126 = vunpack.c.l.b16 %v4058
    %v4127 = vunpack.c.l.b16 %v4059
    %v4128 = vunpack.c.l.b16 %v4060
    %v4129 = vunpack.c.l.b16 %v4061
    %v4130 = vunpack.c.l.b16 %v4062
    %v4131 = vunpack.c.l.b16 %v4063
    %v4132 = vunpack.c.l.b16 %v4064
    %v4133 = vunpack.c.l.b16 %v4065
    %v4134 = vunpack.c.l.b16 %v4066
    %v4135 = vunpack.c.l.b16 %v4067
    %v4136 = vunpack.c.l.b16 %v4068
    %v4137 = vunpack.c.l.b16 %v4069
    %v4138 = vunpack.c.l.b16 %v4070
    %v4139 = vunpack.c.l.b16 %v4071
    %v4140 = vunpack.c.l.b16 %v4072
    %v4141 = vunpack.c.l.b16 %v4073
    %v4142 = vunpack.c.l.b16 %v4074
    %v4143 = vunpack.c.l.b16 %v4075
    %v4144 = vunpack.c.l.b16 %v4076
    %v4145 = vunpack.c.l.b16 %v4077
    %v4146 = vunpack.c.l.b16 %v4078
    %v4147 = vpack.c.b16 %v4116, %v4115
    %v4148 = vpack.c.b16 %v4118, %v4117
    %v4149 = vpack.c.b16 %v4120, %v4119
    %v4150 = vpack.c.b16 %v4122, %v4121
    %v4151 = vpack.c.b16 %v4124, %v4123
    %v4152 = vpack.c.b16 %v4126, %v4125
    %v4153 = vpack.c.b16 %v4128, %v4127
    %v4154 = vpack.c.b16 %v4130, %v4129
    %v4155 = vpack.c.b16 %v4132, %v4131
    %v4156 = vpack.c.b16 %v4134, %v4133
    %v4157 = vpack.c.b16 %v4136, %v4135
    %v4158 = vpack.c.b16 %v4138, %v4137
    %v4159 = vpack.c.b16 %v4140, %v4139
    %v4160 = vpack.c.b16 %v4142, %v4141
    %v4161 = vpack.c.b16 %v4144, %v4143
    %v4162 = vpack.c.b16 %v4146, %v4145
    %4179 = vmatpush.bf16.msra.mxu0 %v4154
    %4180 = vmatpush.bf16.msra.mxu0 %v4153
    %4181 = vmatpush.bf16.msra.mxu0 %v4152
    %4182 = vmatpush.bf16.msra.mxu0 %v4151
    %4183 = vmatpush.bf16.msra.mxu0 %v4150
    %4184 = vmatpush.bf16.msra.mxu0 %v4149
    %4185 = vmatpush.bf16.msra.mxu0 %v4148
    %4186 = vmatpush.bf16.msra.mxu0 %v4147
    %4187 = vmatmul.bf16.gmra.mxu0 %v4045
    %v4188 = vpop.f32.mrf.mxu0
    %v4189 = vadd.f32 %v4081, %v4188
    %v4190 = vpop.f32.mrf.mxu0
    %4191 = vdwg.mxu0
    %4192 = vmatpush.bf16.msra.mxu0 %v4162
    %4193 = vmatpush.bf16.msra.mxu0 %v4161
    %4194 = vmatpush.bf16.msra.mxu0 %v4160
    %4195 = vmatpush.bf16.msra.mxu0 %v4159
    %4196 = vmatpush.bf16.msra.mxu0 %v4158
    %4197 = vmatpush.bf16.msra.mxu0 %v4157
    %4198 = vmatpush.bf16.msra.mxu0 %v4156
    %4199 = vmatpush.bf16.msra.mxu0 %v4155
    %4200 = vmatmul.bf16.gmra.mxu0 %v4046
    %v4201 = vpop.f32.mrf.mxu0
    %v4202 = vadd.f32 %v4189, %v4201
    %v4203 = vpop.f32.mrf.mxu0
    %4204 = vdwg.mxu0
    %v4205 = vmax.f32 %v4202, 0.0
    %v4206 = vpack.c.bf16 %v4205, %v4205
    %v4207 = vld [vmem:[%s14] sm:$0xf]
    %v4208 = vld [vmem:[%s14 + $0x4] sm:$0xf]
    %v4209 = vld [vmem:[%s14 + $0x8] sm:$0xf]
    %v4210 = vld [vmem:[%s14 + $0xc] sm:$0xf]
    %v4211 = vld [vmem:[%s14 + $0x10] sm:$0xf]
    %v4212 = vld [vmem:[%s14 + $0x14] sm:$0xf]
    %v4213 = vld [vmem:[%s14 + $0x18] sm:$0xf]
    %v4214 = vld [vmem:[%s14 + $0x1c] sm:$0xf]
    %v4215 = vld [vmem:[%s14 + $0x20] sm:$0xf]
    %v4216 = vld [vmem:[%s14 + $0x24] sm:$0xf]
    %v4217 = vld [vmem:[%s14 + $0x28] sm:$0xf]
    %v4218 = vld [vmem:[%s14 + $0x2c] sm:$0xf]
    %v4219 = vld [vmem:[%s14 + $0x30] sm:$0xf]
    %v4220 = vld [vmem:[%s14 + $0x34] sm:$0xf]
    %v4221 = vld [vmem:[%s14 + $0x38] sm:$0xf]
    %v4222 = vld [vmem:[%s14 + $0x3c] sm:$0xf]
    %v4223 = vld [vmem:[%s15] sm:$0x1]
    %v4225 = vperm.slane %v4223, 0
    %v4243 = vunpack.c.l.b16 %v4207
    %v4244 = vunpack.c.l.b16 %v4208
    %v4245 = vunpack.c.l.b16 %v4209
    %v4246 = vunpack.c.l.b16 %v4210
    %v4247 = vunpack.c.l.b16 %v4211
    %v4248 = vunpack.c.l.b16 %v4212
    %v4249 = vunpack.c.l.b16 %v4213
    %v4250 = vunpack.c.l.b16 %v4214
    %v4251 = vunpack.c.l.b16 %v4215
    %v4252 = vunpack.c.l.b16 %v4216
    %v4253 = vunpack.c.l.b16 %v4217
    %v4254 = vunpack.c.l.b16 %v4218
    %v4255 = vunpack.c.l.b16 %v4219
    %v4256 = vunpack.c.l.b16 %v4220
    %v4257 = vunpack.c.l.b16 %v4221
    %v4258 = vunpack.c.l.b16 %v4222
    %v4259 = vpack.c.b16 %v4244, %v4243
    %v4260 = vpack.c.b16 %v4246, %v4245
    %v4261 = vpack.c.b16 %v4248, %v4247
    %v4262 = vpack.c.b16 %v4250, %v4249
    %v4263 = vpack.c.b16 %v4252, %v4251
    %v4264 = vpack.c.b16 %v4254, %v4253
    %v4265 = vpack.c.b16 %v4256, %v4255
    %v4266 = vpack.c.b16 %v4258, %v4257
    %4275 = vmatpush.bf16.msra.mxu0 %v4266
    %4276 = vmatpush.bf16.msra.mxu0 %v4265
    %4277 = vmatpush.bf16.msra.mxu0 %v4264
    %4278 = vmatpush.bf16.msra.mxu0 %v4263
    %4279 = vmatpush.bf16.msra.mxu0 %v4262
    %4280 = vmatpush.bf16.msra.mxu0 %v4261
    %4281 = vmatpush.bf16.msra.mxu0 %v4260
    %4282 = vmatpush.bf16.msra.mxu0 %v4259
    %4283 = vmatmul.bf16.gmra.mxu0 %v4206
    %v4284 = vpop.f32.mrf.mxu0
    %v4285 = vadd.f32 %v4225, %v4284
    %v4286 = vpop.f32.mrf.mxu0
    %4287 = vdwg.mxu0
    %v4288 = vmax.f32 %v4285, 0.0
    %v4289 = vpack.c.bf16 %v4288, %v4288
    %v4290 = vld [vmem:[%s16] sm:$0xf]
    %v4291 = vld [vmem:[%s16 + $0x4] sm:$0xf]
    %v4292 = vld [vmem:[%s16 + $0x8] sm:$0xf]
    %v4293 = vld [vmem:[%s16 + $0xc] sm:$0xf]
    %v4294 = vld [vmem:[%s16 + $0x10] sm:$0xf]
    %v4295 = vld [vmem:[%s16 + $0x14] sm:$0xf]
    %v4296 = vld [vmem:[%s16 + $0x18] sm:$0xf]
    %v4297 = vld [vmem:[%s16 + $0x1c] sm:$0xf]
    %v4298 = vld [vmem:[%s16 + $0x20] sm:$0xf]
    %v4299 = vld [vmem:[%s16 + $0x24] sm:$0xf]
    %v4300 = vld [vmem:[%s16 + $0x28] sm:$0xf]
    %v4301 = vld [vmem:[%s16 + $0x2c] sm:$0xf]
    %v4302 = vld [vmem:[%s16 + $0x30] sm:$0xf]
    %v4303 = vld [vmem:[%s16 + $0x34] sm:$0xf]
    %v4304 = vld [vmem:[%s16 + $0x38] sm:$0xf]
    %v4305 = vld [vmem:[%s16 + $0x3c] sm:$0xf]
    %v4306 = vld [vmem:[%s17] sm:$0x1]
    %v4308 = vperm.slane %v4306, 0
    %v4326 = vunpack.c.l.b16 %v4290
    %v4327 = vunpack.c.l.b16 %v4291
    %v4328 = vunpack.c.l.b16 %v4292
    %v4329 = vunpack.c.l.b16 %v4293
    %v4330 = vunpack.c.l.b16 %v4294
    %v4331 = vunpack.c.l.b16 %v4295
    %v4332 = vunpack.c.l.b16 %v4296
    %v4333 = vunpack.c.l.b16 %v4297
    %v4334 = vunpack.c.l.b16 %v4298
    %v4335 = vunpack.c.l.b16 %v4299
    %v4336 = vunpack.c.l.b16 %v4300
    %v4337 = vunpack.c.l.b16 %v4301
    %v4338 = vunpack.c.l.b16 %v4302
    %v4339 = vunpack.c.l.b16 %v4303
    %v4340 = vunpack.c.l.b16 %v4304
    %v4341 = vunpack.c.l.b16 %v4305
    %v4342 = vpack.c.b16 %v4327, %v4326
    %v4343 = vpack.c.b16 %v4329, %v4328
    %v4344 = vpack.c.b16 %v4331, %v4330
    %v4345 = vpack.c.b16 %v4333, %v4332
    %v4346 = vpack.c.b16 %v4335, %v4334
    %v4347 = vpack.c.b16 %v4337, %v4336
    %v4348 = vpack.c.b16 %v4339, %v4338
    %v4349 = vpack.c.b16 %v4341, %v4340
    %4358 = vmatpush.bf16.msra.mxu0 %v4349
    %4359 = vmatpush.bf16.msra.mxu0 %v4348
    %4360 = vmatpush.bf16.msra.mxu0 %v4347
    %4361 = vmatpush.bf16.msra.mxu0 %v4346
    %4362 = vmatpush.bf16.msra.mxu0 %v4345
    %4363 = vmatpush.bf16.msra.mxu0 %v4344
    %4364 = vmatpush.bf16.msra.mxu0 %v4343
    %4365 = vmatpush.bf16.msra.mxu0 %v4342
    %4366 = vmatmul.bf16.gmra.mxu0 %v4289
    %v4367 = vpop.f32.mrf.mxu0
    %v4368 = vadd.f32 %v4308, %v4367
    %v4369 = vpop.f32.mrf.mxu0
    %4370 = vdwg.mxu0
    %v4371 = vmax.f32 %v4368, 0.0
    %v4372 = vpack.c.bf16 %v4371, %v4371
    %v4373 = vld [vmem:[#allocation20] sm:$0xf]
    %v4374 = vld [vmem:[#allocation20 + $0x4] sm:$0xf]
    %v4375 = vld [vmem:[#allocation20 + $0x8] sm:$0xf]
    %v4376 = vld [vmem:[#allocation20 + $0xc] sm:$0xf]
    %v4377 = vld [vmem:[%s19] sm:$0x1]
    %v4379 = vperm.slane %v4377, 0
    %v4385 = vunpack.c.l.b16 %v4373
    %v4386 = vunpack.c.l.b16 %v4374
    %v4387 = vunpack.c.l.b16 %v4375
    %v4388 = vunpack.c.l.b16 %v4376
    %v4389 = vpack.c.b16 %v4386, %v4385
    %v4390 = vpack.c.b16 %v4388, %v4387
    %vm4393 = vcmask 261120
    %v4395 = vsel %vm4393, %v4372, 0
    %4397 = vmatpush.bf16.msra.mxu0 0
    %4398 = vmatpush.bf16.msra.mxu0 0
    %4399 = vmatpush.bf16.msra.mxu0 0
    %4400 = vmatpush.bf16.msra.mxu0 0
    %4401 = vmatpush.bf16.msra.mxu0 0
    %4402 = vmatpush.bf16.msra.mxu0 0
    %4403 = vmatpush.bf16.msra.mxu0 %v4390
    %4404 = vmatpush.bf16.msra.mxu0 %v4389
    %4405 = vmatmul.bf16.gmra.mxu0 %v4395
    %v4406 = vpop.f32.mrf.mxu0
    %v4407 = vadd.f32 %v4379, %v4406
    %v4408 = vpop.f32.mrf.mxu0
    %4409 = vdwg.mxu0
    %v4410 = vlaneseq
    %v4411 = vand.u32 %v4410, 127
    %vm4412 = vcmp.ge.s32.totalorder %v4411, 3
    %vm4413 = vcmp.lt.s32.totalorder %v4411, 6
    %vm4414 = vmand %vm4412, %vm4413
    %v4415 = vsel %vm4414, %v4407, 0.0
    %v4416 = vsub.f32 0.0, %v4415
    %v4417 = vmul.f32 %v4416, 1.442695
    %v4418 = vpow.pop %v4417
    %v4419 = vadd.f32 %v4418, 1.0
    %v4420 = vrcp.pop %v4419
    %v4421 = vmul.f32 %v4419, %v4420
    %v4422 = vsub.f32 1.0, %v4421
    %v4423 = vmul.f32 %v4420, %v4422
    %v4424 = vadd.f32 %v4420, %v4423
    %vm4425 = vweird.f32 %v4419
    %vm4426 = vweird.f32 %v4420
    %vm4427 = vmor %vm4425, %vm4426
    %v4428 = vsel %vm4427, %v4420, %v4424
    %v4429 = vand.u32 2147483647, %v4419
    %vm4430 = vcmp.eq.f32.partialorder %v4429, 8.507059e+37
    %v4431 = vand.u32 %v4419, 2147483648
    %v4432 = vor.u32 1.1754944e-38, %v4431
    %v4433 = vsel %vm4430, %v4432, %v4428
    %v4434 = vsel %vm4414, %v4433, %v4407
    %4435 = vst [vmem:[#allocation22] sm:$0xff] %v4434
    // Predicated region
    $region130: #{tpu_custom_call.1} parent=1 // pred_check
      _
    $region131: #{tpu_custom_call.1} parent=1 // pred_check_branch
      %4437 = sbr.rel (0) target = $region133
    $region132: #{tpu_custom_call.1} parent=1 // pred_region
      %4439 = vsyncadd [#allocation4], 0
      %s4441 = sshll.u32 [#allocation22], 4
      %s4442 = int_to_ptr.vmem [resolvable:$true] %s4441
      %s4443 = sshll.u32 %s20, 4
      %s4444 = int_to_ptr.hbm [resolvable:$true] %s4443
      %4446 = dma.vmem_to_hbm [thread:$0]  %s4442, 128, %s4444, [#allocation4]
    $region133: #{tpu_custom_call.1} parent=1 // pred_fallthru
      _
    // Predicated region
    $region134: #{tpu_custom_call.1} parent=1 // pred_check
      _
    $region135: #{tpu_custom_call.1} parent=1 // pred_check_branch
      %4448 = sbr.rel (0) target = $region137
    $region136: #{tpu_custom_call.1} parent=1 // pred_region
      %4450 = dma.done [#allocation4], 128
    $region137: #{tpu_custom_call.1} parent=1 // pred_fallthru
      _
    %4451 = vsyncpa [#allocation3], 1
    %4452 = vsyncpa [#allocation6], 1
    %4453 = vsyncpa [#allocation9], 1
    %4454 = vsyncpa [#allocation12], 1
    %4455 = vsyncpa [#allocation15], 1
    %4456 = vsyncpa [#allocation18], 1
    %4457 = vsyncpa [#allocation21], 1
    %4458 = vsyncpa [#allocation4], 1

</llo_original>
